<compile_context>
chip_gen: v7x
topology: tpu7x:2x2x1
jax: 0.10.0
libtpu: 0.0.40
codegen_flags: <defaults>
</compile_context>

<pallas_src>
import functools

import jax
import jax.numpy as jnp
from jax.experimental import pallas as pl
from jax.experimental.pallas import tpu as pltpu


# --------------------------------------------------------------------------- #
# Kernel
# --------------------------------------------------------------------------- #
def _layer_norm(v, gamma, beta, eps=1e-5):
    mu = jnp.mean(v, axis=-1, keepdims=True)
    var = jnp.mean(jnp.square(v - mu), axis=-1, keepdims=True)
    return (v - mu) * jax.lax.rsqrt(var + eps) * gamma + beta


def encoder_block_kernel(x_ref, vl_ref, wqkv_ref, wo_ref, g1_ref, bt1_ref,
                         w1_ref, bf1_ref, w2_ref, bf2_ref, g2_ref, bt2_ref,
                         o_ref, *, num_heads, ffn_chunk):
    BB, S, D = x_ref.shape
    H = num_heads
    dh = D // H
    M = BB * S
    F = w1_ref.shape[1]

    x = x_ref[...].astype(jnp.float32).reshape(M, D)              # (M, D) f32

    # ---- fused QKV projection (scale already folded into W_q) --------------
    qkv = jnp.dot(x.astype(jnp.bfloat16), wqkv_ref[...],
                  preferred_element_type=jnp.float32)             # (M, 3D) f32

    def split_heads(t):                                           # (M,D) -> (H*BB,S,dh) bf16
        t = t.astype(jnp.bfloat16).reshape(M, H, dh)              # bf16 BEFORE relayout
        t = pltpu.einshape("mhd->hmd", t)                         # (H, M, dh)
        return t.reshape(H * BB, S, dh)

    q = split_heads(qkv[:, 0 * D:1 * D])
    k = split_heads(qkv[:, 1 * D:2 * D])
    v = split_heads(qkv[:, 2 * D:3 * D])

    # ---- attention scores: one batched contraction --------------------------
    scores = jnp.einsum('bqd,bkd->bqk', q, k,
                        preferred_element_type=jnp.float32)       # (H*BB, S, S)

    # ---- masked softmax (d2l masked_softmax, -1e6 fill) ---------------------
    vlen = jnp.tile(vl_ref[...], (H, 1, 1))                       # (H*BB, S, 1) int32
    key_pos = jax.lax.broadcasted_iota(jnp.int32, (H * BB, S, S), 2)
    scores = jnp.where(key_pos < vlen, scores, -1e6)
    scores = scores - jnp.max(scores, axis=-1, keepdims=True)
    p = jnp.exp(scores)
    p = p * pl.reciprocal(jnp.sum(p, axis=-1, keepdims=True), approx=True)
    p = p.astype(jnp.bfloat16)

    ctx = jnp.einsum('bqk,bkd->bqd', p, v,
                     preferred_element_type=jnp.float32)          # (H*BB, S, dh)
    ctx = ctx.astype(jnp.bfloat16)                                # bf16 BEFORE relayout
    ctx = pltpu.einshape("hmd->mhd", ctx.reshape(H, M, dh)).reshape(M, D)

    attn = jnp.dot(ctx, wo_ref[...], preferred_element_type=jnp.float32)

    # ---- AddNorm 1 (dropout = identity) -------------------------------------
    y = _layer_norm(x + attn, g1_ref[...], bt1_ref[...])
    y_bf = y.astype(jnp.bfloat16)

    # ---- position-wise FFN, chunked over the hidden (F) axis ----------------
    f = jnp.zeros((M, D), jnp.float32)
    for c0 in range(0, F, ffn_chunk):
        h = jnp.dot(y_bf, w1_ref[:, c0:c0 + ffn_chunk],
                    preferred_element_type=jnp.float32) + bf1_ref[:, c0:c0 + ffn_chunk]
        h = jnp.maximum(h, 0.0).astype(jnp.bfloat16)
        f = f + jnp.dot(h, w2_ref[c0:c0 + ffn_chunk, :],
                        preferred_element_type=jnp.float32)
    f = f + bf2_ref[...]

    # ---- AddNorm 2 -----------------------------------------------------------
    out = _layer_norm(y + f, g2_ref[...], bt2_ref[...])
    o_ref[...] = out.reshape(BB, S, D).astype(o_ref.dtype)


# --------------------------------------------------------------------------- #
# Sizing helpers (generation / VMEM aware)
# --------------------------------------------------------------------------- #
def _vmem_capacity_bytes():
    try:
        return int(pltpu.get_tpu_info().vmem_capacity_bytes)
    except Exception:
        return 64 * 1024 * 1024          # conservative (v7x per-TC)


def _ffn_chunk(F, max_cols=2048):
    for nc in range(1, F + 1):
        if F % nc == 0 and F // nc <= max_cols:
            return F // nc
    return F


def _vmem_estimate(BB, S, D, F, H, ffn_chunk):
    """Rough per-step VMEM footprint (bytes), single-buffered weights."""
    M = BB * S
    w_bytes = 2 * (D * 3 * D + D * D + D * F + F * D)        # bf16 weights
    small = 2 * 4 * (6 * D + F)                               # ln params / biases
    io = 2 * 2 * (M * D * 4) + 2 * (BB * S * 4)               # x/out dbl-buffered + lens
    act = (M * 3 * D * 4 + 3 * M * D * 2                      # qkv f32 + q/k/v bf16
           + H * BB * S * S * 6                               # scores f32 + p bf16
           + 3 * M * D * 4                                    # ctx/attn/y
           + M * ffn_chunk * 4 + M * D * 4)                   # ffn hidden chunk + acc
    return w_bytes + small + io + act


def _pick_batch_tile(B, S, D, F, H, ffn_chunk, vmem_budget, row_target):
    cands = []
    for d in range(1, B + 1):
        if B % d:
            continue
        if d * S > row_target:
            continue
        if _vmem_estimate(d, S, D, F, H, ffn_chunk) > vmem_budget:
            continue
        cands.append(d)
    if not cands:
        return 1
    multi = [d for d in cands if B // d >= 2]                 # keep >=2 grid steps
    return max(multi) if multi else max(cands)


# --------------------------------------------------------------------------- #
# Wrapper
# --------------------------------------------------------------------------- #
def prepare_params(params, num_heads):
    """One-time weight prep: fused QKV (with 1/sqrt(dh) folded into W_q) and
    bf16 casts.  Call once and reuse; keeps the per-call path free of weight
    concatenation / casting HBM traffic."""
    D = params["wq"].shape[0]
    dh = D // num_heads
    scale = 1.0 / (dh ** 0.5)
    wqkv = jnp.concatenate([params["wq"] * scale, params["wk"], params["wv"]],
                           axis=1).astype(jnp.bfloat16)            # (D, 3D)
    return {
        "wqkv": wqkv,
        "wo": params["wo"].astype(jnp.bfloat16),
        "gamma1": params["gamma1"].astype(jnp.float32),
        "beta1": params["beta1"].astype(jnp.float32),
        "w1": params["w1"].astype(jnp.bfloat16),
        "b1": params["b1"].astype(jnp.float32),
        "w2": params["w2"].astype(jnp.bfloat16),
        "b2": params["b2"].astype(jnp.float32),
        "gamma2": params["gamma2"].astype(jnp.float32),
        "beta2": params["beta2"].astype(jnp.float32),
    }


def encoder_block(x, valid_lens, prepared, num_heads, batch_tile=None):
    B, S, D = x.shape
    F = prepared["w1"].shape[1]
    assert D % num_heads == 0, "d_model must be divisible by num_heads"

    # valid_lens -> per-query int32 lengths, shape (B, S, 1) (supports both the
    # (batch,) and (batch, seq_len) PyTorch variants).
    vl = valid_lens.astype(jnp.int32)
    if vl.ndim == 1:
        vl = jnp.broadcast_to(vl[:, None], (B, S))
    elif vl.ndim != 2:
        raise ValueError("valid_lens must have shape (batch,) or (batch, seq_len)")
    vl = vl.reshape(B, S, 1)

    cap = _vmem_capacity_bytes()
    row_target = 256 if cap <= (64 << 20) else 512
    ffn_chunk = _ffn_chunk(F)
    if batch_tile is None:
        batch_tile = _pick_batch_tile(B, S, D, F, num_heads, ffn_chunk,
                                      int(0.75 * cap), row_target)
    assert B % batch_tile == 0

    # Explicit scoped-VMEM limit; assume double-buffered weights for headroom
    # in case the Buffered(1) path falls back.
    est = _vmem_estimate(batch_tile, S, D, F, num_heads, ffn_chunk)
    w_bytes = 2 * (D * 3 * D + D * D + 2 * D * F)
    vmem_limit = int(min(cap, max(32 << 20, int(1.25 * est) + w_bytes + (2 << 20))))

    kernel = functools.partial(encoder_block_kernel, num_heads=num_heads,
                               ffn_chunk=ffn_chunk)

    def build(single_buffer_weights):
        def const_spec(shape):
            n = len(shape)
            idx = lambda b: (0,) * n
            if single_buffer_weights:
                # Constant-index blocks are DMA'd once -> no double buffering.
                return pl.BlockSpec(shape, idx, pipeline_mode=pl.Buffered(1))
            return pl.BlockSpec(shape, idx)

        grid_spec = pltpu.PrefetchScalarGridSpec(
            num_scalar_prefetch=0,
            grid=(B // batch_tile,),
            in_specs=[
                pl.BlockSpec((batch_tile, S, D), lambda b: (b, 0, 0)),   # X
                pl.BlockSpec((batch_tile, S, 1), lambda b: (b, 0, 0)),   # valid lens
                const_spec((D, 3 * D)),     # fused W_qkv (bf16, scale folded)
                const_spec((D, D)),         # W_o (bf16)
                const_spec((1, D)),         # ln1 gamma
                const_spec((1, D)),         # ln1 beta
                const_spec((D, F)),         # ffn dense1 weight (bf16)
                const_spec((1, F)),         # ffn dense1 bias
                const_spec((F, D)),         # ffn dense2 weight (bf16)
                const_spec((1, D)),         # ffn dense2 bias
                const_spec((1, D)),         # ln2 gamma
                const_spec((1, D)),         # ln2 beta
            ],
            out_specs=pl.BlockSpec((batch_tile, S, D), lambda b: (b, 0, 0)),
        )
        return pl.pallas_call(
            kernel,
            out_shape=jax.ShapeDtypeStruct((B, S, D), jnp.float32),
            grid_spec=grid_spec,
            compiler_params=pltpu.CompilerParams(
                dimension_semantics=("parallel",),
                vmem_limit_bytes=vmem_limit),
        )

    args = (x, vl,
            prepared["wqkv"], prepared["wo"],
            prepared["gamma1"], prepared["beta1"],
            prepared["w1"], prepared["b1"],
            prepared["w2"], prepared["b2"],
            prepared["gamma2"], prepared["beta2"])

    try:
        return build(True)(*args)
    except Exception:
        # Fallback: default (double-buffered) weight specs if Buffered(1) is
        # unsupported on this jax/libtpu build.
        return build(False)(*args)


# --------------------------------------------------------------------------- #
# Params / reference / demo
# --------------------------------------------------------------------------- #
def make_params(key, d_model, ffn_hidden):
    ks = jax.random.split(key, 8)
    s = 0.02
    return {
        "wq": s * jax.random.normal(ks[0], (d_model, d_model), jnp.float32),
        "wk": s * jax.random.normal(ks[1], (d_model, d_model), jnp.float32),
        "wv": s * jax.random.normal(ks[2], (d_model, d_model), jnp.float32),
        "wo": s * jax.random.normal(ks[3], (d_model, d_model), jnp.float32),
        "gamma1": jnp.ones((1, d_model), jnp.float32),
        "beta1": jnp.zeros((1, d_model), jnp.float32),
        "w1": s * jax.random.normal(ks[4], (d_model, ffn_hidden), jnp.float32),
        "b1": s * jax.random.normal(ks[5], (1, ffn_hidden), jnp.float32),
        "w2": s * jax.random.normal(ks[6], (ffn_hidden, d_model), jnp.float32),
        "b2": s * jax.random.normal(ks[7], (1, d_model), jnp.float32),
        "gamma2": jnp.ones((1, d_model), jnp.float32),
        "beta2": jnp.zeros((1, d_model), jnp.float32),
    }


def _reference(x, valid_lens, params, num_heads):
    """Pure-JAX f32 reference matching the PyTorch EncoderBlock (eval mode)."""
    B, S, D = x.shape
    H = num_heads
    dh = D // H
    q, k, v = x @ params["wq"], x @ params["wk"], x @ params["wv"]

    def heads(t):
        return t.reshape(B, S, H, dh).transpose(0, 2, 1, 3)       # (B,H,S,dh)

    q, k, v = heads(q), heads(k), heads(v)
    scores = jnp.einsum('bhqd,bhkd->bhqk', q, k) / jnp.sqrt(dh)
    vl = valid_lens if valid_lens.ndim == 2 else jnp.broadcast_to(
        valid_lens[:, None], (B, S))
    mask = jnp.arange(S)[None, None, None, :] < vl[:, None, :, None]
    scores = jnp.where(mask, scores, -1e6)
    p = jax.nn.softmax(scores, axis=-1)
    ctx = jnp.einsum('bhqk,bhkd->bhqd', p, v).transpose(0, 2, 1, 3).reshape(B, S, D)
    attn = ctx @ params["wo"]

    def ln(t, g, b):
        mu = t.mean(-1, keepdims=True)
        var = ((t - mu) ** 2).mean(-1, keepdims=True)
        return (t - mu) / jnp.sqrt(var + 1e-5) * g + b

    y = ln(x + attn, params["gamma1"], params["beta1"])
    h = jnp.maximum(y @ params["w1"] + params["b1"], 0.0)
    f = h @ params["w2"] + params["b2"]
    return ln(y + f, params["gamma2"], params["beta2"])


if __name__ == "__main__":
    B, S, D = 2, 8, 128          # batch, seq_len, num_hiddens (lane-friendly D)
    H = 4                        # num_heads  (dh = 32)
    F = 256                      # ffn_num_hiddens
    # dropout = 0.0 -> identity (eval semantics)

    key = jax.random.PRNGKey(0)
    kx, kp = jax.random.split(key)
    x = jax.random.normal(kx, (B, S, D), jnp.float32)
    valid_lens = jnp.array([5, 8], dtype=jnp.int32)
    params = make_params(kp, D, F)
    prepared = prepare_params(params, H)     # one-time weight prep (hoisted)

    out = encoder_block(x, valid_lens, prepared, num_heads=H)
    jax.block_until_ready(out)
    assert out.shape == (B, S, D)

    ref = _reference(x, valid_lens, params, H)
    err = float(jnp.max(jnp.abs(out - ref)))
    assert err < 0.2, f"max abs error vs f32 reference: {err}"
    print("KERNEL_OK")
</pallas_src>

<mosaic_0001>
module attributes {stable_mosaic.version = 11 : i64} {
  func.func @encoder_block_kernel(%arg0: i32, %arg1: memref<1x8x128xf32, #tpu.memory_space<vmem>>, %arg2: memref<1x8x1xi32, #tpu.memory_space<vmem>>, %arg3: memref<128x384xbf16, #tpu.memory_space<vmem>>, %arg4: memref<128x128xbf16, #tpu.memory_space<vmem>>, %arg5: memref<1x128xf32, #tpu.memory_space<vmem>>, %arg6: memref<1x128xf32, #tpu.memory_space<vmem>>, %arg7: memref<128x256xbf16, #tpu.memory_space<vmem>>, %arg8: memref<1x256xf32, #tpu.memory_space<vmem>>, %arg9: memref<256x128xbf16, #tpu.memory_space<vmem>>, %arg10: memref<1x128xf32, #tpu.memory_space<vmem>>, %arg11: memref<1x128xf32, #tpu.memory_space<vmem>>, %arg12: memref<1x128xf32, #tpu.memory_space<vmem>>, %arg13: memref<1x8x128xf32, #tpu.memory_space<vmem>>) attributes {dimension_semantics = [#tpu.dimension_semantics<parallel>], iteration_bounds = array<i64: 2>, scalar_prefetch = 0 : i64, scratch_operands = 0 : i64, tpu.core_type = #tpu.core_type<tc>, window_params = [{transform_indices = @transform_0, window_bounds = array<i64: 1, 8, 128>}, {transform_indices = @transform_1, window_bounds = array<i64: 1, 8, 1>}, {pipeline_mode = #tpu.pipeline_mode<synchronous>, transform_indices = @transform_2, window_bounds = array<i64: 128, 384>}, {pipeline_mode = #tpu.pipeline_mode<synchronous>, transform_indices = @transform_3, window_bounds = array<i64: 128, 128>}, {pipeline_mode = #tpu.pipeline_mode<synchronous>, transform_indices = @transform_4, window_bounds = array<i64: 1, 128>}, {pipeline_mode = #tpu.pipeline_mode<synchronous>, transform_indices = @transform_5, window_bounds = array<i64: 1, 128>}, {pipeline_mode = #tpu.pipeline_mode<synchronous>, transform_indices = @transform_6, window_bounds = array<i64: 128, 256>}, {pipeline_mode = #tpu.pipeline_mode<synchronous>, transform_indices = @transform_7, window_bounds = array<i64: 1, 256>}, {pipeline_mode = #tpu.pipeline_mode<synchronous>, transform_indices = @transform_8, window_bounds = array<i64: 256, 128>}, {pipeline_mode = #tpu.pipeline_mode<synchronous>, transform_indices = @transform_9, window_bounds = array<i64: 1, 128>}, {pipeline_mode = #tpu.pipeline_mode<synchronous>, transform_indices = @transform_10, window_bounds = array<i64: 1, 128>}, {pipeline_mode = #tpu.pipeline_mode<synchronous>, transform_indices = @transform_11, window_bounds = array<i64: 1, 128>}, {transform_indices = @transform_12, window_bounds = array<i64: 1, 8, 128>}]} {
    %c0 = arith.constant 0 : index
    %c0_0 = arith.constant 0 : index
    %c0_1 = arith.constant 0 : index
    %0 = vector.load %arg1[%c0, %c0_0, %c0_1] : memref<1x8x128xf32, #tpu.memory_space<vmem>>, vector<1x8x128xf32>
    %1 = vector.shape_cast %0 : vector<1x8x128xf32> to vector<8x128xf32>
    %2 = arith.truncf %1 : vector<8x128xf32> to vector<8x128xbf16>
    %c0_2 = arith.constant 0 : index
    %c0_3 = arith.constant 0 : index
    %3 = vector.load %arg3[%c0_2, %c0_3] : memref<128x384xbf16, #tpu.memory_space<vmem>>, vector<128x384xbf16>
    %cst = arith.constant dense<0.000000e+00> : vector<8x384xf32>
    %4 = tpu.matmul %2, %3, %cst {dimension_numbers = #tpu.dot_dimension_numbers<[1], [0], [0], [1], [0, 0, 1, 1], [], []>} : vector<8x128xbf16>, vector<128x384xbf16>, vector<8x384xf32> -> vector<8x384xf32>
    %5 = vector.extract_strided_slice %4 {offsets = [0, 0], sizes = [8, 128], strides = [1, 1]} : vector<8x384xf32> to vector<8x128xf32>
    %6 = arith.truncf %5 : vector<8x128xf32> to vector<8x128xbf16>
    %7 = vector.shape_cast %6 : vector<8x128xbf16> to vector<8x4x32xbf16>
    %8 = tpu.transpose %7, [1, 0, 2] : vector<8x4x32xbf16> -> vector<4x8x32xbf16>
    %9 = vector.extract_strided_slice %4 {offsets = [0, 128], sizes = [8, 128], strides = [1, 1]} : vector<8x384xf32> to vector<8x128xf32>
    %10 = arith.truncf %9 : vector<8x128xf32> to vector<8x128xbf16>
    %11 = vector.shape_cast %10 : vector<8x128xbf16> to vector<8x4x32xbf16>
    %12 = tpu.transpose %11, [1, 0, 2] : vector<8x4x32xbf16> -> vector<4x8x32xbf16>
    %13 = vector.extract_strided_slice %4 {offsets = [0, 256], sizes = [8, 128], strides = [1, 1]} : vector<8x384xf32> to vector<8x128xf32>
    %14 = arith.truncf %13 : vector<8x128xf32> to vector<8x128xbf16>
    %15 = vector.shape_cast %14 : vector<8x128xbf16> to vector<8x4x32xbf16>
    %16 = tpu.transpose %15, [1, 0, 2] : vector<8x4x32xbf16> -> vector<4x8x32xbf16>
    "tpu.trace_start"() <{level = 10 : i32, message = "bqd,bkd->bqk"}> : () -> ()
    %cst_4 = arith.constant dense<0.000000e+00> : vector<4x8x8xf32>
    %17 = tpu.matmul %8, %12, %cst_4 {dimension_numbers = #tpu.dot_dimension_numbers<[2], [2], [1], [1], [0, 0, 0, 1, 1, 1], [0], [0]>} : vector<4x8x32xbf16>, vector<4x8x32xbf16>, vector<4x8x8xf32> -> vector<4x8x8xf32>
    "tpu.trace_stop"() : () -> ()
    %c0_5 = arith.constant 0 : index
    %c0_6 = arith.constant 0 : index
    %c0_7 = arith.constant 0 : index
    %18 = vector.load %arg2[%c0_5, %c0_6, %c0_7] : memref<1x8x1xi32, #tpu.memory_space<vmem>>, vector<1x8x1xi32>
    %19 = tpu.concatenate %18, %18, %18, %18 in 0 : vector<1x8x1xi32>, vector<1x8x1xi32>, vector<1x8x1xi32>, vector<1x8x1xi32> -> vector<4x8x1xi32>
    %20 = tpu.iota {dimensions = array<i32: 2>} : vector<4x8x8xi32>
    %21 = vector.broadcast %19 : vector<4x8x1xi32> to vector<4x8x8xi32>
    %22 = arith.cmpi slt, %20, %21 : vector<4x8x8xi32>
    %cst_8 = arith.constant -1.000000e+06 : f32
    %23 = vector.broadcast %cst_8 : f32 to vector<4x8x8xf32>
    %24 = arith.select %22, %17, %23 : vector<4x8x8xi1>, vector<4x8x8xf32>
    %cst_9 = arith.constant dense<0xFF800000> : vector<4x8xf32>
    %25 = vector.multi_reduction <maximumf>, %24, %cst_9 [2] : vector<4x8x8xf32> to vector<4x8xf32>
    %26 = vector.shape_cast %25 : vector<4x8xf32> to vector<4x8x1xf32>
    %27 = vector.broadcast %26 : vector<4x8x1xf32> to vector<4x8x8xf32>
    %28 = arith.subf %24, %27 : vector<4x8x8xf32>
    %29 = math.exp %28 : vector<4x8x8xf32>
    %cst_10 = arith.constant dense<0.000000e+00> : vector<4x8xf32>
    %30 = vector.multi_reduction <add>, %29, %cst_10 [2] : vector<4x8x8xf32> to vector<4x8xf32>
    %31 = vector.shape_cast %30 : vector<4x8xf32> to vector<4x8x1xf32>
    %32 = tpu.reciprocal %31 {approx = true} : vector<4x8x1xf32> -> vector<4x8x1xf32>
    %33 = vector.broadcast %32 : vector<4x8x1xf32> to vector<4x8x8xf32>
    %34 = arith.mulf %29, %33 : vector<4x8x8xf32>
    %35 = arith.truncf %34 : vector<4x8x8xf32> to vector<4x8x8xbf16>
    "tpu.trace_start"() <{level = 10 : i32, message = "bqk,bkd->bqd"}> : () -> ()
    %cst_11 = arith.constant dense<0.000000e+00> : vector<4x8x32xf32>
    %36 = tpu.matmul %35, %16, %cst_11 {dimension_numbers = #tpu.dot_dimension_numbers<[2], [1], [1], [2], [0, 0, 0, 1, 1, 2], [0], [0]>} : vector<4x8x8xbf16>, vector<4x8x32xbf16>, vector<4x8x32xf32> -> vector<4x8x32xf32>
    "tpu.trace_stop"() : () -> ()
    %37 = arith.truncf %36 : vector<4x8x32xf32> to vector<4x8x32xbf16>
    %38 = tpu.transpose %37, [1, 0, 2] : vector<4x8x32xbf16> -> vector<8x4x32xbf16>
    %39 = vector.shape_cast %38 : vector<8x4x32xbf16> to vector<8x128xbf16>
    %c0_12 = arith.constant 0 : index
    %c0_13 = arith.constant 0 : index
    %40 = vector.load %arg4[%c0_12, %c0_13] : memref<128x128xbf16, #tpu.memory_space<vmem>>, vector<128x128xbf16>
    %cst_14 = arith.constant dense<0.000000e+00> : vector<8x128xf32>
    %41 = tpu.matmul %39, %40, %cst_14 {dimension_numbers = #tpu.dot_dimension_numbers<[1], [0], [0], [1], [0, 0, 1, 1], [], []>} : vector<8x128xbf16>, vector<128x128xbf16>, vector<8x128xf32> -> vector<8x128xf32>
    %42 = arith.addf %1, %41 : vector<8x128xf32>
    %c0_15 = arith.constant 0 : index
    %c0_16 = arith.constant 0 : index
    %43 = vector.load %arg5[%c0_15, %c0_16] : memref<1x128xf32, #tpu.memory_space<vmem>>, vector<1x128xf32>
    %c0_17 = arith.constant 0 : index
    %c0_18 = arith.constant 0 : index
    %44 = vector.load %arg6[%c0_17, %c0_18] : memref<1x128xf32, #tpu.memory_space<vmem>>, vector<1x128xf32>
    %cst_19 = arith.constant dense<0.000000e+00> : vector<8xf32>
    %45 = vector.multi_reduction <add>, %42, %cst_19 [1] : vector<8x128xf32> to vector<8xf32>
    %46 = vector.shape_cast %45 : vector<8xf32> to vector<8x1xf32>
    %cst_20 = arith.constant 1.280000e+02 : f32
    %47 = vector.broadcast %cst_20 : f32 to vector<8x1xf32>
    %48 = arith.divf %46, %47 : vector<8x1xf32>
    %49 = vector.broadcast %48 : vector<8x1xf32> to vector<8x128xf32>
    %50 = arith.subf %42, %49 : vector<8x128xf32>
    %51 = arith.mulf %50, %50 : vector<8x128xf32>
    %cst_21 = arith.constant dense<0.000000e+00> : vector<8xf32>
    %52 = vector.multi_reduction <add>, %51, %cst_21 [1] : vector<8x128xf32> to vector<8xf32>
    %53 = vector.shape_cast %52 : vector<8xf32> to vector<8x1xf32>
    %cst_22 = arith.constant 1.280000e+02 : f32
    %54 = vector.broadcast %cst_22 : f32 to vector<8x1xf32>
    %55 = arith.divf %53, %54 : vector<8x1xf32>
    %56 = vector.broadcast %48 : vector<8x1xf32> to vector<8x128xf32>
    %57 = arith.subf %42, %56 : vector<8x128xf32>
    %cst_23 = arith.constant 9.99999974E-6 : f32
    %58 = vector.broadcast %cst_23 : f32 to vector<8x1xf32>
    %59 = arith.addf %55, %58 : vector<8x1xf32>
    %60 = math.rsqrt %59 : vector<8x1xf32>
    %61 = vector.broadcast %60 : vector<8x1xf32> to vector<8x128xf32>
    %62 = arith.mulf %57, %61 : vector<8x128xf32>
    %63 = vector.broadcast %43 : vector<1x128xf32> to vector<8x128xf32>
    %64 = arith.mulf %62, %63 : vector<8x128xf32>
    %65 = vector.broadcast %44 : vector<1x128xf32> to vector<8x128xf32>
    %66 = arith.addf %64, %65 : vector<8x128xf32>
    %67 = arith.truncf %66 : vector<8x128xf32> to vector<8x128xbf16>
    %cst_24 = arith.constant 0.000000e+00 : f32
    %68 = vector.broadcast %cst_24 : f32 to vector<8x128xf32>
    %c0_25 = arith.constant 0 : index
    %c0_26 = arith.constant 0 : index
    %69 = vector.load %arg7[%c0_25, %c0_26] : memref<128x256xbf16, #tpu.memory_space<vmem>>, vector<128x256xbf16>
    %cst_27 = arith.constant dense<0.000000e+00> : vector<8x256xf32>
    %70 = tpu.matmul %67, %69, %cst_27 {dimension_numbers = #tpu.dot_dimension_numbers<[1], [0], [0], [1], [0, 0, 1, 1], [], []>} : vector<8x128xbf16>, vector<128x256xbf16>, vector<8x256xf32> -> vector<8x256xf32>
    %c0_28 = arith.constant 0 : index
    %c0_29 = arith.constant 0 : index
    %71 = vector.load %arg8[%c0_28, %c0_29] : memref<1x256xf32, #tpu.memory_space<vmem>>, vector<1x256xf32>
    %72 = vector.broadcast %71 : vector<1x256xf32> to vector<8x256xf32>
    %73 = arith.addf %70, %72 : vector<8x256xf32>
    %cst_30 = arith.constant 0.000000e+00 : f32
    %74 = vector.broadcast %cst_30 : f32 to vector<8x256xf32>
    %75 = arith.maximumf %73, %74 : vector<8x256xf32>
    %76 = arith.truncf %75 : vector<8x256xf32> to vector<8x256xbf16>
    %c0_31 = arith.constant 0 : index
    %c0_32 = arith.constant 0 : index
    %77 = vector.load %arg9[%c0_31, %c0_32] : memref<256x128xbf16, #tpu.memory_space<vmem>>, vector<256x128xbf16>
    %cst_33 = arith.constant dense<0.000000e+00> : vector<8x128xf32>
    %78 = tpu.matmul %76, %77, %cst_33 {dimension_numbers = #tpu.dot_dimension_numbers<[1], [0], [0], [1], [0, 0, 1, 1], [], []>} : vector<8x256xbf16>, vector<256x128xbf16>, vector<8x128xf32> -> vector<8x128xf32>
    %79 = arith.addf %68, %78 : vector<8x128xf32>
    %c0_34 = arith.constant 0 : index
    %c0_35 = arith.constant 0 : index
    %80 = vector.load %arg10[%c0_34, %c0_35] : memref<1x128xf32, #tpu.memory_space<vmem>>, vector<1x128xf32>
    %81 = vector.broadcast %80 : vector<1x128xf32> to vector<8x128xf32>
    %82 = arith.addf %79, %81 : vector<8x128xf32>
    %83 = arith.addf %66, %82 : vector<8x128xf32>
    %c0_36 = arith.constant 0 : index
    %c0_37 = arith.constant 0 : index
    %84 = vector.load %arg11[%c0_36, %c0_37] : memref<1x128xf32, #tpu.memory_space<vmem>>, vector<1x128xf32>
    %c0_38 = arith.constant 0 : index
    %c0_39 = arith.constant 0 : index
    %85 = vector.load %arg12[%c0_38, %c0_39] : memref<1x128xf32, #tpu.memory_space<vmem>>, vector<1x128xf32>
    %cst_40 = arith.constant dense<0.000000e+00> : vector<8xf32>
    %86 = vector.multi_reduction <add>, %83, %cst_40 [1] : vector<8x128xf32> to vector<8xf32>
    %87 = vector.shape_cast %86 : vector<8xf32> to vector<8x1xf32>
    %cst_41 = arith.constant 1.280000e+02 : f32
    %88 = vector.broadcast %cst_41 : f32 to vector<8x1xf32>
    %89 = arith.divf %87, %88 : vector<8x1xf32>
    %90 = vector.broadcast %89 : vector<8x1xf32> to vector<8x128xf32>
    %91 = arith.subf %83, %90 : vector<8x128xf32>
    %92 = arith.mulf %91, %91 : vector<8x128xf32>
    %cst_42 = arith.constant dense<0.000000e+00> : vector<8xf32>
    %93 = vector.multi_reduction <add>, %92, %cst_42 [1] : vector<8x128xf32> to vector<8xf32>
    %94 = vector.shape_cast %93 : vector<8xf32> to vector<8x1xf32>
    %cst_43 = arith.constant 1.280000e+02 : f32
    %95 = vector.broadcast %cst_43 : f32 to vector<8x1xf32>
    %96 = arith.divf %94, %95 : vector<8x1xf32>
    %97 = vector.broadcast %89 : vector<8x1xf32> to vector<8x128xf32>
    %98 = arith.subf %83, %97 : vector<8x128xf32>
    %cst_44 = arith.constant 9.99999974E-6 : f32
    %99 = vector.broadcast %cst_44 : f32 to vector<8x1xf32>
    %100 = arith.addf %96, %99 : vector<8x1xf32>
    %101 = math.rsqrt %100 : vector<8x1xf32>
    %102 = vector.broadcast %101 : vector<8x1xf32> to vector<8x128xf32>
    %103 = arith.mulf %98, %102 : vector<8x128xf32>
    %104 = vector.broadcast %84 : vector<1x128xf32> to vector<8x128xf32>
    %105 = arith.mulf %103, %104 : vector<8x128xf32>
    %106 = vector.broadcast %85 : vector<1x128xf32> to vector<8x128xf32>
    %107 = arith.addf %105, %106 : vector<8x128xf32>
    %108 = vector.shape_cast %107 : vector<8x128xf32> to vector<1x8x128xf32>
    %c0_45 = arith.constant 0 : index
    %c0_46 = arith.constant 0 : index
    %c0_47 = arith.constant 0 : index
    %109 = vector.load %arg13[%c0_45, %c0_46, %c0_47] : memref<1x8x128xf32, #tpu.memory_space<vmem>>, vector<1x8x128xf32>
    tpu.vector_store %arg13[%c0_45, %c0_46, %c0_47], %108 {strides = array<i32>} : memref<1x8x128xf32, #tpu.memory_space<vmem>>, vector<1x8x128xf32>,
    return
  }
  func.func @transform_0(%arg0: i32) -> (i32, i32, i32) {
    %c0_i32 = arith.constant 0 : i32
    %c0_i32_0 = arith.constant 0 : i32
    %c0_i32_1 = arith.constant 0 : i32
    return %arg0, %c0_i32, %c0_i32_0 : i32, i32, i32
  }
  func.func @transform_1(%arg0: i32) -> (i32, i32, i32) {
    %c0_i32 = arith.constant 0 : i32
    %c0_i32_0 = arith.constant 0 : i32
    %c0_i32_1 = arith.constant 0 : i32
    return %arg0, %c0_i32, %c0_i32_0 : i32, i32, i32
  }
  func.func @transform_2(%arg0: i32) -> (i32, i32) {
    %c0_i32 = arith.constant 0 : i32
    %c0_i32_0 = arith.constant 0 : i32
    %c0_i32_1 = arith.constant 0 : i32
    return %c0_i32, %c0_i32_0 : i32, i32
  }
  func.func @transform_3(%arg0: i32) -> (i32, i32) {
    %c0_i32 = arith.constant 0 : i32
    %c0_i32_0 = arith.constant 0 : i32
    %c0_i32_1 = arith.constant 0 : i32
    return %c0_i32, %c0_i32_0 : i32, i32
  }
  func.func @transform_4(%arg0: i32) -> (i32, i32) {
    %c0_i32 = arith.constant 0 : i32
    %c0_i32_0 = arith.constant 0 : i32
    %c0_i32_1 = arith.constant 0 : i32
    return %c0_i32, %c0_i32_0 : i32, i32
  }
  func.func @transform_5(%arg0: i32) -> (i32, i32) {
    %c0_i32 = arith.constant 0 : i32
    %c0_i32_0 = arith.constant 0 : i32
    %c0_i32_1 = arith.constant 0 : i32
    return %c0_i32, %c0_i32_0 : i32, i32
  }
  func.func @transform_6(%arg0: i32) -> (i32, i32) {
    %c0_i32 = arith.constant 0 : i32
    %c0_i32_0 = arith.constant 0 : i32
    %c0_i32_1 = arith.constant 0 : i32
    return %c0_i32, %c0_i32_0 : i32, i32
  }
  func.func @transform_7(%arg0: i32) -> (i32, i32) {
    %c0_i32 = arith.constant 0 : i32
    %c0_i32_0 = arith.constant 0 : i32
    %c0_i32_1 = arith.constant 0 : i32
    return %c0_i32, %c0_i32_0 : i32, i32
  }
  func.func @transform_8(%arg0: i32) -> (i32, i32) {
    %c0_i32 = arith.constant 0 : i32
    %c0_i32_0 = arith.constant 0 : i32
    %c0_i32_1 = arith.constant 0 : i32
    return %c0_i32, %c0_i32_0 : i32, i32
  }
  func.func @transform_9(%arg0: i32) -> (i32, i32) {
    %c0_i32 = arith.constant 0 : i32
    %c0_i32_0 = arith.constant 0 : i32
    %c0_i32_1 = arith.constant 0 : i32
    return %c0_i32, %c0_i32_0 : i32, i32
  }
  func.func @transform_10(%arg0: i32) -> (i32, i32) {
    %c0_i32 = arith.constant 0 : i32
    %c0_i32_0 = arith.constant 0 : i32
    %c0_i32_1 = arith.constant 0 : i32
    return %c0_i32, %c0_i32_0 : i32, i32
  }
  func.func @transform_11(%arg0: i32) -> (i32, i32) {
    %c0_i32 = arith.constant 0 : i32
    %c0_i32_0 = arith.constant 0 : i32
    %c0_i32_1 = arith.constant 0 : i32
    return %c0_i32, %c0_i32_0 : i32, i32
  }
  func.func @transform_12(%arg0: i32) -> (i32, i32, i32) {
    %c0_i32 = arith.constant 0 : i32
    %c0_i32_0 = arith.constant 0 : i32
    %c0_i32_1 = arith.constant 0 : i32
    return %arg0, %c0_i32, %c0_i32_0 : i32, i32, i32
  }
}

module attributes {stable_mosaic.version = 11 : i64} {
  func.func @encoder_block_kernel(%arg0: i32, %arg1: memref<1x8x128xf32, #tpu.memory_space<vmem>>, %arg2: memref<1x8x1xi32, #tpu.memory_space<vmem>>, %arg3: memref<128x384xbf16, #tpu.memory_space<vmem>>, %arg4: memref<128x128xbf16, #tpu.memory_space<vmem>>, %arg5: memref<1x128xf32, #tpu.memory_space<vmem>>, %arg6: memref<1x128xf32, #tpu.memory_space<vmem>>, %arg7: memref<128x256xbf16, #tpu.memory_space<vmem>>, %arg8: memref<1x256xf32, #tpu.memory_space<vmem>>, %arg9: memref<256x128xbf16, #tpu.memory_space<vmem>>, %arg10: memref<1x128xf32, #tpu.memory_space<vmem>>, %arg11: memref<1x128xf32, #tpu.memory_space<vmem>>, %arg12: memref<1x128xf32, #tpu.memory_space<vmem>>, %arg13: memref<1x8x128xf32, #tpu.memory_space<vmem>>) attributes {dimension_semantics = [#tpu.dimension_semantics<parallel>], iteration_bounds = array<i64: 2>, scalar_prefetch = 0 : i64, scratch_operands = 0 : i64, tpu.core_type = #tpu.core_type<tc>, window_params = [{transform_indices = @transform_0, window_bounds = array<i64: 1, 8, 128>}, {transform_indices = @transform_1, window_bounds = array<i64: 1, 8, 1>}, {pipeline_mode = #tpu.pipeline_mode<synchronous>, transform_indices = @transform_2, window_bounds = array<i64: 128, 384>}, {pipeline_mode = #tpu.pipeline_mode<synchronous>, transform_indices = @transform_3, window_bounds = array<i64: 128, 128>}, {pipeline_mode = #tpu.pipeline_mode<synchronous>, transform_indices = @transform_4, window_bounds = array<i64: 1, 128>}, {pipeline_mode = #tpu.pipeline_mode<synchronous>, transform_indices = @transform_5, window_bounds = array<i64: 1, 128>}, {pipeline_mode = #tpu.pipeline_mode<synchronous>, transform_indices = @transform_6, window_bounds = array<i64: 128, 256>}, {pipeline_mode = #tpu.pipeline_mode<synchronous>, transform_indices = @transform_7, window_bounds = array<i64: 1, 256>}, {pipeline_mode = #tpu.pipeline_mode<synchronous>, transform_indices = @transform_8, window_bounds = array<i64: 256, 128>}, {pipeline_mode = #tpu.pipeline_mode<synchronous>, transform_indices = @transform_9, window_bounds = array<i64: 1, 128>}, {pipeline_mode = #tpu.pipeline_mode<synchronous>, transform_indices = @transform_10, window_bounds = array<i64: 1, 128>}, {pipeline_mode = #tpu.pipeline_mode<synchronous>, transform_indices = @transform_11, window_bounds = array<i64: 1, 128>}, {transform_indices = @transform_12, window_bounds = array<i64: 1, 8, 128>}]} {
    %c0 = arith.constant 0 : index
    %c0_0 = arith.constant 0 : index
    %c0_1 = arith.constant 0 : index
    %0 = vector.load %arg1[%c0, %c0_0, %c0_1] : memref<1x8x128xf32, #tpu.memory_space<vmem>>, vector<1x8x128xf32>
    %1 = vector.shape_cast %0 : vector<1x8x128xf32> to vector<8x128xf32>
    %2 = arith.truncf %1 : vector<8x128xf32> to vector<8x128xbf16>
    %c0_2 = arith.constant 0 : index
    %c0_3 = arith.constant 0 : index
    %3 = vector.load %arg3[%c0_2, %c0_3] : memref<128x384xbf16, #tpu.memory_space<vmem>>, vector<128x384xbf16>
    %cst = arith.constant dense<0.000000e+00> : vector<8x384xf32>
    %4 = tpu.matmul %2, %3, %cst {dimension_numbers = #tpu.dot_dimension_numbers<[1], [0], [0], [1], [0, 0, 1, 1], [], []>} : vector<8x128xbf16>, vector<128x384xbf16>, vector<8x384xf32> -> vector<8x384xf32>
    %5 = vector.extract_strided_slice %4 {offsets = [0, 0], sizes = [8, 128], strides = [1, 1]} : vector<8x384xf32> to vector<8x128xf32>
    %6 = arith.truncf %5 : vector<8x128xf32> to vector<8x128xbf16>
    %7 = vector.shape_cast %6 : vector<8x128xbf16> to vector<8x4x32xbf16>
    %8 = tpu.transpose %7, [1, 0, 2] : vector<8x4x32xbf16> -> vector<4x8x32xbf16>
    %9 = vector.extract_strided_slice %4 {offsets = [0, 128], sizes = [8, 128], strides = [1, 1]} : vector<8x384xf32> to vector<8x128xf32>
    %10 = arith.truncf %9 : vector<8x128xf32> to vector<8x128xbf16>
    %11 = vector.shape_cast %10 : vector<8x128xbf16> to vector<8x4x32xbf16>
    %12 = tpu.transpose %11, [1, 0, 2] : vector<8x4x32xbf16> -> vector<4x8x32xbf16>
    %13 = vector.extract_strided_slice %4 {offsets = [0, 256], sizes = [8, 128], strides = [1, 1]} : vector<8x384xf32> to vector<8x128xf32>
    %14 = arith.truncf %13 : vector<8x128xf32> to vector<8x128xbf16>
    %15 = vector.shape_cast %14 : vector<8x128xbf16> to vector<8x4x32xbf16>
    %16 = tpu.transpose %15, [1, 0, 2] : vector<8x4x32xbf16> -> vector<4x8x32xbf16>
    "tpu.trace_start"() <{level = 10 : i32, message = "bqd,bkd->bqk"}> : () -> ()
    %cst_4 = arith.constant dense<0.000000e+00> : vector<4x8x8xf32>
    %17 = tpu.matmul %8, %12, %cst_4 {dimension_numbers = #tpu.dot_dimension_numbers<[2], [2], [1], [1], [0, 0, 0, 1, 1, 1], [0], [0]>} : vector<4x8x32xbf16>, vector<4x8x32xbf16>, vector<4x8x8xf32> -> vector<4x8x8xf32>
    "tpu.trace_stop"() : () -> ()
    %c0_5 = arith.constant 0 : index
    %c0_6 = arith.constant 0 : index
    %c0_7 = arith.constant 0 : index
    %18 = vector.load %arg2[%c0_5, %c0_6, %c0_7] : memref<1x8x1xi32, #tpu.memory_space<vmem>>, vector<1x8x1xi32>
    %19 = tpu.concatenate %18, %18, %18, %18 in 0 : vector<1x8x1xi32>, vector<1x8x1xi32>, vector<1x8x1xi32>, vector<1x8x1xi32> -> vector<4x8x1xi32>
    %20 = tpu.iota {dimensions = array<i32: 2>} : vector<4x8x8xi32>
    %21 = vector.broadcast %19 : vector<4x8x1xi32> to vector<4x8x8xi32>
    %22 = arith.cmpi slt, %20, %21 : vector<4x8x8xi32>
    %cst_8 = arith.constant -1.000000e+06 : f32
    %23 = vector.broadcast %cst_8 : f32 to vector<4x8x8xf32>
    %24 = arith.select %22, %17, %23 : vector<4x8x8xi1>, vector<4x8x8xf32>
    %cst_9 = arith.constant dense<0xFF800000> : vector<4x8xf32>
    %25 = vector.multi_reduction <maximumf>, %24, %cst_9 [2] : vector<4x8x8xf32> to vector<4x8xf32>
    %26 = vector.shape_cast %25 : vector<4x8xf32> to vector<4x8x1xf32>
    %27 = vector.broadcast %26 : vector<4x8x1xf32> to vector<4x8x8xf32>
    %28 = arith.subf %24, %27 : vector<4x8x8xf32>
    %29 = math.exp %28 : vector<4x8x8xf32>
    %cst_10 = arith.constant dense<0.000000e+00> : vector<4x8xf32>
    %30 = vector.multi_reduction <add>, %29, %cst_10 [2] : vector<4x8x8xf32> to vector<4x8xf32>
    %31 = vector.shape_cast %30 : vector<4x8xf32> to vector<4x8x1xf32>
    %32 = tpu.reciprocal %31 {approx = true} : vector<4x8x1xf32> -> vector<4x8x1xf32>
    %33 = vector.broadcast %32 : vector<4x8x1xf32> to vector<4x8x8xf32>
    %34 = arith.mulf %29, %33 : vector<4x8x8xf32>
    %35 = arith.truncf %34 : vector<4x8x8xf32> to vector<4x8x8xbf16>
    "tpu.trace_start"() <{level = 10 : i32, message = "bqk,bkd->bqd"}> : () -> ()
    %cst_11 = arith.constant dense<0.000000e+00> : vector<4x8x32xf32>
    %36 = tpu.matmul %35, %16, %cst_11 {dimension_numbers = #tpu.dot_dimension_numbers<[2], [1], [1], [2], [0, 0, 0, 1, 1, 2], [0], [0]>} : vector<4x8x8xbf16>, vector<4x8x32xbf16>, vector<4x8x32xf32> -> vector<4x8x32xf32>
    "tpu.trace_stop"() : () -> ()
    %37 = arith.truncf %36 : vector<4x8x32xf32> to vector<4x8x32xbf16>
    %38 = tpu.transpose %37, [1, 0, 2] : vector<4x8x32xbf16> -> vector<8x4x32xbf16>
    %39 = vector.shape_cast %38 : vector<8x4x32xbf16> to vector<8x128xbf16>
    %c0_12 = arith.constant 0 : index
    %c0_13 = arith.constant 0 : index
    %40 = vector.load %arg4[%c0_12, %c0_13] : memref<128x128xbf16, #tpu.memory_space<vmem>>, vector<128x128xbf16>
    %cst_14 = arith.constant dense<0.000000e+00> : vector<8x128xf32>
    %41 = tpu.matmul %39, %40, %cst_14 {dimension_numbers = #tpu.dot_dimension_numbers<[1], [0], [0], [1], [0, 0, 1, 1], [], []>} : vector<8x128xbf16>, vector<128x128xbf16>, vector<8x128xf32> -> vector<8x128xf32>
    %42 = arith.addf %1, %41 : vector<8x128xf32>
    %c0_15 = arith.constant 0 : index
    %c0_16 = arith.constant 0 : index
    %43 = vector.load %arg5[%c0_15, %c0_16] : memref<1x128xf32, #tpu.memory_space<vmem>>, vector<1x128xf32>
    %c0_17 = arith.constant 0 : index
    %c0_18 = arith.constant 0 : index
    %44 = vector.load %arg6[%c0_17, %c0_18] : memref<1x128xf32, #tpu.memory_space<vmem>>, vector<1x128xf32>
    %cst_19 = arith.constant dense<0.000000e+00> : vector<8xf32>
    %45 = vector.multi_reduction <add>, %42, %cst_19 [1] : vector<8x128xf32> to vector<8xf32>
    %46 = vector.shape_cast %45 : vector<8xf32> to vector<8x1xf32>
    %cst_20 = arith.constant 1.280000e+02 : f32
    %47 = vector.broadcast %cst_20 : f32 to vector<8x1xf32>
    %48 = arith.divf %46, %47 : vector<8x1xf32>
    %49 = vector.broadcast %48 : vector<8x1xf32> to vector<8x128xf32>
    %50 = arith.subf %42, %49 : vector<8x128xf32>
    %51 = arith.mulf %50, %50 : vector<8x128xf32>
    %cst_21 = arith.constant dense<0.000000e+00> : vector<8xf32>
    %52 = vector.multi_reduction <add>, %51, %cst_21 [1] : vector<8x128xf32> to vector<8xf32>
    %53 = vector.shape_cast %52 : vector<8xf32> to vector<8x1xf32>
    %cst_22 = arith.constant 1.280000e+02 : f32
    %54 = vector.broadcast %cst_22 : f32 to vector<8x1xf32>
    %55 = arith.divf %53, %54 : vector<8x1xf32>
    %56 = vector.broadcast %48 : vector<8x1xf32> to vector<8x128xf32>
    %57 = arith.subf %42, %56 : vector<8x128xf32>
    %cst_23 = arith.constant 9.99999974E-6 : f32
    %58 = vector.broadcast %cst_23 : f32 to vector<8x1xf32>
    %59 = arith.addf %55, %58 : vector<8x1xf32>
    %60 = math.rsqrt %59 : vector<8x1xf32>
    %61 = vector.broadcast %60 : vector<8x1xf32> to vector<8x128xf32>
    %62 = arith.mulf %57, %61 : vector<8x128xf32>
    %63 = vector.broadcast %43 : vector<1x128xf32> to vector<8x128xf32>
    %64 = arith.mulf %62, %63 : vector<8x128xf32>
    %65 = vector.broadcast %44 : vector<1x128xf32> to vector<8x128xf32>
    %66 = arith.addf %64, %65 : vector<8x128xf32>
    %67 = arith.truncf %66 : vector<8x128xf32> to vector<8x128xbf16>
    %cst_24 = arith.constant 0.000000e+00 : f32
    %68 = vector.broadcast %cst_24 : f32 to vector<8x128xf32>
    %c0_25 = arith.constant 0 : index
    %c0_26 = arith.constant 0 : index
    %69 = vector.load %arg7[%c0_25, %c0_26] : memref<128x256xbf16, #tpu.memory_space<vmem>>, vector<128x256xbf16>
    %cst_27 = arith.constant dense<0.000000e+00> : vector<8x256xf32>
    %70 = tpu.matmul %67, %69, %cst_27 {dimension_numbers = #tpu.dot_dimension_numbers<[1], [0], [0], [1], [0, 0, 1, 1], [], []>} : vector<8x128xbf16>, vector<128x256xbf16>, vector<8x256xf32> -> vector<8x256xf32>
    %c0_28 = arith.constant 0 : index
    %c0_29 = arith.constant 0 : index
    %71 = vector.load %arg8[%c0_28, %c0_29] : memref<1x256xf32, #tpu.memory_space<vmem>>, vector<1x256xf32>
    %72 = vector.broadcast %71 : vector<1x256xf32> to vector<8x256xf32>
    %73 = arith.addf %70, %72 : vector<8x256xf32>
    %cst_30 = arith.constant 0.000000e+00 : f32
    %74 = vector.broadcast %cst_30 : f32 to vector<8x256xf32>
    %75 = arith.maximumf %73, %74 : vector<8x256xf32>
    %76 = arith.truncf %75 : vector<8x256xf32> to vector<8x256xbf16>
    %c0_31 = arith.constant 0 : index
    %c0_32 = arith.constant 0 : index
    %77 = vector.load %arg9[%c0_31, %c0_32] : memref<256x128xbf16, #tpu.memory_space<vmem>>, vector<256x128xbf16>
    %cst_33 = arith.constant dense<0.000000e+00> : vector<8x128xf32>
    %78 = tpu.matmul %76, %77, %cst_33 {dimension_numbers = #tpu.dot_dimension_numbers<[1], [0], [0], [1], [0, 0, 1, 1], [], []>} : vector<8x256xbf16>, vector<256x128xbf16>, vector<8x128xf32> -> vector<8x128xf32>
    %79 = arith.addf %68, %78 : vector<8x128xf32>
    %c0_34 = arith.constant 0 : index
    %c0_35 = arith.constant 0 : index
    %80 = vector.load %arg10[%c0_34, %c0_35] : memref<1x128xf32, #tpu.memory_space<vmem>>, vector<1x128xf32>
    %81 = vector.broadcast %80 : vector<1x128xf32> to vector<8x128xf32>
    %82 = arith.addf %79, %81 : vector<8x128xf32>
    %83 = arith.addf %66, %82 : vector<8x128xf32>
    %c0_36 = arith.constant 0 : index
    %c0_37 = arith.constant 0 : index
    %84 = vector.load %arg11[%c0_36, %c0_37] : memref<1x128xf32, #tpu.memory_space<vmem>>, vector<1x128xf32>
    %c0_38 = arith.constant 0 : index
    %c0_39 = arith.constant 0 : index
    %85 = vector.load %arg12[%c0_38, %c0_39] : memref<1x128xf32, #tpu.memory_space<vmem>>, vector<1x128xf32>
    %cst_40 = arith.constant dense<0.000000e+00> : vector<8xf32>
    %86 = vector.multi_reduction <add>, %83, %cst_40 [1] : vector<8x128xf32> to vector<8xf32>
    %87 = vector.shape_cast %86 : vector<8xf32> to vector<8x1xf32>
    %cst_41 = arith.constant 1.280000e+02 : f32
    %88 = vector.broadcast %cst_41 : f32 to vector<8x1xf32>
    %89 = arith.divf %87, %88 : vector<8x1xf32>
    %90 = vector.broadcast %89 : vector<8x1xf32> to vector<8x128xf32>
    %91 = arith.subf %83, %90 : vector<8x128xf32>
    %92 = arith.mulf %91, %91 : vector<8x128xf32>
    %cst_42 = arith.constant dense<0.000000e+00> : vector<8xf32>
    %93 = vector.multi_reduction <add>, %92, %cst_42 [1] : vector<8x128xf32> to vector<8xf32>
    %94 = vector.shape_cast %93 : vector<8xf32> to vector<8x1xf32>
    %cst_43 = arith.constant 1.280000e+02 : f32
    %95 = vector.broadcast %cst_43 : f32 to vector<8x1xf32>
    %96 = arith.divf %94, %95 : vector<8x1xf32>
    %97 = vector.broadcast %89 : vector<8x1xf32> to vector<8x128xf32>
    %98 = arith.subf %83, %97 : vector<8x128xf32>
    %cst_44 = arith.constant 9.99999974E-6 : f32
    %99 = vector.broadcast %cst_44 : f32 to vector<8x1xf32>
    %100 = arith.addf %96, %99 : vector<8x1xf32>
    %101 = math.rsqrt %100 : vector<8x1xf32>
    %102 = vector.broadcast %101 : vector<8x1xf32> to vector<8x128xf32>
    %103 = arith.mulf %98, %102 : vector<8x128xf32>
    %104 = vector.broadcast %84 : vector<1x128xf32> to vector<8x128xf32>
    %105 = arith.mulf %103, %104 : vector<8x128xf32>
    %106 = vector.broadcast %85 : vector<1x128xf32> to vector<8x128xf32>
    %107 = arith.addf %105, %106 : vector<8x128xf32>
    %108 = vector.shape_cast %107 : vector<8x128xf32> to vector<1x8x128xf32>
    %c0_45 = arith.constant 0 : index
    %c0_46 = arith.constant 0 : index
    %c0_47 = arith.constant 0 : index
    %109 = vector.load %arg13[%c0_45, %c0_46, %c0_47] : memref<1x8x128xf32, #tpu.memory_space<vmem>>, vector<1x8x128xf32>
    tpu.vector_store %arg13[%c0_45, %c0_46, %c0_47], %108 {strides = array<i32>} : memref<1x8x128xf32, #tpu.memory_space<vmem>>, vector<1x8x128xf32>,
    return
  }
  func.func @transform_0(%arg0: i32) -> (i32, i32, i32) {
    %c0_i32 = arith.constant 0 : i32
    %c0_i32_0 = arith.constant 0 : i32
    %c0_i32_1 = arith.constant 0 : i32
    return %arg0, %c0_i32, %c0_i32_0 : i32, i32, i32
  }
  func.func @transform_1(%arg0: i32) -> (i32, i32, i32) {
    %c0_i32 = arith.constant 0 : i32
    %c0_i32_0 = arith.constant 0 : i32
    %c0_i32_1 = arith.constant 0 : i32
    return %arg0, %c0_i32, %c0_i32_0 : i32, i32, i32
  }
  func.func @transform_2(%arg0: i32) -> (i32, i32) {
    %c0_i32 = arith.constant 0 : i32
    %c0_i32_0 = arith.constant 0 : i32
    %c0_i32_1 = arith.constant 0 : i32
    return %c0_i32, %c0_i32_0 : i32, i32
  }
  func.func @transform_3(%arg0: i32) -> (i32, i32) {
    %c0_i32 = arith.constant 0 : i32
    %c0_i32_0 = arith.constant 0 : i32
    %c0_i32_1 = arith.constant 0 : i32
    return %c0_i32, %c0_i32_0 : i32, i32
  }
  func.func @transform_4(%arg0: i32) -> (i32, i32) {
    %c0_i32 = arith.constant 0 : i32
    %c0_i32_0 = arith.constant 0 : i32
    %c0_i32_1 = arith.constant 0 : i32
    return %c0_i32, %c0_i32_0 : i32, i32
  }
  func.func @transform_5(%arg0: i32) -> (i32, i32) {
    %c0_i32 = arith.constant 0 : i32
    %c0_i32_0 = arith.constant 0 : i32
    %c0_i32_1 = arith.constant 0 : i32
    return %c0_i32, %c0_i32_0 : i32, i32
  }
  func.func @transform_6(%arg0: i32) -> (i32, i32) {
    %c0_i32 = arith.constant 0 : i32
    %c0_i32_0 = arith.constant 0 : i32
    %c0_i32_1 = arith.constant 0 : i32
    return %c0_i32, %c0_i32_0 : i32, i32
  }
  func.func @transform_7(%arg0: i32) -> (i32, i32) {
    %c0_i32 = arith.constant 0 : i32
    %c0_i32_0 = arith.constant 0 : i32
    %c0_i32_1 = arith.constant 0 : i32
    return %c0_i32, %c0_i32_0 : i32, i32
  }
  func.func @transform_8(%arg0: i32) -> (i32, i32) {
    %c0_i32 = arith.constant 0 : i32
    %c0_i32_0 = arith.constant 0 : i32
    %c0_i32_1 = arith.constant 0 : i32
    return %c0_i32, %c0_i32_0 : i32, i32
  }
  func.func @transform_9(%arg0: i32) -> (i32, i32) {
    %c0_i32 = arith.constant 0 : i32
    %c0_i32_0 = arith.constant 0 : i32
    %c0_i32_1 = arith.constant 0 : i32
    return %c0_i32, %c0_i32_0 : i32, i32
  }
  func.func @transform_10(%arg0: i32) -> (i32, i32) {
    %c0_i32 = arith.constant 0 : i32
    %c0_i32_0 = arith.constant 0 : i32
    %c0_i32_1 = arith.constant 0 : i32
    return %c0_i32, %c0_i32_0 : i32, i32
  }
  func.func @transform_11(%arg0: i32) -> (i32, i32) {
    %c0_i32 = arith.constant 0 : i32
    %c0_i32_0 = arith.constant 0 : i32
    %c0_i32_1 = arith.constant 0 : i32
    return %c0_i32, %c0_i32_0 : i32, i32
  }
  func.func @transform_12(%arg0: i32) -> (i32, i32, i32) {
    %c0_i32 = arith.constant 0 : i32
    %c0_i32_0 = arith.constant 0 : i32
    %c0_i32_1 = arith.constant 0 : i32
    return %arg0, %c0_i32, %c0_i32_0 : i32, i32, i32
  }
}

</mosaic_0001>

<llo_original>
// kernel: tpu_custom_call.1
$region0: #{tpu_custom_call.1}
  #allocation0 [shape = 'u32[]', space=smem, size = 0x4, offset = 0x4, fixed_abs, tag = 'smem constant byte address 0x4 - core index']
  #allocation1 [shape = 'u32[144,128]{1,0:T(1,128)}', space=vmem, size = 0x12000, scoped, tag = 'internal scratch']
  %s0 = inlined_call_operand.vmem [shape: f32[2,8,128], index: 0, kind: input, shape index: {}]
  %s1 = inlined_call_operand.vmem [shape: s32[2,8,1], index: 1, kind: input, shape index: {}]
  %s2 = inlined_call_operand.hbm [shape: bf16[128,384], index: 2, kind: input, shape index: {}]
  %s3 = inlined_call_operand.hbm [shape: bf16[128,128], index: 3, kind: input, shape index: {}]
  %s4 = inlined_call_operand.vmem [shape: f32[1,128], index: 4, kind: input, shape index: {}]
  %s5 = inlined_call_operand.vmem [shape: f32[1,128], index: 5, kind: input, shape index: {}]
  %s6 = inlined_call_operand.hbm [shape: bf16[128,256], index: 6, kind: input, shape index: {}]
  %s7 = inlined_call_operand.vmem [shape: f32[1,256], index: 7, kind: input, shape index: {}]
  %s8 = inlined_call_operand.hbm [shape: bf16[256,128], index: 8, kind: input, shape index: {}]
  %s9 = inlined_call_operand.vmem [shape: f32[1,128], index: 9, kind: input, shape index: {}]
  %s10 = inlined_call_operand.vmem [shape: f32[1,128], index: 10, kind: input, shape index: {}]
  %s11 = inlined_call_operand.vmem [shape: f32[1,128], index: 11, kind: input, shape index: {}]
  %s12 = inlined_call_operand.hbm [shape: f32[2,8,128], index: 12, kind: output, shape index: {}]
  %s13 = sld [smem:[#allocation0]]
  $region97: #{tpu_custom_call.1} parent=0
    _
  %s15 = ssub.s32 1, %s13
  %s16 = scalar_select 0, %s15, %s13
  $region1: #{tpu_custom_call.1} parent=0
    #allocation2 [shape = 'u8[98304]{0}', space=vmem, size = 0x18000, scoped, tag = 'input window, operand 2, single buffered']
    #allocation3 [shape = 's32[2]{0}', space=sflag, size = 0x8, scoped, tag = 'scoped memory for tpu_custom_call.1']
    #allocation4 [shape = 's32[2]{0}', space=sflag, size = 0x8, scoped, tag = 'scoped memory for tpu_custom_call.1']
    #allocation5 [shape = 'u8[32768]{0}', space=vmem, size = 0x8000, scoped, tag = 'input window, operand 3, single buffered']
    #allocation6 [shape = 's32[1]{0}', space=sflag, size = 0x4, scoped, tag = 'scoped memory for tpu_custom_call.1']
    #allocation7 [shape = 'u8[65536]{0}', space=vmem, size = 0x10000, scoped, tag = 'input window, operand 6, single buffered']
    #allocation8 [shape = 'u8[65536]{0}', space=vmem, size = 0x10000, scoped, tag = 'input window, operand 8, single buffered']
    #allocation9 [shape = 's32[1]{0}', space=sflag, size = 0x4, scoped, tag = 'scoped memory for tpu_custom_call.1']
    #allocation10 [shape = 'u8[8192]{0}', space=vmem, size = 0x2000, scoped, tag = 'output window, operand 0']
    %17 = vsyncpa [#allocation3], 0
    %18 = vsyncpa [#allocation6], 0
    %19 = vsyncpa [#allocation9], 0
    %20 = vsyncpa [#allocation4], 0
    %s21 = scalar_lea.sflag [#allocation4], 1
    %22 = vsyncpa %s21, 0
    loop: start=0, step=1, limit=4
    $region2: #{tpu_custom_call.1} parent=1 // loop_pre_header
      _
    $region3: #{tpu_custom_call.1} parent=1 // loop_header
      %s24 = sphi 0, %s28
      %p25 = scmp.ge.s32.totalorder %s24, 4
      %s34 = sphi 0, %s36
      %s37 = sphi 0, %s34
      %s38 = sphi 0, %s37
      %s54 = sphi 0, %s38
      %s60 = sphi 0, %s62
      %s63 = sphi 0, %s60
      %s64 = sphi 0, %s63
      %s80 = sphi 0, %s64
      %s84 = sphi 0, %s84
      %s86 = sphi 0, %s84
      %s87 = sphi 0, %s86
      %s101 = sphi 0, %s87
      %s105 = sphi 0, %s105
      %s107 = sphi 0, %s105
      %s108 = sphi 0, %s107
      %s122 = sphi 0, %s108
      %s126 = sphi 0, %s126
      %s128 = sphi 0, %s126
      %s129 = sphi 0, %s128
      %s143 = sphi 0, %s129
      %s147 = sphi 0, %s147
      %s149 = sphi 0, %s147
      %s150 = sphi 0, %s149
      %s164 = sphi 0, %s150
      %s168 = sphi 0, %s168
      %s170 = sphi 0, %s168
      %s171 = sphi 0, %s170
      %s185 = sphi 0, %s171
      %s189 = sphi 0, %s189
      %s191 = sphi 0, %s189
      %s192 = sphi 0, %s191
      %s206 = sphi 0, %s192
      %s210 = sphi 0, %s210
      %s212 = sphi 0, %s210
      %s213 = sphi 0, %s212
      %s227 = sphi 0, %s213
      %s231 = sphi 0, %s231
      %s233 = sphi 0, %s231
      %s234 = sphi 0, %s233
      %s248 = sphi 0, %s234
      %s252 = sphi 0, %s252
      %s254 = sphi 0, %s252
      %s255 = sphi 0, %s254
      %s269 = sphi 0, %s255
      %s273 = sphi 0, %s273
      %s275 = sphi 0, %s273
      %s276 = sphi 0, %s275
      %s290 = sphi 0, %s276
      %s296 = sphi 0, %s298
      %s299 = sphi 0, %s296
      %s300 = sphi 0, %s299
      %s316 = sphi 0, %s300
    $region4: #{tpu_custom_call.1} parent=1 // loop_header_branch
      %27 = sbr.rel (%p25) target = $region8
    $region5: #{tpu_custom_call.1} parent=1 // loop_body
      %s29 = ssub.s32 %s24, 1
      %s30 = ssub.s32 %s24, 2
      %s31 = sadd.s32 %s24, 1
      %s32 = ssub.s32 %s24, %s31
      %p33 = scmp.eq.s32.totalorder %s32, 0
      %s35 = sadd.s32 %s34, 1
      %s36 = scalar_select %p33, %s34, %s35
      %p39 = pneg %p33
      %p40 = scmp.eq.s32.totalorder %s24, 1
      %p41 = por %p39, %p40
      %p42 = scmp.ne.s32.totalorder %s34, %s37
      %p43 = scmp.eq.s32.totalorder %s24, 0
      %p44 = por %p42, %p43
      %p45 = scmp.ne.s32.totalorder %s34, %s37
      %p46 = scmp.eq.s32.totalorder %s29, 1
      %p47 = por %p45, %p46
      %p48 = scmp.ne.s32.totalorder %s37, %s38
      %p49 = scmp.eq.s32.totalorder %s29, 0
      %p50 = por %p48, %p49
      %p51 = scmp.ne.s32.totalorder %s37, %s38
      %p52 = scmp.eq.s32.totalorder %s30, 1
      %p53 = por %p51, %p52
      %p55 = scmp.ne.s32.totalorder %s38, %s54
      %p56 = scmp.eq.s32.totalorder %s30, 0
      %p57 = por %p55, %p56
      %s58 = ssub.s32 %s24, %s31
      %p59 = scmp.eq.s32.totalorder %s58, 0
      %s61 = sadd.s32 %s60, 1
      %s62 = scalar_select %p59, %s60, %s61
      %p65 = pneg %p59
      %p66 = scmp.eq.s32.totalorder %s24, 1
      %p67 = por %p65, %p66
      %p68 = scmp.ne.s32.totalorder %s60, %s63
      %p69 = scmp.eq.s32.totalorder %s24, 0
      %p70 = por %p68, %p69
      %p71 = scmp.ne.s32.totalorder %s60, %s63
      %p72 = scmp.eq.s32.totalorder %s29, 1
      %p73 = por %p71, %p72
      %p74 = scmp.ne.s32.totalorder %s63, %s64
      %p75 = scmp.eq.s32.totalorder %s29, 0
      %p76 = por %p74, %p75
      %p77 = scmp.ne.s32.totalorder %s63, %s64
      %p78 = scmp.eq.s32.totalorder %s30, 1
      %p79 = por %p77, %p78
      %p81 = scmp.ne.s32.totalorder %s64, %s80
      %p82 = scmp.eq.s32.totalorder %s30, 0
      %p83 = por %p81, %p82
      %s85 = sadd.s32 %s84, 1
      %p88 = scmp.eq.s32.totalorder %s24, 1
      %p89 = scmp.ne.s32.totalorder %s84, %s86
      %p90 = scmp.eq.s32.totalorder %s24, 0
      %p91 = por %p89, %p90
      %p92 = scmp.ne.s32.totalorder %s84, %s86
      %p93 = scmp.eq.s32.totalorder %s29, 1
      %p94 = por %p92, %p93
      %p95 = scmp.ne.s32.totalorder %s86, %s87
      %p96 = scmp.eq.s32.totalorder %s29, 0
      %p97 = por %p95, %p96
      %p98 = scmp.ne.s32.totalorder %s86, %s87
      %p99 = scmp.eq.s32.totalorder %s30, 1
      %p100 = por %p98, %p99
      %p102 = scmp.ne.s32.totalorder %s87, %s101
      %p103 = scmp.eq.s32.totalorder %s30, 0
      %p104 = por %p102, %p103
      %s106 = sadd.s32 %s105, 1
      %p109 = scmp.eq.s32.totalorder %s24, 1
      %p110 = scmp.ne.s32.totalorder %s105, %s107
      %p111 = scmp.eq.s32.totalorder %s24, 0
      %p112 = por %p110, %p111
      %p113 = scmp.ne.s32.totalorder %s105, %s107
      %p114 = scmp.eq.s32.totalorder %s29, 1
      %p115 = por %p113, %p114
      %p116 = scmp.ne.s32.totalorder %s107, %s108
      %p117 = scmp.eq.s32.totalorder %s29, 0
      %p118 = por %p116, %p117
      %p119 = scmp.ne.s32.totalorder %s107, %s108
      %p120 = scmp.eq.s32.totalorder %s30, 1
      %p121 = por %p119, %p120
      %p123 = scmp.ne.s32.totalorder %s108, %s122
      %p124 = scmp.eq.s32.totalorder %s30, 0
      %p125 = por %p123, %p124
      %s127 = sadd.s32 %s126, 1
      %p130 = scmp.eq.s32.totalorder %s24, 1
      %p131 = scmp.ne.s32.totalorder %s126, %s128
      %p132 = scmp.eq.s32.totalorder %s24, 0
      %p133 = por %p131, %p132
      %p134 = scmp.ne.s32.totalorder %s126, %s128
      %p135 = scmp.eq.s32.totalorder %s29, 1
      %p136 = por %p134, %p135
      %p137 = scmp.ne.s32.totalorder %s128, %s129
      %p138 = scmp.eq.s32.totalorder %s29, 0
      %p139 = por %p137, %p138
      %p140 = scmp.ne.s32.totalorder %s128, %s129
      %p141 = scmp.eq.s32.totalorder %s30, 1
      %p142 = por %p140, %p141
      %p144 = scmp.ne.s32.totalorder %s129, %s143
      %p145 = scmp.eq.s32.totalorder %s30, 0
      %p146 = por %p144, %p145
      %s148 = sadd.s32 %s147, 1
      %p151 = scmp.eq.s32.totalorder %s24, 1
      %p152 = scmp.ne.s32.totalorder %s147, %s149
      %p153 = scmp.eq.s32.totalorder %s24, 0
      %p154 = por %p152, %p153
      %p155 = scmp.ne.s32.totalorder %s147, %s149
      %p156 = scmp.eq.s32.totalorder %s29, 1
      %p157 = por %p155, %p156
      %p158 = scmp.ne.s32.totalorder %s149, %s150
      %p159 = scmp.eq.s32.totalorder %s29, 0
      %p160 = por %p158, %p159
      %p161 = scmp.ne.s32.totalorder %s149, %s150
      %p162 = scmp.eq.s32.totalorder %s30, 1
      %p163 = por %p161, %p162
      %p165 = scmp.ne.s32.totalorder %s150, %s164
      %p166 = scmp.eq.s32.totalorder %s30, 0
      %p167 = por %p165, %p166
      %s169 = sadd.s32 %s168, 1
      %p172 = scmp.eq.s32.totalorder %s24, 1
      %p173 = scmp.ne.s32.totalorder %s168, %s170
      %p174 = scmp.eq.s32.totalorder %s24, 0
      %p175 = por %p173, %p174
      %p176 = scmp.ne.s32.totalorder %s168, %s170
      %p177 = scmp.eq.s32.totalorder %s29, 1
      %p178 = por %p176, %p177
      %p179 = scmp.ne.s32.totalorder %s170, %s171
      %p180 = scmp.eq.s32.totalorder %s29, 0
      %p181 = por %p179, %p180
      %p182 = scmp.ne.s32.totalorder %s170, %s171
      %p183 = scmp.eq.s32.totalorder %s30, 1
      %p184 = por %p182, %p183
      %p186 = scmp.ne.s32.totalorder %s171, %s185
      %p187 = scmp.eq.s32.totalorder %s30, 0
      %p188 = por %p186, %p187
      %s190 = sadd.s32 %s189, 1
      %p193 = scmp.eq.s32.totalorder %s24, 1
      %p194 = scmp.ne.s32.totalorder %s189, %s191
      %p195 = scmp.eq.s32.totalorder %s24, 0
      %p196 = por %p194, %p195
      %p197 = scmp.ne.s32.totalorder %s189, %s191
      %p198 = scmp.eq.s32.totalorder %s29, 1
      %p199 = por %p197, %p198
      %p200 = scmp.ne.s32.totalorder %s191, %s192
      %p201 = scmp.eq.s32.totalorder %s29, 0
      %p202 = por %p200, %p201
      %p203 = scmp.ne.s32.totalorder %s191, %s192
      %p204 = scmp.eq.s32.totalorder %s30, 1
      %p205 = por %p203, %p204
      %p207 = scmp.ne.s32.totalorder %s192, %s206
      %p208 = scmp.eq.s32.totalorder %s30, 0
      %p209 = por %p207, %p208
      %s211 = sadd.s32 %s210, 1
      %p214 = scmp.eq.s32.totalorder %s24, 1
      %p215 = scmp.ne.s32.totalorder %s210, %s212
      %p216 = scmp.eq.s32.totalorder %s24, 0
      %p217 = por %p215, %p216
      %p218 = scmp.ne.s32.totalorder %s210, %s212
      %p219 = scmp.eq.s32.totalorder %s29, 1
      %p220 = por %p218, %p219
      %p221 = scmp.ne.s32.totalorder %s212, %s213
      %p222 = scmp.eq.s32.totalorder %s29, 0
      %p223 = por %p221, %p222
      %p224 = scmp.ne.s32.totalorder %s212, %s213
      %p225 = scmp.eq.s32.totalorder %s30, 1
      %p226 = por %p224, %p225
      %p228 = scmp.ne.s32.totalorder %s213, %s227
      %p229 = scmp.eq.s32.totalorder %s30, 0
      %p230 = por %p228, %p229
      %s232 = sadd.s32 %s231, 1
      %p235 = scmp.eq.s32.totalorder %s24, 1
      %p236 = scmp.ne.s32.totalorder %s231, %s233
      %p237 = scmp.eq.s32.totalorder %s24, 0
      %p238 = por %p236, %p237
      %p239 = scmp.ne.s32.totalorder %s231, %s233
      %p240 = scmp.eq.s32.totalorder %s29, 1
      %p241 = por %p239, %p240
      %p242 = scmp.ne.s32.totalorder %s233, %s234
      %p243 = scmp.eq.s32.totalorder %s29, 0
      %p244 = por %p242, %p243
      %p245 = scmp.ne.s32.totalorder %s233, %s234
      %p246 = scmp.eq.s32.totalorder %s30, 1
      %p247 = por %p245, %p246
      %p249 = scmp.ne.s32.totalorder %s234, %s248
      %p250 = scmp.eq.s32.totalorder %s30, 0
      %p251 = por %p249, %p250
      %s253 = sadd.s32 %s252, 1
      %p256 = scmp.eq.s32.totalorder %s24, 1
      %p257 = scmp.ne.s32.totalorder %s252, %s254
      %p258 = scmp.eq.s32.totalorder %s24, 0
      %p259 = por %p257, %p258
      %p260 = scmp.ne.s32.totalorder %s252, %s254
      %p261 = scmp.eq.s32.totalorder %s29, 1
      %p262 = por %p260, %p261
      %p263 = scmp.ne.s32.totalorder %s254, %s255
      %p264 = scmp.eq.s32.totalorder %s29, 0
      %p265 = por %p263, %p264
      %p266 = scmp.ne.s32.totalorder %s254, %s255
      %p267 = scmp.eq.s32.totalorder %s30, 1
      %p268 = por %p266, %p267
      %p270 = scmp.ne.s32.totalorder %s255, %s269
      %p271 = scmp.eq.s32.totalorder %s30, 0
      %p272 = por %p270, %p271
      %s274 = sadd.s32 %s273, 1
      %p277 = scmp.eq.s32.totalorder %s24, 1
      %p278 = scmp.ne.s32.totalorder %s273, %s275
      %p279 = scmp.eq.s32.totalorder %s24, 0
      %p280 = por %p278, %p279
      %p281 = scmp.ne.s32.totalorder %s273, %s275
      %p282 = scmp.eq.s32.totalorder %s29, 1
      %p283 = por %p281, %p282
      %p284 = scmp.ne.s32.totalorder %s275, %s276
      %p285 = scmp.eq.s32.totalorder %s29, 0
      %p286 = por %p284, %p285
      %p287 = scmp.ne.s32.totalorder %s275, %s276
      %p288 = scmp.eq.s32.totalorder %s30, 1
      %p289 = por %p287, %p288
      %p291 = scmp.ne.s32.totalorder %s276, %s290
      %p292 = scmp.eq.s32.totalorder %s30, 0
      %p293 = por %p291, %p292
      %s294 = ssub.s32 %s24, %s31
      %p295 = scmp.eq.s32.totalorder %s294, 0
      %s297 = sadd.s32 %s296, 1
      %s298 = scalar_select %p295, %s296, %s297
      %p301 = pneg %p295
      %p302 = scmp.eq.s32.totalorder %s24, 1
      %p303 = por %p301, %p302
      %p304 = scmp.ne.s32.totalorder %s296, %s299
      %p305 = scmp.eq.s32.totalorder %s24, 0
      %p306 = por %p304, %p305
      %p307 = scmp.ne.s32.totalorder %s296, %s299
      %p308 = scmp.eq.s32.totalorder %s29, 1
      %p309 = por %p307, %p308
      %p310 = scmp.ne.s32.totalorder %s299, %s300
      %p311 = scmp.eq.s32.totalorder %s29, 0
      %p312 = por %p310, %p311
      %p313 = scmp.ne.s32.totalorder %s299, %s300
      %p314 = scmp.eq.s32.totalorder %s30, 1
      %p315 = por %p313, %p314
      %p317 = scmp.ne.s32.totalorder %s300, %s316
      %p318 = scmp.eq.s32.totalorder %s30, 0
      %p319 = por %p317, %p318
      %p320 = scmp.le.s32.totalorder 1, %s24
      %p321 = scmp.lt.s32.totalorder %s24, 3
      %p322 = pnand %p320, %p321
      %p323 = pneg %p322
      // Predicated region
      $region9: #{tpu_custom_call.1} parent=5 // pred_check
        _
      $region10: #{tpu_custom_call.1} parent=5 // pred_check_branch
        %325 = sbr.rel (%p322) target = $region12
      $region11: #{tpu_custom_call.1} parent=5 // pred_region
        %s326 = ssub.s32 %s24, 1
        // Predicated region
        $region13: #{tpu_custom_call.1} parent=11 // pred_check
          %p327 = pneg %p97
        $region14: #{tpu_custom_call.1} parent=11 // pred_check_branch
          %329 = sbr.rel (%p327) target = $region16
        $region15: #{tpu_custom_call.1} parent=11 // pred_region
          %s331 = ssub.s32 3072, 3072
          %332 = vsyncadd [#allocation3], %s331
          %s333 = sshll.u32 [#allocation2], 4
          %s334 = int_to_ptr.vmem [resolvable:$true] %s333
          %339 = dma.hbm_to_vmem [thread:$0]  %s2, 3072, %s334, [#allocation3], 192, 192, 12
        $region16: #{tpu_custom_call.1} parent=11 // pred_fallthru
          _
        // Predicated region
        $region17: #{tpu_custom_call.1} parent=11 // pred_check
          %p340 = pneg %p118
        $region18: #{tpu_custom_call.1} parent=11 // pred_check_branch
          %342 = sbr.rel (%p340) target = $region20
        $region19: #{tpu_custom_call.1} parent=11 // pred_region
          %s344 = ssub.s32 1024, 1024
          %345 = vsyncadd [#allocation6], %s344
          %s346 = sshll.u32 [#allocation5], 4
          %s347 = int_to_ptr.vmem [resolvable:$true] %s346
          %352 = dma.hbm_to_vmem [thread:$0]  %s3, 1024, %s347, [#allocation6], 64, 64, 4
        $region20: #{tpu_custom_call.1} parent=11 // pred_fallthru
          _
        // Predicated region
        $region21: #{tpu_custom_call.1} parent=11 // pred_check
          %p353 = pneg %p139
        $region22: #{tpu_custom_call.1} parent=11 // pred_check_branch
          %355 = sbr.rel (%p353) target = $region24
        $region23: #{tpu_custom_call.1} parent=11 // pred_region
          _
        $region24: #{tpu_custom_call.1} parent=11 // pred_fallthru
          _
        // Predicated region
        $region25: #{tpu_custom_call.1} parent=11 // pred_check
          %p356 = pneg %p160
        $region26: #{tpu_custom_call.1} parent=11 // pred_check_branch
          %358 = sbr.rel (%p356) target = $region28
        $region27: #{tpu_custom_call.1} parent=11 // pred_region
          _
        $region28: #{tpu_custom_call.1} parent=11 // pred_fallthru
          _
        // Predicated region
        $region29: #{tpu_custom_call.1} parent=11 // pred_check
          %p359 = pneg %p181
        $region30: #{tpu_custom_call.1} parent=11 // pred_check_branch
          %361 = sbr.rel (%p359) target = $region32
        $region31: #{tpu_custom_call.1} parent=11 // pred_region
          %s363 = ssub.s32 2048, 2048
          %364 = vsyncadd [#allocation6], %s363
          %s365 = sshll.u32 [#allocation7], 4
          %s366 = int_to_ptr.vmem [resolvable:$true] %s365
          %371 = dma.hbm_to_vmem [thread:$0]  %s6, 2048, %s366, [#allocation6], 128, 128, 8
        $region32: #{tpu_custom_call.1} parent=11 // pred_fallthru
          _
        // Predicated region
        $region33: #{tpu_custom_call.1} parent=11 // pred_check
          %p372 = pneg %p202
        $region34: #{tpu_custom_call.1} parent=11 // pred_check_branch
          %374 = sbr.rel (%p372) target = $region36
        $region35: #{tpu_custom_call.1} parent=11 // pred_region
          _
        $region36: #{tpu_custom_call.1} parent=11 // pred_fallthru
          _
        // Predicated region
        $region37: #{tpu_custom_call.1} parent=11 // pred_check
          %p375 = pneg %p223
        $region38: #{tpu_custom_call.1} parent=11 // pred_check_branch
          %377 = sbr.rel (%p375) target = $region40
        $region39: #{tpu_custom_call.1} parent=11 // pred_region
          %s379 = ssub.s32 2048, 2048
          %380 = vsyncadd [#allocation9], %s379
          %s381 = sshll.u32 [#allocation8], 4
          %s382 = int_to_ptr.vmem [resolvable:$true] %s381
          %387 = dma.hbm_to_vmem [thread:$0]  %s8, 2048, %s382, [#allocation9], 64, 64, 4
        $region40: #{tpu_custom_call.1} parent=11 // pred_fallthru
          _
        // Predicated region
        $region41: #{tpu_custom_call.1} parent=11 // pred_check
          %p388 = pneg %p244
        $region42: #{tpu_custom_call.1} parent=11 // pred_check_branch
          %390 = sbr.rel (%p388) target = $region44
        $region43: #{tpu_custom_call.1} parent=11 // pred_region
          _
        $region44: #{tpu_custom_call.1} parent=11 // pred_fallthru
          _
        // Predicated region
        $region45: #{tpu_custom_call.1} parent=11 // pred_check
          %p391 = pneg %p265
        $region46: #{tpu_custom_call.1} parent=11 // pred_check_branch
          %393 = sbr.rel (%p391) target = $region48
        $region47: #{tpu_custom_call.1} parent=11 // pred_region
          _
        $region48: #{tpu_custom_call.1} parent=11 // pred_fallthru
          _
        // Predicated region
        $region49: #{tpu_custom_call.1} parent=11 // pred_check
          %p394 = pneg %p286
        $region50: #{tpu_custom_call.1} parent=11 // pred_check_branch
          %396 = sbr.rel (%p394) target = $region52
        $region51: #{tpu_custom_call.1} parent=11 // pred_region
          _
        $region52: #{tpu_custom_call.1} parent=11 // pred_fallthru
          _
      $region12: #{tpu_custom_call.1} parent=5 // pred_fallthru
        _
      %p397 = scmp.lt.s32.totalorder %s24, 2
      // Predicated region
      $region53: #{tpu_custom_call.1} parent=5 // pred_check
        %p398 = pneg %p397
      $region54: #{tpu_custom_call.1} parent=5 // pred_check_branch
        %400 = sbr.rel (%p398) target = $region56
      $region55: #{tpu_custom_call.1} parent=5 // pred_region
        // Predicated region
        $region57: #{tpu_custom_call.1} parent=55 // pred_check
          %p401 = pneg %p44
        $region58: #{tpu_custom_call.1} parent=55 // pred_check_branch
          %403 = sbr.rel (%p401) target = $region60
        $region59: #{tpu_custom_call.1} parent=55 // pred_region
          %p404 = scmp.lt.s32.totalorder %s24, 1
          %s405 = scalar_select %p404, %s24, 1
          %s406 = smul.addr %s405, 8
          %s407 = scalar_lea.vmem %s0, %s406
        $region60: #{tpu_custom_call.1} parent=55 // pred_fallthru
          _
        // Predicated region
        $region61: #{tpu_custom_call.1} parent=55 // pred_check
          %p408 = pneg %p70
        $region62: #{tpu_custom_call.1} parent=55 // pred_check_branch
          %410 = sbr.rel (%p408) target = $region64
        $region63: #{tpu_custom_call.1} parent=55 // pred_region
          %p411 = scmp.lt.s32.totalorder %s24, 1
          %s412 = scalar_select %p411, %s24, 1
          %s413 = smul.addr %s412, 8
          %s414 = scalar_lea.vmem %s1, %s413
        $region64: #{tpu_custom_call.1} parent=55 // pred_fallthru
          _
      $region56: #{tpu_custom_call.1} parent=5 // pred_fallthru
        _
      %p415 = scmp.le.s32.totalorder 1, %s24
      %p416 = scmp.lt.s32.totalorder %s24, 3
      %p417 = pnand %p415, %p416
      %p418 = pneg %p417
      // Predicated region
      $region65: #{tpu_custom_call.1} parent=5 // pred_check
        _
      $region66: #{tpu_custom_call.1} parent=5 // pred_check_branch
        %420 = sbr.rel (%p417) target = $region68
      $region67: #{tpu_custom_call.1} parent=5 // pred_region
        %s421 = ssub.s32 %s24, 1
        // Predicated region
        $region69: #{tpu_custom_call.1} parent=67 // pred_check
          %p422 = pneg %p97
        $region70: #{tpu_custom_call.1} parent=67 // pred_check_branch
          %424 = sbr.rel (%p422) target = $region72
        $region71: #{tpu_custom_call.1} parent=67 // pred_region
          %425 = dma.done [#allocation3], 3072
        $region72: #{tpu_custom_call.1} parent=67 // pred_fallthru
          _
        // Predicated region
        $region73: #{tpu_custom_call.1} parent=67 // pred_check
          %p426 = pneg %p118
        $region74: #{tpu_custom_call.1} parent=67 // pred_check_branch
          %428 = sbr.rel (%p426) target = $region76
        $region75: #{tpu_custom_call.1} parent=67 // pred_region
          %429 = dma.done [#allocation6], 1024
        $region76: #{tpu_custom_call.1} parent=67 // pred_fallthru
          _
        // Predicated region
        $region77: #{tpu_custom_call.1} parent=67 // pred_check
          %p430 = pneg %p181
        $region78: #{tpu_custom_call.1} parent=67 // pred_check_branch
          %432 = sbr.rel (%p430) target = $region80
        $region79: #{tpu_custom_call.1} parent=67 // pred_region
          %433 = dma.done [#allocation6], 2048
        $region80: #{tpu_custom_call.1} parent=67 // pred_fallthru
          _
        // Predicated region
        $region81: #{tpu_custom_call.1} parent=67 // pred_check
          %p434 = pneg %p223
        $region82: #{tpu_custom_call.1} parent=67 // pred_check_branch
          %436 = sbr.rel (%p434) target = $region84
        $region83: #{tpu_custom_call.1} parent=67 // pred_region
          %437 = dma.done [#allocation9], 2048
        $region84: #{tpu_custom_call.1} parent=67 // pred_fallthru
          _
        %p438 = scmp.lt.s32.totalorder %s29, 1
        %s439 = scalar_select %p438, %s29, 1
        %s440 = smul.addr %s439, 8
        %s441 = scalar_lea.vmem %s0, %s440
        %p442 = pneg %p50
        %p443 = pneg %p47
        %p444 = scmp.lt.s32.totalorder %s29, 1
        %s445 = scalar_select %p444, %s29, 1
        %s446 = smul.addr %s445, 8
        %s447 = scalar_lea.vmem %s1, %s446
        %p448 = pneg %p76
        %p449 = pneg %p73
        %p450 = pneg %p97
        %p451 = pneg %p94
        %p452 = pneg %p118
        %p453 = pneg %p115
        %p454 = pneg %p139
        %p455 = pneg %p136
        %p456 = pneg %p160
        %p457 = pneg %p157
        %p458 = pneg %p181
        %p459 = pneg %p178
        %p460 = pneg %p202
        %p461 = pneg %p199
        %p462 = pneg %p223
        %p463 = pneg %p220
        %p464 = pneg %p244
        %p465 = pneg %p241
        %p466 = pneg %p265
        %p467 = pneg %p262
        %p468 = pneg %p286
        %p469 = pneg %p283
        %p470 = pneg %p312
        %p471 = pneg %p309
        %s472 = sand.u32 %s299, 1
        %s473 = scalar_lea.sflag [#allocation4], %s472
        %s474 = sand.u32 %s299, 1
        %s475 = smul.addr %s474, 8
        %s476 = scalar_lea.vmem [#allocation10], %s475
        %p477 = scmp.lt.s32.totalorder %s29, 1
        %s478 = scalar_select %p477, %s29, 1
        %s479 = smul.addr %s478, 8
        %s480 = scalar_lea.vmem %s0, %s479
        %p481 = scmp.lt.s32.totalorder %s29, 1
        %s482 = scalar_select %p481, %s29, 1
        %s483 = smul.addr %s482, 8
        %s484 = scalar_lea.vmem %s1, %s483
        %v486 = vld [vmem:[%s480] sm:$0xff]
        %v487 = vpack.c.bf16 %v486, %v486
        %v488 = vld [vmem:[#allocation2] sm:$0xff]
        %v489 = vld [vmem:[#allocation2 + $0x8] sm:$0xf]
        %v490 = vld [vmem:[#allocation2 + $0xc] sm:$0xff]
        %v491 = vld [vmem:[#allocation2 + $0x14] sm:$0xf]
        %v492 = vld [vmem:[#allocation2 + $0x18] sm:$0xff]
        %v493 = vld [vmem:[#allocation2 + $0x20] sm:$0xf]
        %v494 = vld [vmem:[#allocation2 + $0x24] sm:$0xff]
        %v495 = vld [vmem:[#allocation2 + $0x2c] sm:$0xf]
        %v496 = vld [vmem:[#allocation2 + $0x30] sm:$0xff]
        %v497 = vld [vmem:[#allocation2 + $0x38] sm:$0xf]
        %v498 = vld [vmem:[#allocation2 + $0x3c] sm:$0xff]
        %v499 = vld [vmem:[#allocation2 + $0x44] sm:$0xf]
        %v500 = vld [vmem:[#allocation2 + $0x48] sm:$0xff]
        %v501 = vld [vmem:[#allocation2 + $0x50] sm:$0xf]
        %v502 = vld [vmem:[#allocation2 + $0x54] sm:$0xff]
        %v503 = vld [vmem:[#allocation2 + $0x5c] sm:$0xf]
        %v504 = vld [vmem:[#allocation2 + $0x60] sm:$0xff]
        %v505 = vld [vmem:[#allocation2 + $0x68] sm:$0xf]
        %v506 = vld [vmem:[#allocation2 + $0x6c] sm:$0xff]
        %v507 = vld [vmem:[#allocation2 + $0x74] sm:$0xf]
        %v508 = vld [vmem:[#allocation2 + $0x78] sm:$0xff]
        %v509 = vld [vmem:[#allocation2 + $0x80] sm:$0xf]
        %v510 = vld [vmem:[#allocation2 + $0x84] sm:$0xff]
        %v511 = vld [vmem:[#allocation2 + $0x8c] sm:$0xf]
        %v512 = vld [vmem:[#allocation2 + $0x90] sm:$0xff]
        %v513 = vld [vmem:[#allocation2 + $0x98] sm:$0xf]
        %v514 = vld [vmem:[#allocation2 + $0x9c] sm:$0xff]
        %v515 = vld [vmem:[#allocation2 + $0xa4] sm:$0xf]
        %v516 = vld [vmem:[#allocation2 + $0xa8] sm:$0xff]
        %v517 = vld [vmem:[#allocation2 + $0xb0] sm:$0xf]
        %v518 = vld [vmem:[#allocation2 + $0xb4] sm:$0xff]
        %v519 = vld [vmem:[#allocation2 + $0xbc] sm:$0xf]
        %v552 = vunpack.c.l.b16 %v488
        %v553 = vunpack.c.h.b16 %v488
        %v554 = vunpack.c.l.b16 %v489
        %v555 = vunpack.c.l.b16 %v490
        %v556 = vunpack.c.h.b16 %v490
        %v557 = vunpack.c.l.b16 %v491
        %v558 = vunpack.c.l.b16 %v492
        %v559 = vunpack.c.h.b16 %v492
        %v560 = vunpack.c.l.b16 %v493
        %v561 = vunpack.c.l.b16 %v494
        %v562 = vunpack.c.h.b16 %v494
        %v563 = vunpack.c.l.b16 %v495
        %v564 = vunpack.c.l.b16 %v496
        %v565 = vunpack.c.h.b16 %v496
        %v566 = vunpack.c.l.b16 %v497
        %v567 = vunpack.c.l.b16 %v498
        %v568 = vunpack.c.h.b16 %v498
        %v569 = vunpack.c.l.b16 %v499
        %v570 = vunpack.c.l.b16 %v500
        %v571 = vunpack.c.h.b16 %v500
        %v572 = vunpack.c.l.b16 %v501
        %v573 = vunpack.c.l.b16 %v502
        %v574 = vunpack.c.h.b16 %v502
        %v575 = vunpack.c.l.b16 %v503
        %v576 = vunpack.c.l.b16 %v504
        %v577 = vunpack.c.h.b16 %v504
        %v578 = vunpack.c.l.b16 %v505
        %v579 = vunpack.c.l.b16 %v506
        %v580 = vunpack.c.h.b16 %v506
        %v581 = vunpack.c.l.b16 %v507
        %v582 = vunpack.c.l.b16 %v508
        %v583 = vunpack.c.h.b16 %v508
        %v584 = vunpack.c.l.b16 %v509
        %v585 = vunpack.c.l.b16 %v510
        %v586 = vunpack.c.h.b16 %v510
        %v587 = vunpack.c.l.b16 %v511
        %v588 = vunpack.c.l.b16 %v512
        %v589 = vunpack.c.h.b16 %v512
        %v590 = vunpack.c.l.b16 %v513
        %v591 = vunpack.c.l.b16 %v514
        %v592 = vunpack.c.h.b16 %v514
        %v593 = vunpack.c.l.b16 %v515
        %v594 = vunpack.c.l.b16 %v516
        %v595 = vunpack.c.h.b16 %v516
        %v596 = vunpack.c.l.b16 %v517
        %v597 = vunpack.c.l.b16 %v518
        %v598 = vunpack.c.h.b16 %v518
        %v599 = vunpack.c.l.b16 %v519
        %v600 = vpack.c.b16 %v555, %v552
        %v601 = vpack.c.b16 %v556, %v553
        %v602 = vpack.c.b16 %v557, %v554
        %v603 = vpack.c.b16 %v561, %v558
        %v604 = vpack.c.b16 %v562, %v559
        %v605 = vpack.c.b16 %v563, %v560
        %v606 = vpack.c.b16 %v567, %v564
        %v607 = vpack.c.b16 %v568, %v565
        %v608 = vpack.c.b16 %v569, %v566
        %v609 = vpack.c.b16 %v573, %v570
        %v610 = vpack.c.b16 %v574, %v571
        %v611 = vpack.c.b16 %v575, %v572
        %v612 = vpack.c.b16 %v579, %v576
        %v613 = vpack.c.b16 %v580, %v577
        %v614 = vpack.c.b16 %v581, %v578
        %v615 = vpack.c.b16 %v585, %v582
        %v616 = vpack.c.b16 %v586, %v583
        %v617 = vpack.c.b16 %v587, %v584
        %v618 = vpack.c.b16 %v591, %v588
        %v619 = vpack.c.b16 %v592, %v589
        %v620 = vpack.c.b16 %v593, %v590
        %v621 = vpack.c.b16 %v597, %v594
        %v622 = vpack.c.b16 %v598, %v595
        %v623 = vpack.c.b16 %v599, %v596
        %648 = vmatprep.subr.bf16.mxu0 %v601
        %649 = vmatpush1.bf16.msra.mxu0 %v600
        %650 = vmatprep.subr.bf16.mxu0 %v604
        %651 = vmatpush1.bf16.msra.mxu0 %v603
        %652 = vmatprep.subr.bf16.mxu0 %v607
        %653 = vmatpush1.bf16.msra.mxu0 %v606
        %654 = vmatprep.subr.bf16.mxu0 %v610
        %655 = vmatpush1.bf16.msra.mxu0 %v609
        %656 = vmatprep.subr.bf16.mxu0 %v613
        %657 = vmatpush1.bf16.msra.mxu0 %v612
        %658 = vmatprep.subr.bf16.mxu0 %v616
        %659 = vmatpush1.bf16.msra.mxu0 %v615
        %660 = vmatprep.subr.bf16.mxu0 %v619
        %661 = vmatpush1.bf16.msra.mxu0 %v618
        %662 = vmatprep.subr.bf16.mxu0 %v622
        %663 = vmatpush1.bf16.msra.mxu0 %v621
        %664 = vmatprep.subr.bf16.mxu0 0
        %665 = vmatpush1.bf16.msra.mxu0 0
        %666 = vmatprep.subr.bf16.mxu0 0
        %667 = vmatpush1.bf16.msra.mxu0 0
        %668 = vmatprep.subr.bf16.mxu0 0
        %669 = vmatpush1.bf16.msra.mxu0 0
        %670 = vmatprep.subr.bf16.mxu0 0
        %671 = vmatpush1.bf16.msra.mxu0 0
        %672 = vmatprep.subr.bf16.mxu0 0
        %673 = vmatpush1.bf16.msra.mxu0 0
        %674 = vmatprep.subr.bf16.mxu0 0
        %675 = vmatpush1.bf16.msra.mxu0 0
        %676 = vmatprep.subr.bf16.mxu0 0
        %677 = vmatpush1.bf16.msra.mxu0 0
        %678 = vmatprep.subr.bf16.mxu0 0
        %679 = vmatpush1.bf16.msra.mxu0 0
        %680 = vmatprep.mubr.bf16.mxu0 0
        %681 = vmatmul.mubr.bf16.gmra.mrb[0].mxu0 %v487
        %v682 = vpop.f32.mrb[0].mxu0
        %v683 = vadd.f32 0.0, %v682
        %v684 = vpop.f32.mrb[0].mxu0
        %v685 = vadd.f32 0.0, %v684
        %v686 = vpop.f32.mrb[0].mxu0
        %v687 = vpop.f32.mrb[0].mxu0
        %688 = vdwg.mxu0
        %689 = vmatprep.subr.bf16.mxu0 0
        %690 = vmatpush1.bf16.msra.mxu0 %v602
        %691 = vmatprep.subr.bf16.mxu0 0
        %692 = vmatpush1.bf16.msra.mxu0 %v605
        %693 = vmatprep.subr.bf16.mxu0 0
        %694 = vmatpush1.bf16.msra.mxu0 %v608
        %695 = vmatprep.subr.bf16.mxu0 0
        %696 = vmatpush1.bf16.msra.mxu0 %v611
        %697 = vmatprep.subr.bf16.mxu0 0
        %698 = vmatpush1.bf16.msra.mxu0 %v614
        %699 = vmatprep.subr.bf16.mxu0 0
        %700 = vmatpush1.bf16.msra.mxu0 %v617
        %701 = vmatprep.subr.bf16.mxu0 0
        %702 = vmatpush1.bf16.msra.mxu0 %v620
        %703 = vmatprep.subr.bf16.mxu0 0
        %704 = vmatpush1.bf16.msra.mxu0 %v623
        %705 = vmatprep.subr.bf16.mxu0 0
        %706 = vmatpush1.bf16.msra.mxu0 0
        %707 = vmatprep.subr.bf16.mxu0 0
        %708 = vmatpush1.bf16.msra.mxu0 0
        %709 = vmatprep.subr.bf16.mxu0 0
        %710 = vmatpush1.bf16.msra.mxu0 0
        %711 = vmatprep.subr.bf16.mxu0 0
        %712 = vmatpush1.bf16.msra.mxu0 0
        %713 = vmatprep.subr.bf16.mxu0 0
        %714 = vmatpush1.bf16.msra.mxu0 0
        %715 = vmatprep.subr.bf16.mxu0 0
        %716 = vmatpush1.bf16.msra.mxu0 0
        %717 = vmatprep.subr.bf16.mxu0 0
        %718 = vmatpush1.bf16.msra.mxu0 0
        %719 = vmatprep.subr.bf16.mxu0 0
        %720 = vmatpush1.bf16.msra.mxu0 0
        %721 = vmatprep.mubr.bf16.mxu0 0
        %722 = vmatmul.mubr.bf16.gmra.mrb[0].mxu0 %v487
        %v723 = vpop.f32.mrb[0].mxu0
        %v724 = vadd.f32 0.0, %v723
        %v725 = vpop.f32.mrb[0].mxu0
        %v726 = vpop.f32.mrb[0].mxu0
        %v727 = vpop.f32.mrb[0].mxu0
        %728 = vdwg.mxu0
        %v729 = vpack.c.bf16 %v683, %v683
        %731 = vrot.lane.b32.xlu0 %v729, 96
        %v732 = vpop.permute.xlu0 %731
        %733 = vrot.lane.b32.xlu0 %v729, 64
        %v734 = vpop.permute.xlu0 %733
        %735 = vrot.lane.b32.xlu0 %v729, 32
        %v736 = vpop.permute.xlu0 %735
        %v738 = vunpack.c.l.s4 1983009808
        %v739 = vunpack.c.0.s8 %v738
        %v740 = vlaneseq
        %v741 = vshrl.u32 %v740, 7
        %v742 = vsub.s32 %v739, %v741
        %v743 = vrot.slane %v729, %v742
        %v746 = vunpack.c.l.s4 1983009808
        %v747 = vunpack.c.0.s8 %v746
        %v748 = vlaneseq
        %v749 = vshrl.u32 %v748, 7
        %v750 = vsub.s32 %v747, %v749
        %v751 = vrot.slane %v734, %v750
        %v752 = vcombine.low %v743, %v751
        %v753 = vcombine.high %v743, %v751
        %v755 = vunpack.c.l.s4 1934713408
        %v756 = vunpack.c.0.s8 %v755
        %v757 = vlaneseq
        %v758 = vshrl.u32 %v757, 7
        %v759 = vsub.s32 %v756, %v758
        %v760 = vrot.slane %v752, %v759
        %v762 = vunpack.c.l.s4 1934713408
        %v763 = vunpack.c.0.s8 %v762
        %v764 = vlaneseq
        %v765 = vshrl.u32 %v764, 7
        %v766 = vsub.s32 %v763, %v765
        %v767 = vrot.slane %v753, %v766
        %v768 = vcombine.high %v760, 0
        %v769 = vcombine.high %v767, 0
        %v772 = vunpack.c.l.s4 1983009808
        %v773 = vunpack.c.0.s8 %v772
        %v774 = vlaneseq
        %v775 = vshrl.u32 %v774, 7
        %v776 = vsub.s32 %v773, %v775
        %v777 = vrot.slane %v732, %v776
        %v780 = vunpack.c.l.s4 1983009808
        %v781 = vunpack.c.0.s8 %v780
        %v782 = vlaneseq
        %v783 = vshrl.u32 %v782, 7
        %v784 = vsub.s32 %v781, %v783
        %v785 = vrot.slane %v736, %v784
        %v786 = vcombine.low %v777, %v785
        %v787 = vcombine.high %v777, %v785
        %v789 = vunpack.c.l.s4 1934713408
        %v790 = vunpack.c.0.s8 %v789
        %v791 = vlaneseq
        %v792 = vshrl.u32 %v791, 7
        %v793 = vsub.s32 %v790, %v792
        %v794 = vrot.slane %v786, %v793
        %v796 = vunpack.c.l.s4 1934713408
        %v797 = vunpack.c.0.s8 %v796
        %v798 = vlaneseq
        %v799 = vshrl.u32 %v798, 7
        %v800 = vsub.s32 %v797, %v799
        %v801 = vrot.slane %v787, %v800
        %v802 = vcombine.high %v794, 0
        %v803 = vcombine.high %v801, 0
        %v806 = vpack.i.b16 %v794, %v760
        %v808 = vshrl.u32 %v760, 16
        %v809 = vshrl.u32 %v794, 16
        %v810 = vpack.i.b16 %v809, %v808
        %v814 = vpack.i.b16 %v802, %v768
        %v816 = vshrl.u32 %v768, 16
        %v817 = vshrl.u32 %v802, 16
        %v818 = vpack.i.b16 %v817, %v816
        %v822 = vpack.i.b16 %v801, %v767
        %v824 = vshrl.u32 %v767, 16
        %v825 = vshrl.u32 %v801, 16
        %v826 = vpack.i.b16 %v825, %v824
        %v830 = vpack.i.b16 %v803, %v769
        %v832 = vshrl.u32 %v769, 16
        %v833 = vshrl.u32 %v803, 16
        %v834 = vpack.i.b16 %v833, %v832
        %v836 = vcombine.low %v806, %v822
        %v838 = vunpack.c.l.s4 1983009808
        %v839 = vunpack.c.0.s8 %v838
        %v840 = vlaneseq
        %v841 = vshrl.u32 %v840, 7
        %v842 = vsub.s32 %v839, %v841
        %v843 = vrot.slane %v836, %v842
        %v844 = vcombine.low %v814, %v830
        %v846 = vunpack.c.l.s4 1983009808
        %v847 = vunpack.c.0.s8 %v846
        %v848 = vlaneseq
        %v849 = vshrl.u32 %v848, 7
        %v850 = vsub.s32 %v847, %v849
        %v851 = vrot.slane %v844, %v850
        %v852 = vcombine.low %v843, %v851
        %v854 = vunpack.c.l.s4 1934713408
        %v855 = vunpack.c.0.s8 %v854
        %v856 = vlaneseq
        %v857 = vshrl.u32 %v856, 7
        %v858 = vsub.s32 %v855, %v857
        %v859 = vrot.slane %v852, %v858
        %v860 = vcombine.high %v859, 0
        %v861 = vcombine.low %v810, %v826
        %v863 = vunpack.c.l.s4 1983009808
        %v864 = vunpack.c.0.s8 %v863
        %v865 = vlaneseq
        %v866 = vshrl.u32 %v865, 7
        %v867 = vsub.s32 %v864, %v866
        %v868 = vrot.slane %v861, %v867
        %v869 = vcombine.low %v818, %v834
        %v871 = vunpack.c.l.s4 1983009808
        %v872 = vunpack.c.0.s8 %v871
        %v873 = vlaneseq
        %v874 = vshrl.u32 %v873, 7
        %v875 = vsub.s32 %v872, %v874
        %v876 = vrot.slane %v869, %v875
        %v877 = vcombine.low %v868, %v876
        %v879 = vunpack.c.l.s4 1934713408
        %v880 = vunpack.c.0.s8 %v879
        %v881 = vlaneseq
        %v882 = vshrl.u32 %v881, 7
        %v883 = vsub.s32 %v880, %v882
        %v884 = vrot.slane %v877, %v883
        %v885 = vcombine.high %v884, 0
        %v888 = vpack.i.b16 %v884, %v859
        %v889 = vshrl.u32 %v859, 16
        %v890 = vshrl.u32 %v884, 16
        %v891 = vpack.i.b16 %v890, %v889
        %v894 = vpack.i.b16 %v885, %v860
        %v895 = vshrl.u32 %v860, 16
        %v896 = vshrl.u32 %v885, 16
        %v897 = vpack.i.b16 %v896, %v895
        %v898 = vpack.c.bf16 %v685, %v685
        %900 = vrot.lane.b32.xlu0 %v898, 96
        %v901 = vpop.permute.xlu0 %900
        %902 = vrot.lane.b32.xlu0 %v898, 64
        %v903 = vpop.permute.xlu0 %902
        %904 = vrot.lane.b32.xlu0 %v898, 32
        %v905 = vpop.permute.xlu0 %904
        %v907 = vunpack.c.l.s4 1983009808
        %v908 = vunpack.c.0.s8 %v907
        %v909 = vlaneseq
        %v910 = vshrl.u32 %v909, 7
        %v911 = vsub.s32 %v908, %v910
        %v912 = vrot.slane %v898, %v911
        %v915 = vunpack.c.l.s4 1983009808
        %v916 = vunpack.c.0.s8 %v915
        %v917 = vlaneseq
        %v918 = vshrl.u32 %v917, 7
        %v919 = vsub.s32 %v916, %v918
        %v920 = vrot.slane %v903, %v919
        %v921 = vcombine.low %v912, %v920
        %v922 = vcombine.high %v912, %v920
        %v924 = vunpack.c.l.s4 1934713408
        %v925 = vunpack.c.0.s8 %v924
        %v926 = vlaneseq
        %v927 = vshrl.u32 %v926, 7
        %v928 = vsub.s32 %v925, %v927
        %v929 = vrot.slane %v921, %v928
        %v931 = vunpack.c.l.s4 1934713408
        %v932 = vunpack.c.0.s8 %v931
        %v933 = vlaneseq
        %v934 = vshrl.u32 %v933, 7
        %v935 = vsub.s32 %v932, %v934
        %v936 = vrot.slane %v922, %v935
        %v937 = vcombine.high %v929, 0
        %v938 = vcombine.high %v936, 0
        %v941 = vunpack.c.l.s4 1983009808
        %v942 = vunpack.c.0.s8 %v941
        %v943 = vlaneseq
        %v944 = vshrl.u32 %v943, 7
        %v945 = vsub.s32 %v942, %v944
        %v946 = vrot.slane %v901, %v945
        %v949 = vunpack.c.l.s4 1983009808
        %v950 = vunpack.c.0.s8 %v949
        %v951 = vlaneseq
        %v952 = vshrl.u32 %v951, 7
        %v953 = vsub.s32 %v950, %v952
        %v954 = vrot.slane %v905, %v953
        %v955 = vcombine.low %v946, %v954
        %v956 = vcombine.high %v946, %v954
        %v958 = vunpack.c.l.s4 1934713408
        %v959 = vunpack.c.0.s8 %v958
        %v960 = vlaneseq
        %v961 = vshrl.u32 %v960, 7
        %v962 = vsub.s32 %v959, %v961
        %v963 = vrot.slane %v955, %v962
        %v965 = vunpack.c.l.s4 1934713408
        %v966 = vunpack.c.0.s8 %v965
        %v967 = vlaneseq
        %v968 = vshrl.u32 %v967, 7
        %v969 = vsub.s32 %v966, %v968
        %v970 = vrot.slane %v956, %v969
        %v971 = vcombine.high %v963, 0
        %v972 = vcombine.high %v970, 0
        %v975 = vpack.i.b16 %v963, %v929
        %v977 = vshrl.u32 %v929, 16
        %v978 = vshrl.u32 %v963, 16
        %v979 = vpack.i.b16 %v978, %v977
        %v983 = vpack.i.b16 %v971, %v937
        %v985 = vshrl.u32 %v937, 16
        %v986 = vshrl.u32 %v971, 16
        %v987 = vpack.i.b16 %v986, %v985
        %v991 = vpack.i.b16 %v970, %v936
        %v993 = vshrl.u32 %v936, 16
        %v994 = vshrl.u32 %v970, 16
        %v995 = vpack.i.b16 %v994, %v993
        %v999 = vpack.i.b16 %v972, %v938
        %v1001 = vshrl.u32 %v938, 16
        %v1002 = vshrl.u32 %v972, 16
        %v1003 = vpack.i.b16 %v1002, %v1001
        %v1005 = vcombine.low %v975, %v991
        %v1007 = vunpack.c.l.s4 1983009808
        %v1008 = vunpack.c.0.s8 %v1007
        %v1009 = vlaneseq
        %v1010 = vshrl.u32 %v1009, 7
        %v1011 = vsub.s32 %v1008, %v1010
        %v1012 = vrot.slane %v1005, %v1011
        %v1013 = vcombine.low %v983, %v999
        %v1015 = vunpack.c.l.s4 1983009808
        %v1016 = vunpack.c.0.s8 %v1015
        %v1017 = vlaneseq
        %v1018 = vshrl.u32 %v1017, 7
        %v1019 = vsub.s32 %v1016, %v1018
        %v1020 = vrot.slane %v1013, %v1019
        %v1021 = vcombine.low %v1012, %v1020
        %v1023 = vunpack.c.l.s4 1934713408
        %v1024 = vunpack.c.0.s8 %v1023
        %v1025 = vlaneseq
        %v1026 = vshrl.u32 %v1025, 7
        %v1027 = vsub.s32 %v1024, %v1026
        %v1028 = vrot.slane %v1021, %v1027
        %v1029 = vcombine.high %v1028, 0
        %v1030 = vcombine.low %v979, %v995
        %v1032 = vunpack.c.l.s4 1983009808
        %v1033 = vunpack.c.0.s8 %v1032
        %v1034 = vlaneseq
        %v1035 = vshrl.u32 %v1034, 7
        %v1036 = vsub.s32 %v1033, %v1035
        %v1037 = vrot.slane %v1030, %v1036
        %v1038 = vcombine.low %v987, %v1003
        %v1040 = vunpack.c.l.s4 1983009808
        %v1041 = vunpack.c.0.s8 %v1040
        %v1042 = vlaneseq
        %v1043 = vshrl.u32 %v1042, 7
        %v1044 = vsub.s32 %v1041, %v1043
        %v1045 = vrot.slane %v1038, %v1044
        %v1046 = vcombine.low %v1037, %v1045
        %v1048 = vunpack.c.l.s4 1934713408
        %v1049 = vunpack.c.0.s8 %v1048
        %v1050 = vlaneseq
        %v1051 = vshrl.u32 %v1050, 7
        %v1052 = vsub.s32 %v1049, %v1051
        %v1053 = vrot.slane %v1046, %v1052
        %v1054 = vcombine.high %v1053, 0
        %v1057 = vpack.i.b16 %v1053, %v1028
        %v1058 = vshrl.u32 %v1028, 16
        %v1059 = vshrl.u32 %v1053, 16
        %v1060 = vpack.i.b16 %v1059, %v1058
        %v1063 = vpack.i.b16 %v1054, %v1029
        %v1064 = vshrl.u32 %v1029, 16
        %v1065 = vshrl.u32 %v1054, 16
        %v1066 = vpack.i.b16 %v1065, %v1064
        %v1067 = vpack.c.bf16 %v724, %v724
        %1069 = vrot.lane.b32.xlu0 %v1067, 96
        %v1070 = vpop.permute.xlu0 %1069
        %1071 = vrot.lane.b32.xlu0 %v1067, 64
        %v1072 = vpop.permute.xlu0 %1071
        %1073 = vrot.lane.b32.xlu0 %v1067, 32
        %v1074 = vpop.permute.xlu0 %1073
        %v1076 = vunpack.c.l.s4 1983009808
        %v1077 = vunpack.c.0.s8 %v1076
        %v1078 = vlaneseq
        %v1079 = vshrl.u32 %v1078, 7
        %v1080 = vsub.s32 %v1077, %v1079
        %v1081 = vrot.slane %v1067, %v1080
        %v1084 = vunpack.c.l.s4 1983009808
        %v1085 = vunpack.c.0.s8 %v1084
        %v1086 = vlaneseq
        %v1087 = vshrl.u32 %v1086, 7
        %v1088 = vsub.s32 %v1085, %v1087
        %v1089 = vrot.slane %v1072, %v1088
        %v1090 = vcombine.low %v1081, %v1089
        %v1091 = vcombine.high %v1081, %v1089
        %v1093 = vunpack.c.l.s4 1934713408
        %v1094 = vunpack.c.0.s8 %v1093
        %v1095 = vlaneseq
        %v1096 = vshrl.u32 %v1095, 7
        %v1097 = vsub.s32 %v1094, %v1096
        %v1098 = vrot.slane %v1090, %v1097
        %v1100 = vunpack.c.l.s4 1934713408
        %v1101 = vunpack.c.0.s8 %v1100
        %v1102 = vlaneseq
        %v1103 = vshrl.u32 %v1102, 7
        %v1104 = vsub.s32 %v1101, %v1103
        %v1105 = vrot.slane %v1091, %v1104
        %v1106 = vcombine.high %v1098, 0
        %v1107 = vcombine.high %v1105, 0
        %v1110 = vunpack.c.l.s4 1983009808
        %v1111 = vunpack.c.0.s8 %v1110
        %v1112 = vlaneseq
        %v1113 = vshrl.u32 %v1112, 7
        %v1114 = vsub.s32 %v1111, %v1113
        %v1115 = vrot.slane %v1070, %v1114
        %v1118 = vunpack.c.l.s4 1983009808
        %v1119 = vunpack.c.0.s8 %v1118
        %v1120 = vlaneseq
        %v1121 = vshrl.u32 %v1120, 7
        %v1122 = vsub.s32 %v1119, %v1121
        %v1123 = vrot.slane %v1074, %v1122
        %v1124 = vcombine.low %v1115, %v1123
        %v1125 = vcombine.high %v1115, %v1123
        %v1127 = vunpack.c.l.s4 1934713408
        %v1128 = vunpack.c.0.s8 %v1127
        %v1129 = vlaneseq
        %v1130 = vshrl.u32 %v1129, 7
        %v1131 = vsub.s32 %v1128, %v1130
        %v1132 = vrot.slane %v1124, %v1131
        %v1134 = vunpack.c.l.s4 1934713408
        %v1135 = vunpack.c.0.s8 %v1134
        %v1136 = vlaneseq
        %v1137 = vshrl.u32 %v1136, 7
        %v1138 = vsub.s32 %v1135, %v1137
        %v1139 = vrot.slane %v1125, %v1138
        %v1140 = vcombine.high %v1132, 0
        %v1141 = vcombine.high %v1139, 0
        %v1144 = vpack.i.b16 %v1132, %v1098
        %v1146 = vshrl.u32 %v1098, 16
        %v1147 = vshrl.u32 %v1132, 16
        %v1148 = vpack.i.b16 %v1147, %v1146
        %v1152 = vpack.i.b16 %v1140, %v1106
        %v1154 = vshrl.u32 %v1106, 16
        %v1155 = vshrl.u32 %v1140, 16
        %v1156 = vpack.i.b16 %v1155, %v1154
        %v1160 = vpack.i.b16 %v1139, %v1105
        %v1162 = vshrl.u32 %v1105, 16
        %v1163 = vshrl.u32 %v1139, 16
        %v1164 = vpack.i.b16 %v1163, %v1162
        %v1168 = vpack.i.b16 %v1141, %v1107
        %v1170 = vshrl.u32 %v1107, 16
        %v1171 = vshrl.u32 %v1141, 16
        %v1172 = vpack.i.b16 %v1171, %v1170
        %v1174 = vcombine.low %v1144, %v1160
        %v1176 = vunpack.c.l.s4 1983009808
        %v1177 = vunpack.c.0.s8 %v1176
        %v1178 = vlaneseq
        %v1179 = vshrl.u32 %v1178, 7
        %v1180 = vsub.s32 %v1177, %v1179
        %v1181 = vrot.slane %v1174, %v1180
        %v1182 = vcombine.low %v1152, %v1168
        %v1184 = vunpack.c.l.s4 1983009808
        %v1185 = vunpack.c.0.s8 %v1184
        %v1186 = vlaneseq
        %v1187 = vshrl.u32 %v1186, 7
        %v1188 = vsub.s32 %v1185, %v1187
        %v1189 = vrot.slane %v1182, %v1188
        %v1190 = vcombine.low %v1181, %v1189
        %v1192 = vunpack.c.l.s4 1934713408
        %v1193 = vunpack.c.0.s8 %v1192
        %v1194 = vlaneseq
        %v1195 = vshrl.u32 %v1194, 7
        %v1196 = vsub.s32 %v1193, %v1195
        %v1197 = vrot.slane %v1190, %v1196
        %v1198 = vcombine.high %v1197, 0
        %v1199 = vcombine.low %v1148, %v1164
        %v1201 = vunpack.c.l.s4 1983009808
        %v1202 = vunpack.c.0.s8 %v1201
        %v1203 = vlaneseq
        %v1204 = vshrl.u32 %v1203, 7
        %v1205 = vsub.s32 %v1202, %v1204
        %v1206 = vrot.slane %v1199, %v1205
        %v1207 = vcombine.low %v1156, %v1172
        %v1209 = vunpack.c.l.s4 1983009808
        %v1210 = vunpack.c.0.s8 %v1209
        %v1211 = vlaneseq
        %v1212 = vshrl.u32 %v1211, 7
        %v1213 = vsub.s32 %v1210, %v1212
        %v1214 = vrot.slane %v1207, %v1213
        %v1215 = vcombine.low %v1206, %v1214
        %v1217 = vunpack.c.l.s4 1934713408
        %v1218 = vunpack.c.0.s8 %v1217
        %v1219 = vlaneseq
        %v1220 = vshrl.u32 %v1219, 7
        %v1221 = vsub.s32 %v1218, %v1220
        %v1222 = vrot.slane %v1215, %v1221
        %v1223 = vcombine.high %v1222, 0
        %v1226 = vpack.i.b16 %v1222, %v1197
        %v1227 = vshrl.u32 %v1197, 16
        %v1228 = vshrl.u32 %v1222, 16
        %v1229 = vpack.i.b16 %v1228, %v1227
        %v1232 = vpack.i.b16 %v1223, %v1198
        %v1233 = vshrl.u32 %v1198, 16
        %v1234 = vshrl.u32 %v1223, 16
        %v1235 = vpack.i.b16 %v1234, %v1233
        %vm1236 = vcmask 261120
        %v1238 = vsel %vm1236, %v888, 0
        %v1241 = vsel %vm1236, %v1057, 0
        %1243 = vmatprep.subr.bf16.mxu0 0
        %1244 = vmatpush1.bf16.xpose.msra.mxu0 %v1241
        %1245 = vmatprep.subr.bf16.mxu0 0
        %1246 = vmatpush1.bf16.xpose.msra.mxu0 0
        %1247 = vmatprep.subr.bf16.mxu0 0
        %1248 = vmatpush1.bf16.xpose.msra.mxu0 0
        %1249 = vmatprep.subr.bf16.mxu0 0
        %1250 = vmatpush1.bf16.xpose.msra.mxu0 0
        %1251 = vmatprep.subr.bf16.mxu0 0
        %1252 = vmatpush1.bf16.xpose.msra.mxu0 0
        %1253 = vmatprep.subr.bf16.mxu0 0
        %1254 = vmatpush1.bf16.xpose.msra.mxu0 0
        %1255 = vmatprep.subr.bf16.mxu0 0
        %1256 = vmatpush1.bf16.xpose.msra.mxu0 0
        %1257 = vmatprep.subr.bf16.mxu0 0
        %1258 = vmatpush1.bf16.xpose.msra.mxu0 0
        %1259 = vmatprep.subr.bf16.mxu0 0
        %1260 = vmatpush1.bf16.xpose.msra.mxu0 0
        %1261 = vmatprep.subr.bf16.mxu0 0
        %1262 = vmatpush1.bf16.xpose.msra.mxu0 0
        %1263 = vmatprep.subr.bf16.mxu0 0
        %1264 = vmatpush1.bf16.xpose.msra.mxu0 0
        %1265 = vmatprep.subr.bf16.mxu0 0
        %1266 = vmatpush1.bf16.xpose.msra.mxu0 0
        %1267 = vmatprep.subr.bf16.mxu0 0
        %1268 = vmatpush1.bf16.xpose.msra.mxu0 0
        %1269 = vmatprep.subr.bf16.mxu0 0
        %1270 = vmatpush1.bf16.xpose.msra.mxu0 0
        %1271 = vmatprep.subr.bf16.mxu0 0
        %1272 = vmatpush1.bf16.xpose.msra.mxu0 0
        %1273 = vmatprep.subr.bf16.mxu0 0
        %1274 = vmatpush1.bf16.xpose.msra.mxu0 0
        %1275 = vmatprep.mubr.bf16.mxu0 0
        %1276 = vmatmul.mubr.bf16.gmra.mrb[0].mxu0 %v1238
        %v1277 = vpop.f32.mrb[0].mxu0
        %v1278 = vadd.f32 0.0, %v1277
        %v1279 = vpop.f32.mrb[0].mxu0
        %v1280 = vpop.f32.mrb[0].mxu0
        %v1281 = vpop.f32.mrb[0].mxu0
        %1282 = vdwg.mxu0
        %v1284 = vsel %vm1236, %v891, 0
        %v1287 = vsel %vm1236, %v1060, 0
        %1289 = vmatprep.subr.bf16.mxu0 0
        %1290 = vmatpush1.bf16.xpose.msra.mxu0 %v1287
        %1291 = vmatprep.subr.bf16.mxu0 0
        %1292 = vmatpush1.bf16.xpose.msra.mxu0 0
        %1293 = vmatprep.subr.bf16.mxu0 0
        %1294 = vmatpush1.bf16.xpose.msra.mxu0 0
        %1295 = vmatprep.subr.bf16.mxu0 0
        %1296 = vmatpush1.bf16.xpose.msra.mxu0 0
        %1297 = vmatprep.subr.bf16.mxu0 0
        %1298 = vmatpush1.bf16.xpose.msra.mxu0 0
        %1299 = vmatprep.subr.bf16.mxu0 0
        %1300 = vmatpush1.bf16.xpose.msra.mxu0 0
        %1301 = vmatprep.subr.bf16.mxu0 0
        %1302 = vmatpush1.bf16.xpose.msra.mxu0 0
        %1303 = vmatprep.subr.bf16.mxu0 0
        %1304 = vmatpush1.bf16.xpose.msra.mxu0 0
        %1305 = vmatprep.subr.bf16.mxu0 0
        %1306 = vmatpush1.bf16.xpose.msra.mxu0 0
        %1307 = vmatprep.subr.bf16.mxu0 0
        %1308 = vmatpush1.bf16.xpose.msra.mxu0 0
        %1309 = vmatprep.subr.bf16.mxu0 0
        %1310 = vmatpush1.bf16.xpose.msra.mxu0 0
        %1311 = vmatprep.subr.bf16.mxu0 0
        %1312 = vmatpush1.bf16.xpose.msra.mxu0 0
        %1313 = vmatprep.subr.bf16.mxu0 0
        %1314 = vmatpush1.bf16.xpose.msra.mxu0 0
        %1315 = vmatprep.subr.bf16.mxu0 0
        %1316 = vmatpush1.bf16.xpose.msra.mxu0 0
        %1317 = vmatprep.subr.bf16.mxu0 0
        %1318 = vmatpush1.bf16.xpose.msra.mxu0 0
        %1319 = vmatprep.subr.bf16.mxu0 0
        %1320 = vmatpush1.bf16.xpose.msra.mxu0 0
        %1321 = vmatprep.mubr.bf16.mxu0 0
        %1322 = vmatmul.mubr.bf16.gmra.mrb[0].mxu0 %v1284
        %v1323 = vpop.f32.mrb[0].mxu0
        %v1324 = vadd.f32 0.0, %v1323
        %v1325 = vpop.f32.mrb[0].mxu0
        %v1326 = vpop.f32.mrb[0].mxu0
        %v1327 = vpop.f32.mrb[0].mxu0
        %1328 = vdwg.mxu0
        %v1330 = vsel %vm1236, %v894, 0
        %v1333 = vsel %vm1236, %v1063, 0
        %1335 = vmatprep.subr.bf16.mxu0 0
        %1336 = vmatpush1.bf16.xpose.msra.mxu0 %v1333
        %1337 = vmatprep.subr.bf16.mxu0 0
        %1338 = vmatpush1.bf16.xpose.msra.mxu0 0
        %1339 = vmatprep.subr.bf16.mxu0 0
        %1340 = vmatpush1.bf16.xpose.msra.mxu0 0
        %1341 = vmatprep.subr.bf16.mxu0 0
        %1342 = vmatpush1.bf16.xpose.msra.mxu0 0
        %1343 = vmatprep.subr.bf16.mxu0 0
        %1344 = vmatpush1.bf16.xpose.msra.mxu0 0
        %1345 = vmatprep.subr.bf16.mxu0 0
        %1346 = vmatpush1.bf16.xpose.msra.mxu0 0
        %1347 = vmatprep.subr.bf16.mxu0 0
        %1348 = vmatpush1.bf16.xpose.msra.mxu0 0
        %1349 = vmatprep.subr.bf16.mxu0 0
        %1350 = vmatpush1.bf16.xpose.msra.mxu0 0
        %1351 = vmatprep.subr.bf16.mxu0 0
        %1352 = vmatpush1.bf16.xpose.msra.mxu0 0
        %1353 = vmatprep.subr.bf16.mxu0 0
        %1354 = vmatpush1.bf16.xpose.msra.mxu0 0
        %1355 = vmatprep.subr.bf16.mxu0 0
        %1356 = vmatpush1.bf16.xpose.msra.mxu0 0
        %1357 = vmatprep.subr.bf16.mxu0 0
        %1358 = vmatpush1.bf16.xpose.msra.mxu0 0
        %1359 = vmatprep.subr.bf16.mxu0 0
        %1360 = vmatpush1.bf16.xpose.msra.mxu0 0
        %1361 = vmatprep.subr.bf16.mxu0 0
        %1362 = vmatpush1.bf16.xpose.msra.mxu0 0
        %1363 = vmatprep.subr.bf16.mxu0 0
        %1364 = vmatpush1.bf16.xpose.msra.mxu0 0
        %1365 = vmatprep.subr.bf16.mxu0 0
        %1366 = vmatpush1.bf16.xpose.msra.mxu0 0
        %1367 = vmatprep.mubr.bf16.mxu0 0
        %1368 = vmatmul.mubr.bf16.gmra.mrb[0].mxu0 %v1330
        %v1369 = vpop.f32.mrb[0].mxu0
        %v1370 = vadd.f32 0.0, %v1369
        %v1371 = vpop.f32.mrb[0].mxu0
        %v1372 = vpop.f32.mrb[0].mxu0
        %v1373 = vpop.f32.mrb[0].mxu0
        %1374 = vdwg.mxu0
        %v1376 = vsel %vm1236, %v897, 0
        %v1379 = vsel %vm1236, %v1066, 0
        %1381 = vmatprep.subr.bf16.mxu0 0
        %1382 = vmatpush1.bf16.xpose.msra.mxu0 %v1379
        %1383 = vmatprep.subr.bf16.mxu0 0
        %1384 = vmatpush1.bf16.xpose.msra.mxu0 0
        %1385 = vmatprep.subr.bf16.mxu0 0
        %1386 = vmatpush1.bf16.xpose.msra.mxu0 0
        %1387 = vmatprep.subr.bf16.mxu0 0
        %1388 = vmatpush1.bf16.xpose.msra.mxu0 0
        %1389 = vmatprep.subr.bf16.mxu0 0
        %1390 = vmatpush1.bf16.xpose.msra.mxu0 0
        %1391 = vmatprep.subr.bf16.mxu0 0
        %1392 = vmatpush1.bf16.xpose.msra.mxu0 0
        %1393 = vmatprep.subr.bf16.mxu0 0
        %1394 = vmatpush1.bf16.xpose.msra.mxu0 0
        %1395 = vmatprep.subr.bf16.mxu0 0
        %1396 = vmatpush1.bf16.xpose.msra.mxu0 0
        %1397 = vmatprep.subr.bf16.mxu0 0
        %1398 = vmatpush1.bf16.xpose.msra.mxu0 0
        %1399 = vmatprep.subr.bf16.mxu0 0
        %1400 = vmatpush1.bf16.xpose.msra.mxu0 0
        %1401 = vmatprep.subr.bf16.mxu0 0
        %1402 = vmatpush1.bf16.xpose.msra.mxu0 0
        %1403 = vmatprep.subr.bf16.mxu0 0
        %1404 = vmatpush1.bf16.xpose.msra.mxu0 0
        %1405 = vmatprep.subr.bf16.mxu0 0
        %1406 = vmatpush1.bf16.xpose.msra.mxu0 0
        %1407 = vmatprep.subr.bf16.mxu0 0
        %1408 = vmatpush1.bf16.xpose.msra.mxu0 0
        %1409 = vmatprep.subr.bf16.mxu0 0
        %1410 = vmatpush1.bf16.xpose.msra.mxu0 0
        %1411 = vmatprep.subr.bf16.mxu0 0
        %1412 = vmatpush1.bf16.xpose.msra.mxu0 0
        %1413 = vmatprep.mubr.bf16.mxu0 0
        %1414 = vmatmul.mubr.bf16.gmra.mrb[0].mxu0 %v1376
        %v1415 = vpop.f32.mrb[0].mxu0
        %v1416 = vadd.f32 0.0, %v1415
        %v1417 = vpop.f32.mrb[0].mxu0
        %v1418 = vpop.f32.mrb[0].mxu0
        %v1419 = vpop.f32.mrb[0].mxu0
        %1420 = vdwg.mxu0
        %v1421 = vld [vmem:[%s484] sm:$0xff]
        %v1422 = vlaneseq
        %v1423 = vand.u32 %v1422, 127
        %1424 = vset.pattern.permute.xlu0 0
        %1425 = vperm.xlu0 %1424, %v1421
        %v1426 = vpop.permute.xlu0 %1425
        %vm1427 = vcmp.lt.s32.totalorder %v1423, %v1426
        %v1428 = vsel %vm1427, %v1278, -1000000.0
        %v1429 = vsel %vm1427, %v1324, -1000000.0
        %v1430 = vsel %vm1427, %v1370, -1000000.0
        %v1431 = vsel %vm1427, %v1416, -1000000.0
        %vm1432 = vcmask 64512
        %v1433 = vsel %vm1432, %v1428, -inf
        %1434 = vmax.xlane.f32.xlu0 %v1433
        %v1435 = vpop.xlane.xlu0 %1434
        %v1436 = vsel %vm1432, %v1429, -inf
        %1437 = vmax.xlane.f32.xlu0 %v1436
        %v1438 = vpop.xlane.xlu0 %1437
        %v1439 = vsel %vm1432, %v1430, -inf
        %1440 = vmax.xlane.f32.xlu0 %v1439
        %v1441 = vpop.xlane.xlu0 %1440
        %v1442 = vsel %vm1432, %v1431, -inf
        %1443 = vmax.xlane.f32.xlu0 %v1442
        %v1444 = vpop.xlane.xlu0 %1443
        %v1445 = vsub.f32 %v1428, %v1435
        %v1446 = vsub.f32 %v1429, %v1438
        %v1447 = vsub.f32 %v1430, %v1441
        %v1448 = vsub.f32 %v1431, %v1444
        %v1449 = vmul.f32 %v1445, 1.442695
        %v1450 = vpow.pop %v1449
        %v1451 = vmul.f32 %v1446, 1.442695
        %v1452 = vpow.pop %v1451
        %v1453 = vmul.f32 %v1447, 1.442695
        %v1454 = vpow.pop %v1453
        %v1455 = vmul.f32 %v1448, 1.442695
        %v1456 = vpow.pop %v1455
        %v1457 = vsel %vm1432, %v1450, 0.0
        %1458 = vadd.xlane.f32.xlu0 %v1457
        %v1459 = vpop.xlane.xlu0 %1458
        %v1460 = vsel %vm1432, %v1452, 0.0
        %1461 = vadd.xlane.f32.xlu0 %v1460
        %v1462 = vpop.xlane.xlu0 %1461
        %v1463 = vsel %vm1432, %v1454, 0.0
        %1464 = vadd.xlane.f32.xlu0 %v1463
        %v1465 = vpop.xlane.xlu0 %1464
        %v1466 = vsel %vm1432, %v1456, 0.0
        %1467 = vadd.xlane.f32.xlu0 %v1466
        %v1468 = vpop.xlane.xlu0 %1467
        %v1469 = vrcp.pop %v1459
        %v1470 = vrcp.pop %v1462
        %v1471 = vrcp.pop %v1465
        %v1472 = vrcp.pop %v1468
        %v1473 = vmul.f32 %v1450, %v1469
        %v1474 = vmul.f32 %v1452, %v1470
        %v1475 = vmul.f32 %v1454, %v1471
        %v1476 = vmul.f32 %v1456, %v1472
        %v1477 = vpack.c.bf16 %v1473, %v1473
        %v1478 = vpack.c.bf16 %v1474, %v1474
        %v1479 = vpack.c.bf16 %v1475, %v1475
        %v1480 = vpack.c.bf16 %v1476, %v1476
        %v1482 = vsel %vm1432, %v1477, 0
        %vm1484 = vcmask 1043456
        %v1486 = vsel %vm1484, %v1226, 0
        %1488 = vmatprep.subr.bf16.mxu0 0
        %1489 = vmatpush1.bf16.msra.mxu0 %v1486
        %1490 = vmatprep.subr.bf16.mxu0 0
        %1491 = vmatpush1.bf16.msra.mxu0 0
        %1492 = vmatprep.subr.bf16.mxu0 0
        %1493 = vmatpush1.bf16.msra.mxu0 0
        %1494 = vmatprep.subr.bf16.mxu0 0
        %1495 = vmatpush1.bf16.msra.mxu0 0
        %1496 = vmatprep.subr.bf16.mxu0 0
        %1497 = vmatpush1.bf16.msra.mxu0 0
        %1498 = vmatprep.subr.bf16.mxu0 0
        %1499 = vmatpush1.bf16.msra.mxu0 0
        %1500 = vmatprep.subr.bf16.mxu0 0
        %1501 = vmatpush1.bf16.msra.mxu0 0
        %1502 = vmatprep.subr.bf16.mxu0 0
        %1503 = vmatpush1.bf16.msra.mxu0 0
        %1504 = vmatprep.subr.bf16.mxu0 0
        %1505 = vmatpush1.bf16.msra.mxu0 0
        %1506 = vmatprep.subr.bf16.mxu0 0
        %1507 = vmatpush1.bf16.msra.mxu0 0
        %1508 = vmatprep.subr.bf16.mxu0 0
        %1509 = vmatpush1.bf16.msra.mxu0 0
        %1510 = vmatprep.subr.bf16.mxu0 0
        %1511 = vmatpush1.bf16.msra.mxu0 0
        %1512 = vmatprep.subr.bf16.mxu0 0
        %1513 = vmatpush1.bf16.msra.mxu0 0
        %1514 = vmatprep.subr.bf16.mxu0 0
        %1515 = vmatpush1.bf16.msra.mxu0 0
        %1516 = vmatprep.subr.bf16.mxu0 0
        %1517 = vmatpush1.bf16.msra.mxu0 0
        %1518 = vmatprep.subr.bf16.mxu0 0
        %1519 = vmatpush1.bf16.msra.mxu0 0
        %1520 = vmatprep.mubr.bf16.mxu0 0
        %1521 = vmatmul.mubr.bf16.gmra.mrb[0].mxu0 %v1482
        %v1522 = vpop.f32.mrb[0].mxu0
        %v1523 = vadd.f32 0.0, %v1522
        %v1524 = vpop.f32.mrb[0].mxu0
        %v1525 = vpop.f32.mrb[0].mxu0
        %v1526 = vpop.f32.mrb[0].mxu0
        %1527 = vdwg.mxu0
        %v1529 = vsel %vm1432, %v1478, 0
        %v1532 = vsel %vm1484, %v1229, 0
        %1534 = vmatprep.subr.bf16.mxu0 0
        %1535 = vmatpush1.bf16.msra.mxu0 %v1532
        %1536 = vmatprep.subr.bf16.mxu0 0
        %1537 = vmatpush1.bf16.msra.mxu0 0
        %1538 = vmatprep.subr.bf16.mxu0 0
        %1539 = vmatpush1.bf16.msra.mxu0 0
        %1540 = vmatprep.subr.bf16.mxu0 0
        %1541 = vmatpush1.bf16.msra.mxu0 0
        %1542 = vmatprep.subr.bf16.mxu0 0
        %1543 = vmatpush1.bf16.msra.mxu0 0
        %1544 = vmatprep.subr.bf16.mxu0 0
        %1545 = vmatpush1.bf16.msra.mxu0 0
        %1546 = vmatprep.subr.bf16.mxu0 0
        %1547 = vmatpush1.bf16.msra.mxu0 0
        %1548 = vmatprep.subr.bf16.mxu0 0
        %1549 = vmatpush1.bf16.msra.mxu0 0
        %1550 = vmatprep.subr.bf16.mxu0 0
        %1551 = vmatpush1.bf16.msra.mxu0 0
        %1552 = vmatprep.subr.bf16.mxu0 0
        %1553 = vmatpush1.bf16.msra.mxu0 0
        %1554 = vmatprep.subr.bf16.mxu0 0
        %1555 = vmatpush1.bf16.msra.mxu0 0
        %1556 = vmatprep.subr.bf16.mxu0 0
        %1557 = vmatpush1.bf16.msra.mxu0 0
        %1558 = vmatprep.subr.bf16.mxu0 0
        %1559 = vmatpush1.bf16.msra.mxu0 0
        %1560 = vmatprep.subr.bf16.mxu0 0
        %1561 = vmatpush1.bf16.msra.mxu0 0
        %1562 = vmatprep.subr.bf16.mxu0 0
        %1563 = vmatpush1.bf16.msra.mxu0 0
        %1564 = vmatprep.subr.bf16.mxu0 0
        %1565 = vmatpush1.bf16.msra.mxu0 0
        %1566 = vmatprep.mubr.bf16.mxu0 0
        %1567 = vmatmul.mubr.bf16.gmra.mrb[0].mxu0 %v1529
        %v1568 = vpop.f32.mrb[0].mxu0
        %v1569 = vadd.f32 0.0, %v1568
        %v1570 = vpop.f32.mrb[0].mxu0
        %v1571 = vpop.f32.mrb[0].mxu0
        %v1572 = vpop.f32.mrb[0].mxu0
        %1573 = vdwg.mxu0
        %v1575 = vsel %vm1432, %v1479, 0
        %v1578 = vsel %vm1484, %v1232, 0
        %1580 = vmatprep.subr.bf16.mxu0 0
        %1581 = vmatpush1.bf16.msra.mxu0 %v1578
        %1582 = vmatprep.subr.bf16.mxu0 0
        %1583 = vmatpush1.bf16.msra.mxu0 0
        %1584 = vmatprep.subr.bf16.mxu0 0
        %1585 = vmatpush1.bf16.msra.mxu0 0
        %1586 = vmatprep.subr.bf16.mxu0 0
        %1587 = vmatpush1.bf16.msra.mxu0 0
        %1588 = vmatprep.subr.bf16.mxu0 0
        %1589 = vmatpush1.bf16.msra.mxu0 0
        %1590 = vmatprep.subr.bf16.mxu0 0
        %1591 = vmatpush1.bf16.msra.mxu0 0
        %1592 = vmatprep.subr.bf16.mxu0 0
        %1593 = vmatpush1.bf16.msra.mxu0 0
        %1594 = vmatprep.subr.bf16.mxu0 0
        %1595 = vmatpush1.bf16.msra.mxu0 0
        %1596 = vmatprep.subr.bf16.mxu0 0
        %1597 = vmatpush1.bf16.msra.mxu0 0
        %1598 = vmatprep.subr.bf16.mxu0 0
        %1599 = vmatpush1.bf16.msra.mxu0 0
        %1600 = vmatprep.subr.bf16.mxu0 0
        %1601 = vmatpush1.bf16.msra.mxu0 0
        %1602 = vmatprep.subr.bf16.mxu0 0
        %1603 = vmatpush1.bf16.msra.mxu0 0
        %1604 = vmatprep.subr.bf16.mxu0 0
        %1605 = vmatpush1.bf16.msra.mxu0 0
        %1606 = vmatprep.subr.bf16.mxu0 0
        %1607 = vmatpush1.bf16.msra.mxu0 0
        %1608 = vmatprep.subr.bf16.mxu0 0
        %1609 = vmatpush1.bf16.msra.mxu0 0
        %1610 = vmatprep.subr.bf16.mxu0 0
        %1611 = vmatpush1.bf16.msra.mxu0 0
        %1612 = vmatprep.mubr.bf16.mxu0 0
        %1613 = vmatmul.mubr.bf16.gmra.mrb[0].mxu0 %v1575
        %v1614 = vpop.f32.mrb[0].mxu0
        %v1615 = vadd.f32 0.0, %v1614
        %v1616 = vpop.f32.mrb[0].mxu0
        %v1617 = vpop.f32.mrb[0].mxu0
        %v1618 = vpop.f32.mrb[0].mxu0
        %1619 = vdwg.mxu0
        %v1621 = vsel %vm1432, %v1480, 0
        %v1624 = vsel %vm1484, %v1235, 0
        %1626 = vmatprep.subr.bf16.mxu0 0
        %1627 = vmatpush1.bf16.msra.mxu0 %v1624
        %1628 = vmatprep.subr.bf16.mxu0 0
        %1629 = vmatpush1.bf16.msra.mxu0 0
        %1630 = vmatprep.subr.bf16.mxu0 0
        %1631 = vmatpush1.bf16.msra.mxu0 0
        %1632 = vmatprep.subr.bf16.mxu0 0
        %1633 = vmatpush1.bf16.msra.mxu0 0
        %1634 = vmatprep.subr.bf16.mxu0 0
        %1635 = vmatpush1.bf16.msra.mxu0 0
        %1636 = vmatprep.subr.bf16.mxu0 0
        %1637 = vmatpush1.bf16.msra.mxu0 0
        %1638 = vmatprep.subr.bf16.mxu0 0
        %1639 = vmatpush1.bf16.msra.mxu0 0
        %1640 = vmatprep.subr.bf16.mxu0 0
        %1641 = vmatpush1.bf16.msra.mxu0 0
        %1642 = vmatprep.subr.bf16.mxu0 0
        %1643 = vmatpush1.bf16.msra.mxu0 0
        %1644 = vmatprep.subr.bf16.mxu0 0
        %1645 = vmatpush1.bf16.msra.mxu0 0
        %1646 = vmatprep.subr.bf16.mxu0 0
        %1647 = vmatpush1.bf16.msra.mxu0 0
        %1648 = vmatprep.subr.bf16.mxu0 0
        %1649 = vmatpush1.bf16.msra.mxu0 0
        %1650 = vmatprep.subr.bf16.mxu0 0
        %1651 = vmatpush1.bf16.msra.mxu0 0
        %1652 = vmatprep.subr.bf16.mxu0 0
        %1653 = vmatpush1.bf16.msra.mxu0 0
        %1654 = vmatprep.subr.bf16.mxu0 0
        %1655 = vmatpush1.bf16.msra.mxu0 0
        %1656 = vmatprep.subr.bf16.mxu0 0
        %1657 = vmatpush1.bf16.msra.mxu0 0
        %1658 = vmatprep.mubr.bf16.mxu0 0
        %1659 = vmatmul.mubr.bf16.gmra.mrb[0].mxu0 %v1621
        %v1660 = vpop.f32.mrb[0].mxu0
        %v1661 = vadd.f32 0.0, %v1660
        %v1662 = vpop.f32.mrb[0].mxu0
        %v1663 = vpop.f32.mrb[0].mxu0
        %v1664 = vpop.f32.mrb[0].mxu0
        %1665 = vdwg.mxu0
        %v1666 = vpack.c.bf16 %v1523, %v1523
        %v1668 = vunpack.c.l.s4 1983009808
        %v1669 = vunpack.c.0.s8 %v1668
        %v1670 = vlaneseq
        %v1671 = vshrl.u32 %v1670, 7
        %v1672 = vsub.s32 %v1669, %v1671
        %v1673 = vrot.slane %v1666, %v1672
        %v1674 = vpack.c.bf16 %v1615, %v1615
        %v1676 = vunpack.c.l.s4 1983009808
        %v1677 = vunpack.c.0.s8 %v1676
        %v1678 = vlaneseq
        %v1679 = vshrl.u32 %v1678, 7
        %v1680 = vsub.s32 %v1677, %v1679
        %v1681 = vrot.slane %v1674, %v1680
        %v1682 = vcombine.low %v1673, %v1681
        %v1683 = vcombine.high %v1673, %v1681
        %v1685 = vunpack.c.l.s4 1934713408
        %v1686 = vunpack.c.0.s8 %v1685
        %v1687 = vlaneseq
        %v1688 = vshrl.u32 %v1687, 7
        %v1689 = vsub.s32 %v1686, %v1688
        %v1690 = vrot.slane %v1682, %v1689
        %v1692 = vunpack.c.l.s4 1934713408
        %v1693 = vunpack.c.0.s8 %v1692
        %v1694 = vlaneseq
        %v1695 = vshrl.u32 %v1694, 7
        %v1696 = vsub.s32 %v1693, %v1695
        %v1697 = vrot.slane %v1683, %v1696
        %v1698 = vcombine.high %v1690, 0
        %v1699 = vcombine.high %v1697, 0
        %v1700 = vpack.c.bf16 %v1569, %v1569
        %v1702 = vunpack.c.l.s4 1983009808
        %v1703 = vunpack.c.0.s8 %v1702
        %v1704 = vlaneseq
        %v1705 = vshrl.u32 %v1704, 7
        %v1706 = vsub.s32 %v1703, %v1705
        %v1707 = vrot.slane %v1700, %v1706
        %v1708 = vpack.c.bf16 %v1661, %v1661
        %v1710 = vunpack.c.l.s4 1983009808
        %v1711 = vunpack.c.0.s8 %v1710
        %v1712 = vlaneseq
        %v1713 = vshrl.u32 %v1712, 7
        %v1714 = vsub.s32 %v1711, %v1713
        %v1715 = vrot.slane %v1708, %v1714
        %v1716 = vcombine.low %v1707, %v1715
        %v1717 = vcombine.high %v1707, %v1715
        %v1719 = vunpack.c.l.s4 1934713408
        %v1720 = vunpack.c.0.s8 %v1719
        %v1721 = vlaneseq
        %v1722 = vshrl.u32 %v1721, 7
        %v1723 = vsub.s32 %v1720, %v1722
        %v1724 = vrot.slane %v1716, %v1723
        %v1726 = vunpack.c.l.s4 1934713408
        %v1727 = vunpack.c.0.s8 %v1726
        %v1728 = vlaneseq
        %v1729 = vshrl.u32 %v1728, 7
        %v1730 = vsub.s32 %v1727, %v1729
        %v1731 = vrot.slane %v1717, %v1730
        %v1732 = vcombine.high %v1724, 0
        %v1733 = vcombine.high %v1731, 0
        %v1736 = vpack.i.b16 %v1724, %v1690
        %v1738 = vshrl.u32 %v1690, 16
        %v1739 = vshrl.u32 %v1724, 16
        %v1740 = vpack.i.b16 %v1739, %v1738
        %v1744 = vpack.i.b16 %v1732, %v1698
        %v1746 = vshrl.u32 %v1698, 16
        %v1747 = vshrl.u32 %v1732, 16
        %v1748 = vpack.i.b16 %v1747, %v1746
        %v1752 = vpack.i.b16 %v1731, %v1697
        %v1754 = vshrl.u32 %v1697, 16
        %v1755 = vshrl.u32 %v1731, 16
        %v1756 = vpack.i.b16 %v1755, %v1754
        %v1760 = vpack.i.b16 %v1733, %v1699
        %v1762 = vshrl.u32 %v1699, 16
        %v1763 = vshrl.u32 %v1733, 16
        %v1764 = vpack.i.b16 %v1763, %v1762
        %v1766 = vcombine.low %v1736, %v1752
        %v1768 = vunpack.c.l.s4 1983009808
        %v1769 = vunpack.c.0.s8 %v1768
        %v1770 = vlaneseq
        %v1771 = vshrl.u32 %v1770, 7
        %v1772 = vsub.s32 %v1769, %v1771
        %v1773 = vrot.slane %v1766, %v1772
        %v1774 = vcombine.low %v1744, %v1760
        %v1776 = vunpack.c.l.s4 1983009808
        %v1777 = vunpack.c.0.s8 %v1776
        %v1778 = vlaneseq
        %v1779 = vshrl.u32 %v1778, 7
        %v1780 = vsub.s32 %v1777, %v1779
        %v1781 = vrot.slane %v1774, %v1780
        %v1782 = vcombine.low %v1773, %v1781
        %v1784 = vunpack.c.l.s4 1934713408
        %v1785 = vunpack.c.0.s8 %v1784
        %v1786 = vlaneseq
        %v1787 = vshrl.u32 %v1786, 7
        %v1788 = vsub.s32 %v1785, %v1787
        %v1789 = vrot.slane %v1782, %v1788
        %v1790 = vcombine.high %v1789, 0
        %v1791 = vcombine.low %v1740, %v1756
        %v1793 = vunpack.c.l.s4 1983009808
        %v1794 = vunpack.c.0.s8 %v1793
        %v1795 = vlaneseq
        %v1796 = vshrl.u32 %v1795, 7
        %v1797 = vsub.s32 %v1794, %v1796
        %v1798 = vrot.slane %v1791, %v1797
        %v1799 = vcombine.low %v1748, %v1764
        %v1801 = vunpack.c.l.s4 1983009808
        %v1802 = vunpack.c.0.s8 %v1801
        %v1803 = vlaneseq
        %v1804 = vshrl.u32 %v1803, 7
        %v1805 = vsub.s32 %v1802, %v1804
        %v1806 = vrot.slane %v1799, %v1805
        %v1807 = vcombine.low %v1798, %v1806
        %v1809 = vunpack.c.l.s4 1934713408
        %v1810 = vunpack.c.0.s8 %v1809
        %v1811 = vlaneseq
        %v1812 = vshrl.u32 %v1811, 7
        %v1813 = vsub.s32 %v1810, %v1812
        %v1814 = vrot.slane %v1807, %v1813
        %v1815 = vcombine.high %v1814, 0
        %v1818 = vpack.i.b16 %v1814, %v1789
        %v1819 = vshrl.u32 %v1789, 16
        %v1820 = vshrl.u32 %v1814, 16
        %v1821 = vpack.i.b16 %v1820, %v1819
        %v1824 = vpack.i.b16 %v1815, %v1790
        %v1825 = vshrl.u32 %v1790, 16
        %v1826 = vshrl.u32 %v1815, 16
        %v1827 = vpack.i.b16 %v1826, %v1825
        %1828 = vrot.lane.b32.xlu0 %v1821, 32
        %v1829 = vpop.permute.xlu0 %1828
        %1830 = vrot.lane.b32.xlu0 %v1824, 64
        %v1831 = vpop.permute.xlu0 %1830
        %1832 = vrot.lane.b32.xlu0 %v1827, 96
        %v1833 = vpop.permute.xlu0 %1832
        %v1836 = vsel %vm1236, %v1818, %v1829
        %vm1837 = vcmask 523264
        %v1839 = vsel %vm1837, %v1836, %v1831
        %vm1840 = vcmask 785408
        %v1842 = vsel %vm1840, %v1839, %v1833
        %v1844 = vld [vmem:[#allocation5] sm:$0xf]
        %v1845 = vld [vmem:[#allocation5 + $0x4] sm:$0xf]
        %v1846 = vld [vmem:[#allocation5 + $0x8] sm:$0xf]
        %v1847 = vld [vmem:[#allocation5 + $0xc] sm:$0xf]
        %v1848 = vld [vmem:[#allocation5 + $0x10] sm:$0xf]
        %v1849 = vld [vmem:[#allocation5 + $0x14] sm:$0xf]
        %v1850 = vld [vmem:[#allocation5 + $0x18] sm:$0xf]
        %v1851 = vld [vmem:[#allocation5 + $0x1c] sm:$0xf]
        %v1852 = vld [vmem:[#allocation5 + $0x20] sm:$0xf]
        %v1853 = vld [vmem:[#allocation5 + $0x24] sm:$0xf]
        %v1854 = vld [vmem:[#allocation5 + $0x28] sm:$0xf]
        %v1855 = vld [vmem:[#allocation5 + $0x2c] sm:$0xf]
        %v1856 = vld [vmem:[#allocation5 + $0x30] sm:$0xf]
        %v1857 = vld [vmem:[#allocation5 + $0x34] sm:$0xf]
        %v1858 = vld [vmem:[#allocation5 + $0x38] sm:$0xf]
        %v1859 = vld [vmem:[#allocation5 + $0x3c] sm:$0xf]
        %v1876 = vunpack.c.l.b16 %v1844
        %v1877 = vunpack.c.l.b16 %v1845
        %v1878 = vunpack.c.l.b16 %v1846
        %v1879 = vunpack.c.l.b16 %v1847
        %v1880 = vunpack.c.l.b16 %v1848
        %v1881 = vunpack.c.l.b16 %v1849
        %v1882 = vunpack.c.l.b16 %v1850
        %v1883 = vunpack.c.l.b16 %v1851
        %v1884 = vunpack.c.l.b16 %v1852
        %v1885 = vunpack.c.l.b16 %v1853
        %v1886 = vunpack.c.l.b16 %v1854
        %v1887 = vunpack.c.l.b16 %v1855
        %v1888 = vunpack.c.l.b16 %v1856
        %v1889 = vunpack.c.l.b16 %v1857
        %v1890 = vunpack.c.l.b16 %v1858
        %v1891 = vunpack.c.l.b16 %v1859
        %v1892 = vpack.c.b16 %v1877, %v1876
        %v1893 = vpack.c.b16 %v1879, %v1878
        %v1894 = vpack.c.b16 %v1881, %v1880
        %v1895 = vpack.c.b16 %v1883, %v1882
        %v1896 = vpack.c.b16 %v1885, %v1884
        %v1897 = vpack.c.b16 %v1887, %v1886
        %v1898 = vpack.c.b16 %v1889, %v1888
        %v1899 = vpack.c.b16 %v1891, %v1890
        %1908 = vmatprep.subr.bf16.mxu0 0
        %1909 = vmatpush1.bf16.msra.mxu0 %v1892
        %1910 = vmatprep.subr.bf16.mxu0 0
        %1911 = vmatpush1.bf16.msra.mxu0 %v1893
        %1912 = vmatprep.subr.bf16.mxu0 0
        %1913 = vmatpush1.bf16.msra.mxu0 %v1894
        %1914 = vmatprep.subr.bf16.mxu0 0
        %1915 = vmatpush1.bf16.msra.mxu0 %v1895
        %1916 = vmatprep.subr.bf16.mxu0 0
        %1917 = vmatpush1.bf16.msra.mxu0 %v1896
        %1918 = vmatprep.subr.bf16.mxu0 0
        %1919 = vmatpush1.bf16.msra.mxu0 %v1897
        %1920 = vmatprep.subr.bf16.mxu0 0
        %1921 = vmatpush1.bf16.msra.mxu0 %v1898
        %1922 = vmatprep.subr.bf16.mxu0 0
        %1923 = vmatpush1.bf16.msra.mxu0 %v1899
        %1924 = vmatprep.subr.bf16.mxu0 0
        %1925 = vmatpush1.bf16.msra.mxu0 0
        %1926 = vmatprep.subr.bf16.mxu0 0
        %1927 = vmatpush1.bf16.msra.mxu0 0
        %1928 = vmatprep.subr.bf16.mxu0 0
        %1929 = vmatpush1.bf16.msra.mxu0 0
        %1930 = vmatprep.subr.bf16.mxu0 0
        %1931 = vmatpush1.bf16.msra.mxu0 0
        %1932 = vmatprep.subr.bf16.mxu0 0
        %1933 = vmatpush1.bf16.msra.mxu0 0
        %1934 = vmatprep.subr.bf16.mxu0 0
        %1935 = vmatpush1.bf16.msra.mxu0 0
        %1936 = vmatprep.subr.bf16.mxu0 0
        %1937 = vmatpush1.bf16.msra.mxu0 0
        %1938 = vmatprep.subr.bf16.mxu0 0
        %1939 = vmatpush1.bf16.msra.mxu0 0
        %1940 = vmatprep.mubr.bf16.mxu0 0
        %1941 = vmatmul.mubr.bf16.gmra.mrb[0].mxu0 %v1842
        %v1942 = vpop.f32.mrb[0].mxu0
        %v1943 = vadd.f32 0.0, %v1942
        %v1944 = vpop.f32.mrb[0].mxu0
        %v1945 = vpop.f32.mrb[0].mxu0
        %v1946 = vpop.f32.mrb[0].mxu0
        %1947 = vdwg.mxu0
        %v1948 = vadd.f32 %v486, %v1943
        %v1949 = vld [vmem:[%s4] sm:$0x1]
        %v1950 = vld [vmem:[%s5] sm:$0x1]
        %1951 = vadd.xlane.f32.xlu0 %v1948
        %v1952 = vpop.xlane.xlu0 %1951
        %v1953 = vrcp.pop 128.0
        %v1954 = vmul.f32 %v1952, %v1953
        %v1955 = vsub.f32 %v1948, %v1954
        %v1956 = vmul.f32 %v1955, %v1955
        %1957 = vadd.xlane.f32.xlu0 %v1956
        %v1958 = vpop.xlane.xlu0 %1957
        %v1959 = vmul.f32 %v1958, %v1953
        %v1960 = vadd.f32 %v1959, 1e-05
        %v1961 = vrsqrt.pop %v1960
        %v1962 = vmul.f32 %v1955, %v1961
        %v1964 = vlaneseq
        %v1965 = vshrl.u32 %v1964, 7
        %v1966 = vsub.s32 0, %v1965
        %v1967 = vrot.slane %v1949, %v1966
        %v1969 = vmul.f32 %v1962, %v1967
        %v1971 = vlaneseq
        %v1972 = vshrl.u32 %v1971, 7
        %v1973 = vsub.s32 0, %v1972
        %v1974 = vrot.slane %v1950, %v1973
        %v1976 = vadd.f32 %v1969, %v1974
        %v1977 = vpack.c.bf16 %v1976, %v1976
        %v1978 = vld [vmem:[#allocation7] sm:$0xff]
        %v1979 = vld [vmem:[#allocation7 + $0x8] sm:$0xff]
        %v1980 = vld [vmem:[#allocation7 + $0x10] sm:$0xff]
        %v1981 = vld [vmem:[#allocation7 + $0x18] sm:$0xff]
        %v1982 = vld [vmem:[#allocation7 + $0x20] sm:$0xff]
        %v1983 = vld [vmem:[#allocation7 + $0x28] sm:$0xff]
        %v1984 = vld [vmem:[#allocation7 + $0x30] sm:$0xff]
        %v1985 = vld [vmem:[#allocation7 + $0x38] sm:$0xff]
        %v1986 = vld [vmem:[#allocation7 + $0x40] sm:$0xff]
        %v1987 = vld [vmem:[#allocation7 + $0x48] sm:$0xff]
        %v1988 = vld [vmem:[#allocation7 + $0x50] sm:$0xff]
        %v1989 = vld [vmem:[#allocation7 + $0x58] sm:$0xff]
        %v1990 = vld [vmem:[#allocation7 + $0x60] sm:$0xff]
        %v1991 = vld [vmem:[#allocation7 + $0x68] sm:$0xff]
        %v1992 = vld [vmem:[#allocation7 + $0x70] sm:$0xff]
        %v1993 = vld [vmem:[#allocation7 + $0x78] sm:$0xff]
        %v1994 = vld [vmem:[%s7] sm:$0x3]
        %v1996 = vlaneseq
        %v1997 = vshrl.u32 %v1996, 7
        %v1998 = vsub.s32 0, %v1997
        %v1999 = vrot.slane %v1994, %v1998
        %v2000 = vlaneseq
        %v2001 = vshrl.u32 %v2000, 7
        %v2002 = vsub.s32 1, %v2001
        %v2003 = vrot.slane %v1994, %v2002
        %v2022 = vunpack.c.l.b16 %v1978
        %v2023 = vunpack.c.h.b16 %v1978
        %v2024 = vunpack.c.l.b16 %v1979
        %v2025 = vunpack.c.h.b16 %v1979
        %v2026 = vunpack.c.l.b16 %v1980
        %v2027 = vunpack.c.h.b16 %v1980
        %v2028 = vunpack.c.l.b16 %v1981
        %v2029 = vunpack.c.h.b16 %v1981
        %v2030 = vunpack.c.l.b16 %v1982
        %v2031 = vunpack.c.h.b16 %v1982
        %v2032 = vunpack.c.l.b16 %v1983
        %v2033 = vunpack.c.h.b16 %v1983
        %v2034 = vunpack.c.l.b16 %v1984
        %v2035 = vunpack.c.h.b16 %v1984
        %v2036 = vunpack.c.l.b16 %v1985
        %v2037 = vunpack.c.h.b16 %v1985
        %v2038 = vunpack.c.l.b16 %v1986
        %v2039 = vunpack.c.h.b16 %v1986
        %v2040 = vunpack.c.l.b16 %v1987
        %v2041 = vunpack.c.h.b16 %v1987
        %v2042 = vunpack.c.l.b16 %v1988
        %v2043 = vunpack.c.h.b16 %v1988
        %v2044 = vunpack.c.l.b16 %v1989
        %v2045 = vunpack.c.h.b16 %v1989
        %v2046 = vunpack.c.l.b16 %v1990
        %v2047 = vunpack.c.h.b16 %v1990
        %v2048 = vunpack.c.l.b16 %v1991
        %v2049 = vunpack.c.h.b16 %v1991
        %v2050 = vunpack.c.l.b16 %v1992
        %v2051 = vunpack.c.h.b16 %v1992
        %v2052 = vunpack.c.l.b16 %v1993
        %v2053 = vunpack.c.h.b16 %v1993
        %v2054 = vpack.c.b16 %v2024, %v2022
        %v2055 = vpack.c.b16 %v2025, %v2023
        %v2056 = vpack.c.b16 %v2028, %v2026
        %v2057 = vpack.c.b16 %v2029, %v2027
        %v2058 = vpack.c.b16 %v2032, %v2030
        %v2059 = vpack.c.b16 %v2033, %v2031
        %v2060 = vpack.c.b16 %v2036, %v2034
        %v2061 = vpack.c.b16 %v2037, %v2035
        %v2062 = vpack.c.b16 %v2040, %v2038
        %v2063 = vpack.c.b16 %v2041, %v2039
        %v2064 = vpack.c.b16 %v2044, %v2042
        %v2065 = vpack.c.b16 %v2045, %v2043
        %v2066 = vpack.c.b16 %v2048, %v2046
        %v2067 = vpack.c.b16 %v2049, %v2047
        %v2068 = vpack.c.b16 %v2052, %v2050
        %v2069 = vpack.c.b16 %v2053, %v2051
        %2086 = vmatprep.subr.bf16.mxu0 %v2055
        %2087 = vmatpush1.bf16.msra.mxu0 %v2054
        %2088 = vmatprep.subr.bf16.mxu0 %v2057
        %2089 = vmatpush1.bf16.msra.mxu0 %v2056
        %2090 = vmatprep.subr.bf16.mxu0 %v2059
        %2091 = vmatpush1.bf16.msra.mxu0 %v2058
        %2092 = vmatprep.subr.bf16.mxu0 %v2061
        %2093 = vmatpush1.bf16.msra.mxu0 %v2060
        %2094 = vmatprep.subr.bf16.mxu0 %v2063
        %2095 = vmatpush1.bf16.msra.mxu0 %v2062
        %2096 = vmatprep.subr.bf16.mxu0 %v2065
        %2097 = vmatpush1.bf16.msra.mxu0 %v2064
        %2098 = vmatprep.subr.bf16.mxu0 %v2067
        %2099 = vmatpush1.bf16.msra.mxu0 %v2066
        %2100 = vmatprep.subr.bf16.mxu0 %v2069
        %2101 = vmatpush1.bf16.msra.mxu0 %v2068
        %2102 = vmatprep.subr.bf16.mxu0 0
        %2103 = vmatpush1.bf16.msra.mxu0 0
        %2104 = vmatprep.subr.bf16.mxu0 0
        %2105 = vmatpush1.bf16.msra.mxu0 0
        %2106 = vmatprep.subr.bf16.mxu0 0
        %2107 = vmatpush1.bf16.msra.mxu0 0
        %2108 = vmatprep.subr.bf16.mxu0 0
        %2109 = vmatpush1.bf16.msra.mxu0 0
        %2110 = vmatprep.subr.bf16.mxu0 0
        %2111 = vmatpush1.bf16.msra.mxu0 0
        %2112 = vmatprep.subr.bf16.mxu0 0
        %2113 = vmatpush1.bf16.msra.mxu0 0
        %2114 = vmatprep.subr.bf16.mxu0 0
        %2115 = vmatpush1.bf16.msra.mxu0 0
        %2116 = vmatprep.subr.bf16.mxu0 0
        %2117 = vmatpush1.bf16.msra.mxu0 0
        %2118 = vmatprep.mubr.bf16.mxu0 0
        %2119 = vmatmul.mubr.bf16.gmra.mrb[0].mxu0 %v1977
        %v2120 = vpop.f32.mrb[0].mxu0
        %v2121 = vadd.f32 %v1999, %v2120
        %v2122 = vpop.f32.mrb[0].mxu0
        %v2123 = vadd.f32 %v2003, %v2122
        %v2124 = vpop.f32.mrb[0].mxu0
        %v2125 = vpop.f32.mrb[0].mxu0
        %2126 = vdwg.mxu0
        %v2127 = vmax.f32 %v2121, 0.0
        %v2128 = vmax.f32 %v2123, 0.0
        %v2129 = vpack.c.bf16 %v2127, %v2127
        %v2130 = vpack.c.bf16 %v2128, %v2128
        %v2131 = vld [vmem:[#allocation8] sm:$0xf]
        %v2132 = vld [vmem:[#allocation8 + $0x4] sm:$0xf]
        %v2133 = vld [vmem:[#allocation8 + $0x8] sm:$0xf]
        %v2134 = vld [vmem:[#allocation8 + $0xc] sm:$0xf]
        %v2135 = vld [vmem:[#allocation8 + $0x10] sm:$0xf]
        %v2136 = vld [vmem:[#allocation8 + $0x14] sm:$0xf]
        %v2137 = vld [vmem:[#allocation8 + $0x18] sm:$0xf]
        %v2138 = vld [vmem:[#allocation8 + $0x1c] sm:$0xf]
        %v2139 = vld [vmem:[#allocation8 + $0x20] sm:$0xf]
        %v2140 = vld [vmem:[#allocation8 + $0x24] sm:$0xf]
        %v2141 = vld [vmem:[#allocation8 + $0x28] sm:$0xf]
        %v2142 = vld [vmem:[#allocation8 + $0x2c] sm:$0xf]
        %v2143 = vld [vmem:[#allocation8 + $0x30] sm:$0xf]
        %v2144 = vld [vmem:[#allocation8 + $0x34] sm:$0xf]
        %v2145 = vld [vmem:[#allocation8 + $0x38] sm:$0xf]
        %v2146 = vld [vmem:[#allocation8 + $0x3c] sm:$0xf]
        %v2147 = vld [vmem:[#allocation8 + $0x40] sm:$0xf]
        %v2148 = vld [vmem:[#allocation8 + $0x44] sm:$0xf]
        %v2149 = vld [vmem:[#allocation8 + $0x48] sm:$0xf]
        %v2150 = vld [vmem:[#allocation8 + $0x4c] sm:$0xf]
        %v2151 = vld [vmem:[#allocation8 + $0x50] sm:$0xf]
        %v2152 = vld [vmem:[#allocation8 + $0x54] sm:$0xf]
        %v2153 = vld [vmem:[#allocation8 + $0x58] sm:$0xf]
        %v2154 = vld [vmem:[#allocation8 + $0x5c] sm:$0xf]
        %v2155 = vld [vmem:[#allocation8 + $0x60] sm:$0xf]
        %v2156 = vld [vmem:[#allocation8 + $0x64] sm:$0xf]
        %v2157 = vld [vmem:[#allocation8 + $0x68] sm:$0xf]
        %v2158 = vld [vmem:[#allocation8 + $0x6c] sm:$0xf]
        %v2159 = vld [vmem:[#allocation8 + $0x70] sm:$0xf]
        %v2160 = vld [vmem:[#allocation8 + $0x74] sm:$0xf]
        %v2161 = vld [vmem:[#allocation8 + $0x78] sm:$0xf]
        %v2162 = vld [vmem:[#allocation8 + $0x7c] sm:$0xf]
        %v2163 = vld [vmem:[%s9] sm:$0x1]
        %v2165 = vlaneseq
        %v2166 = vshrl.u32 %v2165, 7
        %v2167 = vsub.s32 0, %v2166
        %v2168 = vrot.slane %v2163, %v2167
        %v2202 = vunpack.c.l.b16 %v2131
        %v2203 = vunpack.c.l.b16 %v2132
        %v2204 = vunpack.c.l.b16 %v2133
        %v2205 = vunpack.c.l.b16 %v2134
        %v2206 = vunpack.c.l.b16 %v2135
        %v2207 = vunpack.c.l.b16 %v2136
        %v2208 = vunpack.c.l.b16 %v2137
        %v2209 = vunpack.c.l.b16 %v2138
        %v2210 = vunpack.c.l.b16 %v2139
        %v2211 = vunpack.c.l.b16 %v2140
        %v2212 = vunpack.c.l.b16 %v2141
        %v2213 = vunpack.c.l.b16 %v2142
        %v2214 = vunpack.c.l.b16 %v2143
        %v2215 = vunpack.c.l.b16 %v2144
        %v2216 = vunpack.c.l.b16 %v2145
        %v2217 = vunpack.c.l.b16 %v2146
        %v2218 = vunpack.c.l.b16 %v2147
        %v2219 = vunpack.c.l.b16 %v2148
        %v2220 = vunpack.c.l.b16 %v2149
        %v2221 = vunpack.c.l.b16 %v2150
        %v2222 = vunpack.c.l.b16 %v2151
        %v2223 = vunpack.c.l.b16 %v2152
        %v2224 = vunpack.c.l.b16 %v2153
        %v2225 = vunpack.c.l.b16 %v2154
        %v2226 = vunpack.c.l.b16 %v2155
        %v2227 = vunpack.c.l.b16 %v2156
        %v2228 = vunpack.c.l.b16 %v2157
        %v2229 = vunpack.c.l.b16 %v2158
        %v2230 = vunpack.c.l.b16 %v2159
        %v2231 = vunpack.c.l.b16 %v2160
        %v2232 = vunpack.c.l.b16 %v2161
        %v2233 = vunpack.c.l.b16 %v2162
        %v2234 = vpack.c.b16 %v2203, %v2202
        %v2235 = vpack.c.b16 %v2205, %v2204
        %v2236 = vpack.c.b16 %v2207, %v2206
        %v2237 = vpack.c.b16 %v2209, %v2208
        %v2238 = vpack.c.b16 %v2211, %v2210
        %v2239 = vpack.c.b16 %v2213, %v2212
        %v2240 = vpack.c.b16 %v2215, %v2214
        %v2241 = vpack.c.b16 %v2217, %v2216
        %v2242 = vpack.c.b16 %v2219, %v2218
        %v2243 = vpack.c.b16 %v2221, %v2220
        %v2244 = vpack.c.b16 %v2223, %v2222
        %v2245 = vpack.c.b16 %v2225, %v2224
        %v2246 = vpack.c.b16 %v2227, %v2226
        %v2247 = vpack.c.b16 %v2229, %v2228
        %v2248 = vpack.c.b16 %v2231, %v2230
        %v2249 = vpack.c.b16 %v2233, %v2232
        %2266 = vmatprep.subr.bf16.mxu0 0
        %2267 = vmatpush1.bf16.msra.mxu0 %v2234
        %2268 = vmatprep.subr.bf16.mxu0 0
        %2269 = vmatpush1.bf16.msra.mxu0 %v2235
        %2270 = vmatprep.subr.bf16.mxu0 0
        %2271 = vmatpush1.bf16.msra.mxu0 %v2236
        %2272 = vmatprep.subr.bf16.mxu0 0
        %2273 = vmatpush1.bf16.msra.mxu0 %v2237
        %2274 = vmatprep.subr.bf16.mxu0 0
        %2275 = vmatpush1.bf16.msra.mxu0 %v2238
        %2276 = vmatprep.subr.bf16.mxu0 0
        %2277 = vmatpush1.bf16.msra.mxu0 %v2239
        %2278 = vmatprep.subr.bf16.mxu0 0
        %2279 = vmatpush1.bf16.msra.mxu0 %v2240
        %2280 = vmatprep.subr.bf16.mxu0 0
        %2281 = vmatpush1.bf16.msra.mxu0 %v2241
        %2282 = vmatprep.subr.bf16.mxu0 0
        %2283 = vmatpush1.bf16.msra.mxu0 %v2242
        %2284 = vmatprep.subr.bf16.mxu0 0
        %2285 = vmatpush1.bf16.msra.mxu0 %v2243
        %2286 = vmatprep.subr.bf16.mxu0 0
        %2287 = vmatpush1.bf16.msra.mxu0 %v2244
        %2288 = vmatprep.subr.bf16.mxu0 0
        %2289 = vmatpush1.bf16.msra.mxu0 %v2245
        %2290 = vmatprep.subr.bf16.mxu0 0
        %2291 = vmatpush1.bf16.msra.mxu0 %v2246
        %2292 = vmatprep.subr.bf16.mxu0 0
        %2293 = vmatpush1.bf16.msra.mxu0 %v2247
        %2294 = vmatprep.subr.bf16.mxu0 0
        %2295 = vmatpush1.bf16.msra.mxu0 %v2248
        %2296 = vmatprep.subr.bf16.mxu0 0
        %2297 = vmatpush1.bf16.msra.mxu0 %v2249
        %2298 = vmatprep.mubr.bf16.mxu0 %v2130
        %2299 = vmatmul.mubr.bf16.gmra.mrb[0].mxu0 %v2129
        %v2300 = vpop.f32.mrb[0].mxu0
        %v2301 = vadd.f32 %v2168, %v2300
        %v2302 = vpop.f32.mrb[0].mxu0
        %v2303 = vpop.f32.mrb[0].mxu0
        %v2304 = vpop.f32.mrb[0].mxu0
        %2305 = vdwg.mxu0
        %v2306 = vadd.f32 %v1976, %v2301
        %v2307 = vld [vmem:[%s10] sm:$0x1]
        %v2308 = vld [vmem:[%s11] sm:$0x1]
        %2309 = vadd.xlane.f32.xlu0 %v2306
        %v2310 = vpop.xlane.xlu0 %2309
        %v2311 = vmul.f32 %v2310, %v1953
        %v2312 = vsub.f32 %v2306, %v2311
        %v2313 = vmul.f32 %v2312, %v2312
        %2314 = vadd.xlane.f32.xlu0 %v2313
        %v2315 = vpop.xlane.xlu0 %2314
        %v2316 = vmul.f32 %v2315, %v1953
        %v2317 = vadd.f32 %v2316, 1e-05
        %v2318 = vrsqrt.pop %v2317
        %v2319 = vmul.f32 %v2312, %v2318
        %v2321 = vlaneseq
        %v2322 = vshrl.u32 %v2321, 7
        %v2323 = vsub.s32 0, %v2322
        %v2324 = vrot.slane %v2307, %v2323
        %v2326 = vmul.f32 %v2319, %v2324
        %v2328 = vlaneseq
        %v2329 = vshrl.u32 %v2328, 7
        %v2330 = vsub.s32 0, %v2329
        %v2331 = vrot.slane %v2308, %v2330
        %v2333 = vadd.f32 %v2326, %v2331
        %2334 = vst [vmem:[%s476] sm:$0xff] %v2333
        %s2335 = sand.u32 %s299, 1
        %s2336 = scalar_lea.sflag [#allocation4], %s2335
        %s2337 = sand.u32 %s299, 1
        %s2338 = smul.addr %s2337, 8
        %s2339 = scalar_lea.vmem [#allocation10], %s2338
        // Predicated region
        $region85: #{tpu_custom_call.1} parent=67 // pred_check
          %p2340 = pneg %p309
        $region86: #{tpu_custom_call.1} parent=67 // pred_check_branch
          %2342 = sbr.rel (%p2340) target = $region88
        $region87: #{tpu_custom_call.1} parent=67 // pred_region
          %s2344 = ssub.s32 128, 128
          %2345 = vsyncadd %s2336, %s2344
          %s2346 = smul.addr %s29, 128
          %s2347 = scalar_lea.hbm %s12, %s2346
          %s2349 = sshll.u32 %s2339, 4
          %s2350 = int_to_ptr.vmem [resolvable:$true] %s2349
          %2352 = dma.vmem_to_hbm [thread:$0]  %s2350, 128, %s2347, %s2336
        $region88: #{tpu_custom_call.1} parent=67 // pred_fallthru
          _
      $region68: #{tpu_custom_call.1} parent=5 // pred_fallthru
        _
      %p2353 = scmp.le.s32.totalorder 2, %s24
      // Predicated region
      $region89: #{tpu_custom_call.1} parent=5 // pred_check
        %p2354 = pneg %p2353
      $region90: #{tpu_custom_call.1} parent=5 // pred_check_branch
        %2356 = sbr.rel (%p2354) target = $region92
      $region91: #{tpu_custom_call.1} parent=5 // pred_region
        %s2357 = ssub.s32 %s24, 2
        // Predicated region
        $region93: #{tpu_custom_call.1} parent=91 // pred_check
          %p2358 = pneg %p315
        $region94: #{tpu_custom_call.1} parent=91 // pred_check_branch
          %2360 = sbr.rel (%p2358) target = $region96
        $region95: #{tpu_custom_call.1} parent=91 // pred_region
          %s2361 = sand.u32 %s300, 1
          %s2362 = scalar_lea.sflag [#allocation4], %s2361
          %s2363 = sand.u32 %s300, 1
          %s2364 = smul.addr %s2363, 8
          %s2365 = scalar_lea.vmem [#allocation10], %s2364
          %2366 = dma.done %s2362, 128
        $region96: #{tpu_custom_call.1} parent=91 // pred_fallthru
          _
      $region92: #{tpu_custom_call.1} parent=5 // pred_fallthru
        _
    $region6: #{tpu_custom_call.1} parent=1 // loop_footer
      %s28 = sadd.s32 1, %s24
    $region7: #{tpu_custom_call.1} parent=1 // loop_footer_branch
      %23 = sbr.rel target = $region3
    $region8: #{tpu_custom_call.1} parent=1 // loop_exit
      _
    %2367 = vsyncpa [#allocation3], 1
    %s2368 = scalar_lea.sflag [#allocation3], 1
    %2369 = vsyncpa %s2368, 1
    %2370 = vsyncpa [#allocation6], 1
    %2371 = vsyncpa [#allocation9], 1
    %2372 = vsyncpa [#allocation4], 1
    %s2373 = scalar_lea.sflag [#allocation4], 1
    %2374 = vsyncpa %s2373, 1

// kernel: tpu_custom_call.1
$region0: #{tpu_custom_call.1}
  #allocation0 [shape = 'u32[]', space=smem, size = 0x4, offset = 0x4, fixed_abs, tag = 'smem constant byte address 0x4 - core index']
  #allocation1 [shape = 'u32[144,128]{1,0:T(1,128)}', space=vmem, size = 0x12000, scoped, tag = 'internal scratch']
  %s0 = inlined_call_operand.vmem [shape: f32[2,8,128], index: 0, kind: input, shape index: {}]
  %s1 = inlined_call_operand.vmem [shape: s32[2,8,1], index: 1, kind: input, shape index: {}]
  %s2 = inlined_call_operand.hbm [shape: bf16[128,384], index: 2, kind: input, shape index: {}]
  %s3 = inlined_call_operand.hbm [shape: bf16[128,128], index: 3, kind: input, shape index: {}]
  %s4 = inlined_call_operand.vmem [shape: f32[1,128], index: 4, kind: input, shape index: {}]
  %s5 = inlined_call_operand.vmem [shape: f32[1,128], index: 5, kind: input, shape index: {}]
  %s6 = inlined_call_operand.hbm [shape: bf16[128,256], index: 6, kind: input, shape index: {}]
  %s7 = inlined_call_operand.vmem [shape: f32[1,256], index: 7, kind: input, shape index: {}]
  %s8 = inlined_call_operand.hbm [shape: bf16[256,128], index: 8, kind: input, shape index: {}]
  %s9 = inlined_call_operand.vmem [shape: f32[1,128], index: 9, kind: input, shape index: {}]
  %s10 = inlined_call_operand.vmem [shape: f32[1,128], index: 10, kind: input, shape index: {}]
  %s11 = inlined_call_operand.vmem [shape: f32[1,128], index: 11, kind: input, shape index: {}]
  %s12 = inlined_call_operand.hbm [shape: f32[2,8,128], index: 12, kind: output, shape index: {}]
  %s13 = sld [smem:[#allocation0]]
  $region97: #{tpu_custom_call.1} parent=0
    _
  %s15 = ssub.s32 1, %s13
  %s16 = scalar_select 0, %s15, %s13
  $region1: #{tpu_custom_call.1} parent=0
    #allocation2 [shape = 'u8[98304]{0}', space=vmem, size = 0x18000, scoped, tag = 'input window, operand 2, single buffered']
    #allocation3 [shape = 's32[2]{0}', space=sflag, size = 0x8, scoped, tag = 'scoped memory for tpu_custom_call.1']
    #allocation4 [shape = 's32[2]{0}', space=sflag, size = 0x8, scoped, tag = 'scoped memory for tpu_custom_call.1']
    #allocation5 [shape = 'u8[32768]{0}', space=vmem, size = 0x8000, scoped, tag = 'input window, operand 3, single buffered']
    #allocation6 [shape = 's32[1]{0}', space=sflag, size = 0x4, scoped, tag = 'scoped memory for tpu_custom_call.1']
    #allocation7 [shape = 'u8[65536]{0}', space=vmem, size = 0x10000, scoped, tag = 'input window, operand 6, single buffered']
    #allocation8 [shape = 'u8[65536]{0}', space=vmem, size = 0x10000, scoped, tag = 'input window, operand 8, single buffered']
    #allocation9 [shape = 's32[1]{0}', space=sflag, size = 0x4, scoped, tag = 'scoped memory for tpu_custom_call.1']
    #allocation10 [shape = 'u8[8192]{0}', space=vmem, size = 0x2000, scoped, tag = 'output window, operand 0']
    %17 = vsyncpa [#allocation3], 0
    %18 = vsyncpa [#allocation6], 0
    %19 = vsyncpa [#allocation9], 0
    %20 = vsyncpa [#allocation4], 0
    %s21 = scalar_lea.sflag [#allocation4], 1
    %22 = vsyncpa %s21, 0
    loop: start=0, step=1, limit=4
    $region2: #{tpu_custom_call.1} parent=1 // loop_pre_header
      _
    $region3: #{tpu_custom_call.1} parent=1 // loop_header
      %s24 = sphi 0, %s28
      %p25 = scmp.ge.s32.totalorder %s24, 4
      %s34 = sphi 0, %s36
      %s37 = sphi 0, %s34
      %s38 = sphi 0, %s37
      %s54 = sphi 0, %s38
      %s60 = sphi 0, %s62
      %s63 = sphi 0, %s60
      %s64 = sphi 0, %s63
      %s80 = sphi 0, %s64
      %s84 = sphi 0, %s84
      %s86 = sphi 0, %s84
      %s87 = sphi 0, %s86
      %s101 = sphi 0, %s87
      %s105 = sphi 0, %s105
      %s107 = sphi 0, %s105
      %s108 = sphi 0, %s107
      %s122 = sphi 0, %s108
      %s126 = sphi 0, %s126
      %s128 = sphi 0, %s126
      %s129 = sphi 0, %s128
      %s143 = sphi 0, %s129
      %s147 = sphi 0, %s147
      %s149 = sphi 0, %s147
      %s150 = sphi 0, %s149
      %s164 = sphi 0, %s150
      %s168 = sphi 0, %s168
      %s170 = sphi 0, %s168
      %s171 = sphi 0, %s170
      %s185 = sphi 0, %s171
      %s189 = sphi 0, %s189
      %s191 = sphi 0, %s189
      %s192 = sphi 0, %s191
      %s206 = sphi 0, %s192
      %s210 = sphi 0, %s210
      %s212 = sphi 0, %s210
      %s213 = sphi 0, %s212
      %s227 = sphi 0, %s213
      %s231 = sphi 0, %s231
      %s233 = sphi 0, %s231
      %s234 = sphi 0, %s233
      %s248 = sphi 0, %s234
      %s252 = sphi 0, %s252
      %s254 = sphi 0, %s252
      %s255 = sphi 0, %s254
      %s269 = sphi 0, %s255
      %s273 = sphi 0, %s273
      %s275 = sphi 0, %s273
      %s276 = sphi 0, %s275
      %s290 = sphi 0, %s276
      %s296 = sphi 0, %s298
      %s299 = sphi 0, %s296
      %s300 = sphi 0, %s299
      %s316 = sphi 0, %s300
    $region4: #{tpu_custom_call.1} parent=1 // loop_header_branch
      %27 = sbr.rel (%p25) target = $region8
    $region5: #{tpu_custom_call.1} parent=1 // loop_body
      %s29 = ssub.s32 %s24, 1
      %s30 = ssub.s32 %s24, 2
      %s31 = sadd.s32 %s24, 1
      %s32 = ssub.s32 %s24, %s31
      %p33 = scmp.eq.s32.totalorder %s32, 0
      %s35 = sadd.s32 %s34, 1
      %s36 = scalar_select %p33, %s34, %s35
      %p39 = pneg %p33
      %p40 = scmp.eq.s32.totalorder %s24, 1
      %p41 = por %p39, %p40
      %p42 = scmp.ne.s32.totalorder %s34, %s37
      %p43 = scmp.eq.s32.totalorder %s24, 0
      %p44 = por %p42, %p43
      %p45 = scmp.ne.s32.totalorder %s34, %s37
      %p46 = scmp.eq.s32.totalorder %s29, 1
      %p47 = por %p45, %p46
      %p48 = scmp.ne.s32.totalorder %s37, %s38
      %p49 = scmp.eq.s32.totalorder %s29, 0
      %p50 = por %p48, %p49
      %p51 = scmp.ne.s32.totalorder %s37, %s38
      %p52 = scmp.eq.s32.totalorder %s30, 1
      %p53 = por %p51, %p52
      %p55 = scmp.ne.s32.totalorder %s38, %s54
      %p56 = scmp.eq.s32.totalorder %s30, 0
      %p57 = por %p55, %p56
      %s58 = ssub.s32 %s24, %s31
      %p59 = scmp.eq.s32.totalorder %s58, 0
      %s61 = sadd.s32 %s60, 1
      %s62 = scalar_select %p59, %s60, %s61
      %p65 = pneg %p59
      %p66 = scmp.eq.s32.totalorder %s24, 1
      %p67 = por %p65, %p66
      %p68 = scmp.ne.s32.totalorder %s60, %s63
      %p69 = scmp.eq.s32.totalorder %s24, 0
      %p70 = por %p68, %p69
      %p71 = scmp.ne.s32.totalorder %s60, %s63
      %p72 = scmp.eq.s32.totalorder %s29, 1
      %p73 = por %p71, %p72
      %p74 = scmp.ne.s32.totalorder %s63, %s64
      %p75 = scmp.eq.s32.totalorder %s29, 0
      %p76 = por %p74, %p75
      %p77 = scmp.ne.s32.totalorder %s63, %s64
      %p78 = scmp.eq.s32.totalorder %s30, 1
      %p79 = por %p77, %p78
      %p81 = scmp.ne.s32.totalorder %s64, %s80
      %p82 = scmp.eq.s32.totalorder %s30, 0
      %p83 = por %p81, %p82
      %s85 = sadd.s32 %s84, 1
      %p88 = scmp.eq.s32.totalorder %s24, 1
      %p89 = scmp.ne.s32.totalorder %s84, %s86
      %p90 = scmp.eq.s32.totalorder %s24, 0
      %p91 = por %p89, %p90
      %p92 = scmp.ne.s32.totalorder %s84, %s86
      %p93 = scmp.eq.s32.totalorder %s29, 1
      %p94 = por %p92, %p93
      %p95 = scmp.ne.s32.totalorder %s86, %s87
      %p96 = scmp.eq.s32.totalorder %s29, 0
      %p97 = por %p95, %p96
      %p98 = scmp.ne.s32.totalorder %s86, %s87
      %p99 = scmp.eq.s32.totalorder %s30, 1
      %p100 = por %p98, %p99
      %p102 = scmp.ne.s32.totalorder %s87, %s101
      %p103 = scmp.eq.s32.totalorder %s30, 0
      %p104 = por %p102, %p103
      %s106 = sadd.s32 %s105, 1
      %p109 = scmp.eq.s32.totalorder %s24, 1
      %p110 = scmp.ne.s32.totalorder %s105, %s107
      %p111 = scmp.eq.s32.totalorder %s24, 0
      %p112 = por %p110, %p111
      %p113 = scmp.ne.s32.totalorder %s105, %s107
      %p114 = scmp.eq.s32.totalorder %s29, 1
      %p115 = por %p113, %p114
      %p116 = scmp.ne.s32.totalorder %s107, %s108
      %p117 = scmp.eq.s32.totalorder %s29, 0
      %p118 = por %p116, %p117
      %p119 = scmp.ne.s32.totalorder %s107, %s108
      %p120 = scmp.eq.s32.totalorder %s30, 1
      %p121 = por %p119, %p120
      %p123 = scmp.ne.s32.totalorder %s108, %s122
      %p124 = scmp.eq.s32.totalorder %s30, 0
      %p125 = por %p123, %p124
      %s127 = sadd.s32 %s126, 1
      %p130 = scmp.eq.s32.totalorder %s24, 1
      %p131 = scmp.ne.s32.totalorder %s126, %s128
      %p132 = scmp.eq.s32.totalorder %s24, 0
      %p133 = por %p131, %p132
      %p134 = scmp.ne.s32.totalorder %s126, %s128
      %p135 = scmp.eq.s32.totalorder %s29, 1
      %p136 = por %p134, %p135
      %p137 = scmp.ne.s32.totalorder %s128, %s129
      %p138 = scmp.eq.s32.totalorder %s29, 0
      %p139 = por %p137, %p138
      %p140 = scmp.ne.s32.totalorder %s128, %s129
      %p141 = scmp.eq.s32.totalorder %s30, 1
      %p142 = por %p140, %p141
      %p144 = scmp.ne.s32.totalorder %s129, %s143
      %p145 = scmp.eq.s32.totalorder %s30, 0
      %p146 = por %p144, %p145
      %s148 = sadd.s32 %s147, 1
      %p151 = scmp.eq.s32.totalorder %s24, 1
      %p152 = scmp.ne.s32.totalorder %s147, %s149
      %p153 = scmp.eq.s32.totalorder %s24, 0
      %p154 = por %p152, %p153
      %p155 = scmp.ne.s32.totalorder %s147, %s149
      %p156 = scmp.eq.s32.totalorder %s29, 1
      %p157 = por %p155, %p156
      %p158 = scmp.ne.s32.totalorder %s149, %s150
      %p159 = scmp.eq.s32.totalorder %s29, 0
      %p160 = por %p158, %p159
      %p161 = scmp.ne.s32.totalorder %s149, %s150
      %p162 = scmp.eq.s32.totalorder %s30, 1
      %p163 = por %p161, %p162
      %p165 = scmp.ne.s32.totalorder %s150, %s164
      %p166 = scmp.eq.s32.totalorder %s30, 0
      %p167 = por %p165, %p166
      %s169 = sadd.s32 %s168, 1
      %p172 = scmp.eq.s32.totalorder %s24, 1
      %p173 = scmp.ne.s32.totalorder %s168, %s170
      %p174 = scmp.eq.s32.totalorder %s24, 0
      %p175 = por %p173, %p174
      %p176 = scmp.ne.s32.totalorder %s168, %s170
      %p177 = scmp.eq.s32.totalorder %s29, 1
      %p178 = por %p176, %p177
      %p179 = scmp.ne.s32.totalorder %s170, %s171
      %p180 = scmp.eq.s32.totalorder %s29, 0
      %p181 = por %p179, %p180
      %p182 = scmp.ne.s32.totalorder %s170, %s171
      %p183 = scmp.eq.s32.totalorder %s30, 1
      %p184 = por %p182, %p183
      %p186 = scmp.ne.s32.totalorder %s171, %s185
      %p187 = scmp.eq.s32.totalorder %s30, 0
      %p188 = por %p186, %p187
      %s190 = sadd.s32 %s189, 1
      %p193 = scmp.eq.s32.totalorder %s24, 1
      %p194 = scmp.ne.s32.totalorder %s189, %s191
      %p195 = scmp.eq.s32.totalorder %s24, 0
      %p196 = por %p194, %p195
      %p197 = scmp.ne.s32.totalorder %s189, %s191
      %p198 = scmp.eq.s32.totalorder %s29, 1
      %p199 = por %p197, %p198
      %p200 = scmp.ne.s32.totalorder %s191, %s192
      %p201 = scmp.eq.s32.totalorder %s29, 0
      %p202 = por %p200, %p201
      %p203 = scmp.ne.s32.totalorder %s191, %s192
      %p204 = scmp.eq.s32.totalorder %s30, 1
      %p205 = por %p203, %p204
      %p207 = scmp.ne.s32.totalorder %s192, %s206
      %p208 = scmp.eq.s32.totalorder %s30, 0
      %p209 = por %p207, %p208
      %s211 = sadd.s32 %s210, 1
      %p214 = scmp.eq.s32.totalorder %s24, 1
      %p215 = scmp.ne.s32.totalorder %s210, %s212
      %p216 = scmp.eq.s32.totalorder %s24, 0
      %p217 = por %p215, %p216
      %p218 = scmp.ne.s32.totalorder %s210, %s212
      %p219 = scmp.eq.s32.totalorder %s29, 1
      %p220 = por %p218, %p219
      %p221 = scmp.ne.s32.totalorder %s212, %s213
      %p222 = scmp.eq.s32.totalorder %s29, 0
      %p223 = por %p221, %p222
      %p224 = scmp.ne.s32.totalorder %s212, %s213
      %p225 = scmp.eq.s32.totalorder %s30, 1
      %p226 = por %p224, %p225
      %p228 = scmp.ne.s32.totalorder %s213, %s227
      %p229 = scmp.eq.s32.totalorder %s30, 0
      %p230 = por %p228, %p229
      %s232 = sadd.s32 %s231, 1
      %p235 = scmp.eq.s32.totalorder %s24, 1
      %p236 = scmp.ne.s32.totalorder %s231, %s233
      %p237 = scmp.eq.s32.totalorder %s24, 0
      %p238 = por %p236, %p237
      %p239 = scmp.ne.s32.totalorder %s231, %s233
      %p240 = scmp.eq.s32.totalorder %s29, 1
      %p241 = por %p239, %p240
      %p242 = scmp.ne.s32.totalorder %s233, %s234
      %p243 = scmp.eq.s32.totalorder %s29, 0
      %p244 = por %p242, %p243
      %p245 = scmp.ne.s32.totalorder %s233, %s234
      %p246 = scmp.eq.s32.totalorder %s30, 1
      %p247 = por %p245, %p246
      %p249 = scmp.ne.s32.totalorder %s234, %s248
      %p250 = scmp.eq.s32.totalorder %s30, 0
      %p251 = por %p249, %p250
      %s253 = sadd.s32 %s252, 1
      %p256 = scmp.eq.s32.totalorder %s24, 1
      %p257 = scmp.ne.s32.totalorder %s252, %s254
      %p258 = scmp.eq.s32.totalorder %s24, 0
      %p259 = por %p257, %p258
      %p260 = scmp.ne.s32.totalorder %s252, %s254
      %p261 = scmp.eq.s32.totalorder %s29, 1
      %p262 = por %p260, %p261
      %p263 = scmp.ne.s32.totalorder %s254, %s255
      %p264 = scmp.eq.s32.totalorder %s29, 0
      %p265 = por %p263, %p264
      %p266 = scmp.ne.s32.totalorder %s254, %s255
      %p267 = scmp.eq.s32.totalorder %s30, 1
      %p268 = por %p266, %p267
      %p270 = scmp.ne.s32.totalorder %s255, %s269
      %p271 = scmp.eq.s32.totalorder %s30, 0
      %p272 = por %p270, %p271
      %s274 = sadd.s32 %s273, 1
      %p277 = scmp.eq.s32.totalorder %s24, 1
      %p278 = scmp.ne.s32.totalorder %s273, %s275
      %p279 = scmp.eq.s32.totalorder %s24, 0
      %p280 = por %p278, %p279
      %p281 = scmp.ne.s32.totalorder %s273, %s275
      %p282 = scmp.eq.s32.totalorder %s29, 1
      %p283 = por %p281, %p282
      %p284 = scmp.ne.s32.totalorder %s275, %s276
      %p285 = scmp.eq.s32.totalorder %s29, 0
      %p286 = por %p284, %p285
      %p287 = scmp.ne.s32.totalorder %s275, %s276
      %p288 = scmp.eq.s32.totalorder %s30, 1
      %p289 = por %p287, %p288
      %p291 = scmp.ne.s32.totalorder %s276, %s290
      %p292 = scmp.eq.s32.totalorder %s30, 0
      %p293 = por %p291, %p292
      %s294 = ssub.s32 %s24, %s31
      %p295 = scmp.eq.s32.totalorder %s294, 0
      %s297 = sadd.s32 %s296, 1
      %s298 = scalar_select %p295, %s296, %s297
      %p301 = pneg %p295
      %p302 = scmp.eq.s32.totalorder %s24, 1
      %p303 = por %p301, %p302
      %p304 = scmp.ne.s32.totalorder %s296, %s299
      %p305 = scmp.eq.s32.totalorder %s24, 0
      %p306 = por %p304, %p305
      %p307 = scmp.ne.s32.totalorder %s296, %s299
      %p308 = scmp.eq.s32.totalorder %s29, 1
      %p309 = por %p307, %p308
      %p310 = scmp.ne.s32.totalorder %s299, %s300
      %p311 = scmp.eq.s32.totalorder %s29, 0
      %p312 = por %p310, %p311
      %p313 = scmp.ne.s32.totalorder %s299, %s300
      %p314 = scmp.eq.s32.totalorder %s30, 1
      %p315 = por %p313, %p314
      %p317 = scmp.ne.s32.totalorder %s300, %s316
      %p318 = scmp.eq.s32.totalorder %s30, 0
      %p319 = por %p317, %p318
      %p320 = scmp.le.s32.totalorder 1, %s24
      %p321 = scmp.lt.s32.totalorder %s24, 3
      %p322 = pnand %p320, %p321
      %p323 = pneg %p322
      // Predicated region
      $region9: #{tpu_custom_call.1} parent=5 // pred_check
        _
      $region10: #{tpu_custom_call.1} parent=5 // pred_check_branch
        %325 = sbr.rel (%p322) target = $region12
      $region11: #{tpu_custom_call.1} parent=5 // pred_region
        %s326 = ssub.s32 %s24, 1
        // Predicated region
        $region13: #{tpu_custom_call.1} parent=11 // pred_check
          %p327 = pneg %p97
        $region14: #{tpu_custom_call.1} parent=11 // pred_check_branch
          %329 = sbr.rel (%p327) target = $region16
        $region15: #{tpu_custom_call.1} parent=11 // pred_region
          %s331 = ssub.s32 3072, 3072
          %332 = vsyncadd [#allocation3], %s331
          %s333 = sshll.u32 [#allocation2], 4
          %s334 = int_to_ptr.vmem [resolvable:$true] %s333
          %339 = dma.hbm_to_vmem [thread:$0]  %s2, 3072, %s334, [#allocation3], 192, 192, 12
        $region16: #{tpu_custom_call.1} parent=11 // pred_fallthru
          _
        // Predicated region
        $region17: #{tpu_custom_call.1} parent=11 // pred_check
          %p340 = pneg %p118
        $region18: #{tpu_custom_call.1} parent=11 // pred_check_branch
          %342 = sbr.rel (%p340) target = $region20
        $region19: #{tpu_custom_call.1} parent=11 // pred_region
          %s344 = ssub.s32 1024, 1024
          %345 = vsyncadd [#allocation6], %s344
          %s346 = sshll.u32 [#allocation5], 4
          %s347 = int_to_ptr.vmem [resolvable:$true] %s346
          %352 = dma.hbm_to_vmem [thread:$0]  %s3, 1024, %s347, [#allocation6], 64, 64, 4
        $region20: #{tpu_custom_call.1} parent=11 // pred_fallthru
          _
        // Predicated region
        $region21: #{tpu_custom_call.1} parent=11 // pred_check
          %p353 = pneg %p139
        $region22: #{tpu_custom_call.1} parent=11 // pred_check_branch
          %355 = sbr.rel (%p353) target = $region24
        $region23: #{tpu_custom_call.1} parent=11 // pred_region
          _
        $region24: #{tpu_custom_call.1} parent=11 // pred_fallthru
          _
        // Predicated region
        $region25: #{tpu_custom_call.1} parent=11 // pred_check
          %p356 = pneg %p160
        $region26: #{tpu_custom_call.1} parent=11 // pred_check_branch
          %358 = sbr.rel (%p356) target = $region28
        $region27: #{tpu_custom_call.1} parent=11 // pred_region
          _
        $region28: #{tpu_custom_call.1} parent=11 // pred_fallthru
          _
        // Predicated region
        $region29: #{tpu_custom_call.1} parent=11 // pred_check
          %p359 = pneg %p181
        $region30: #{tpu_custom_call.1} parent=11 // pred_check_branch
          %361 = sbr.rel (%p359) target = $region32
        $region31: #{tpu_custom_call.1} parent=11 // pred_region
          %s363 = ssub.s32 2048, 2048
          %364 = vsyncadd [#allocation6], %s363
          %s365 = sshll.u32 [#allocation7], 4
          %s366 = int_to_ptr.vmem [resolvable:$true] %s365
          %371 = dma.hbm_to_vmem [thread:$0]  %s6, 2048, %s366, [#allocation6], 128, 128, 8
        $region32: #{tpu_custom_call.1} parent=11 // pred_fallthru
          _
        // Predicated region
        $region33: #{tpu_custom_call.1} parent=11 // pred_check
          %p372 = pneg %p202
        $region34: #{tpu_custom_call.1} parent=11 // pred_check_branch
          %374 = sbr.rel (%p372) target = $region36
        $region35: #{tpu_custom_call.1} parent=11 // pred_region
          _
        $region36: #{tpu_custom_call.1} parent=11 // pred_fallthru
          _
        // Predicated region
        $region37: #{tpu_custom_call.1} parent=11 // pred_check
          %p375 = pneg %p223
        $region38: #{tpu_custom_call.1} parent=11 // pred_check_branch
          %377 = sbr.rel (%p375) target = $region40
        $region39: #{tpu_custom_call.1} parent=11 // pred_region
          %s379 = ssub.s32 2048, 2048
          %380 = vsyncadd [#allocation9], %s379
          %s381 = sshll.u32 [#allocation8], 4
          %s382 = int_to_ptr.vmem [resolvable:$true] %s381
          %387 = dma.hbm_to_vmem [thread:$0]  %s8, 2048, %s382, [#allocation9], 64, 64, 4
        $region40: #{tpu_custom_call.1} parent=11 // pred_fallthru
          _
        // Predicated region
        $region41: #{tpu_custom_call.1} parent=11 // pred_check
          %p388 = pneg %p244
        $region42: #{tpu_custom_call.1} parent=11 // pred_check_branch
          %390 = sbr.rel (%p388) target = $region44
        $region43: #{tpu_custom_call.1} parent=11 // pred_region
          _
        $region44: #{tpu_custom_call.1} parent=11 // pred_fallthru
          _
        // Predicated region
        $region45: #{tpu_custom_call.1} parent=11 // pred_check
          %p391 = pneg %p265
        $region46: #{tpu_custom_call.1} parent=11 // pred_check_branch
          %393 = sbr.rel (%p391) target = $region48
        $region47: #{tpu_custom_call.1} parent=11 // pred_region
          _
        $region48: #{tpu_custom_call.1} parent=11 // pred_fallthru
          _
        // Predicated region
        $region49: #{tpu_custom_call.1} parent=11 // pred_check
          %p394 = pneg %p286
        $region50: #{tpu_custom_call.1} parent=11 // pred_check_branch
          %396 = sbr.rel (%p394) target = $region52
        $region51: #{tpu_custom_call.1} parent=11 // pred_region
          _
        $region52: #{tpu_custom_call.1} parent=11 // pred_fallthru
          _
      $region12: #{tpu_custom_call.1} parent=5 // pred_fallthru
        _
      %p397 = scmp.lt.s32.totalorder %s24, 2
      // Predicated region
      $region53: #{tpu_custom_call.1} parent=5 // pred_check
        %p398 = pneg %p397
      $region54: #{tpu_custom_call.1} parent=5 // pred_check_branch
        %400 = sbr.rel (%p398) target = $region56
      $region55: #{tpu_custom_call.1} parent=5 // pred_region
        // Predicated region
        $region57: #{tpu_custom_call.1} parent=55 // pred_check
          %p401 = pneg %p44
        $region58: #{tpu_custom_call.1} parent=55 // pred_check_branch
          %403 = sbr.rel (%p401) target = $region60
        $region59: #{tpu_custom_call.1} parent=55 // pred_region
          %p404 = scmp.lt.s32.totalorder %s24, 1
          %s405 = scalar_select %p404, %s24, 1
          %s406 = smul.addr %s405, 8
          %s407 = scalar_lea.vmem %s0, %s406
        $region60: #{tpu_custom_call.1} parent=55 // pred_fallthru
          _
        // Predicated region
        $region61: #{tpu_custom_call.1} parent=55 // pred_check
          %p408 = pneg %p70
        $region62: #{tpu_custom_call.1} parent=55 // pred_check_branch
          %410 = sbr.rel (%p408) target = $region64
        $region63: #{tpu_custom_call.1} parent=55 // pred_region
          %p411 = scmp.lt.s32.totalorder %s24, 1
          %s412 = scalar_select %p411, %s24, 1
          %s413 = smul.addr %s412, 8
          %s414 = scalar_lea.vmem %s1, %s413
        $region64: #{tpu_custom_call.1} parent=55 // pred_fallthru
          _
      $region56: #{tpu_custom_call.1} parent=5 // pred_fallthru
        _
      %p415 = scmp.le.s32.totalorder 1, %s24
      %p416 = scmp.lt.s32.totalorder %s24, 3
      %p417 = pnand %p415, %p416
      %p418 = pneg %p417
      // Predicated region
      $region65: #{tpu_custom_call.1} parent=5 // pred_check
        _
      $region66: #{tpu_custom_call.1} parent=5 // pred_check_branch
        %420 = sbr.rel (%p417) target = $region68
      $region67: #{tpu_custom_call.1} parent=5 // pred_region
        %s421 = ssub.s32 %s24, 1
        // Predicated region
        $region69: #{tpu_custom_call.1} parent=67 // pred_check
          %p422 = pneg %p97
        $region70: #{tpu_custom_call.1} parent=67 // pred_check_branch
          %424 = sbr.rel (%p422) target = $region72
        $region71: #{tpu_custom_call.1} parent=67 // pred_region
          %425 = dma.done [#allocation3], 3072
        $region72: #{tpu_custom_call.1} parent=67 // pred_fallthru
          _
        // Predicated region
        $region73: #{tpu_custom_call.1} parent=67 // pred_check
          %p426 = pneg %p118
        $region74: #{tpu_custom_call.1} parent=67 // pred_check_branch
          %428 = sbr.rel (%p426) target = $region76
        $region75: #{tpu_custom_call.1} parent=67 // pred_region
          %429 = dma.done [#allocation6], 1024
        $region76: #{tpu_custom_call.1} parent=67 // pred_fallthru
          _
        // Predicated region
        $region77: #{tpu_custom_call.1} parent=67 // pred_check
          %p430 = pneg %p181
        $region78: #{tpu_custom_call.1} parent=67 // pred_check_branch
          %432 = sbr.rel (%p430) target = $region80
        $region79: #{tpu_custom_call.1} parent=67 // pred_region
          %433 = dma.done [#allocation6], 2048
        $region80: #{tpu_custom_call.1} parent=67 // pred_fallthru
          _
        // Predicated region
        $region81: #{tpu_custom_call.1} parent=67 // pred_check
          %p434 = pneg %p223
        $region82: #{tpu_custom_call.1} parent=67 // pred_check_branch
          %436 = sbr.rel (%p434) target = $region84
        $region83: #{tpu_custom_call.1} parent=67 // pred_region
          %437 = dma.done [#allocation9], 2048
        $region84: #{tpu_custom_call.1} parent=67 // pred_fallthru
          _
        %p438 = scmp.lt.s32.totalorder %s29, 1
        %s439 = scalar_select %p438, %s29, 1
        %s440 = smul.addr %s439, 8
        %s441 = scalar_lea.vmem %s0, %s440
        %p442 = pneg %p50
        %p443 = pneg %p47
        %p444 = scmp.lt.s32.totalorder %s29, 1
        %s445 = scalar_select %p444, %s29, 1
        %s446 = smul.addr %s445, 8
        %s447 = scalar_lea.vmem %s1, %s446
        %p448 = pneg %p76
        %p449 = pneg %p73
        %p450 = pneg %p97
        %p451 = pneg %p94
        %p452 = pneg %p118
        %p453 = pneg %p115
        %p454 = pneg %p139
        %p455 = pneg %p136
        %p456 = pneg %p160
        %p457 = pneg %p157
        %p458 = pneg %p181
        %p459 = pneg %p178
        %p460 = pneg %p202
        %p461 = pneg %p199
        %p462 = pneg %p223
        %p463 = pneg %p220
        %p464 = pneg %p244
        %p465 = pneg %p241
        %p466 = pneg %p265
        %p467 = pneg %p262
        %p468 = pneg %p286
        %p469 = pneg %p283
        %p470 = pneg %p312
        %p471 = pneg %p309
        %s472 = sand.u32 %s299, 1
        %s473 = scalar_lea.sflag [#allocation4], %s472
        %s474 = sand.u32 %s299, 1
        %s475 = smul.addr %s474, 8
        %s476 = scalar_lea.vmem [#allocation10], %s475
        %p477 = scmp.lt.s32.totalorder %s29, 1
        %s478 = scalar_select %p477, %s29, 1
        %s479 = smul.addr %s478, 8
        %s480 = scalar_lea.vmem %s0, %s479
        %p481 = scmp.lt.s32.totalorder %s29, 1
        %s482 = scalar_select %p481, %s29, 1
        %s483 = smul.addr %s482, 8
        %s484 = scalar_lea.vmem %s1, %s483
        %v486 = vld [vmem:[%s480] sm:$0xff]
        %v487 = vpack.c.bf16 %v486, %v486
        %v488 = vld [vmem:[#allocation2] sm:$0xff]
        %v489 = vld [vmem:[#allocation2 + $0x8] sm:$0xf]
        %v490 = vld [vmem:[#allocation2 + $0xc] sm:$0xff]
        %v491 = vld [vmem:[#allocation2 + $0x14] sm:$0xf]
        %v492 = vld [vmem:[#allocation2 + $0x18] sm:$0xff]
        %v493 = vld [vmem:[#allocation2 + $0x20] sm:$0xf]
        %v494 = vld [vmem:[#allocation2 + $0x24] sm:$0xff]
        %v495 = vld [vmem:[#allocation2 + $0x2c] sm:$0xf]
        %v496 = vld [vmem:[#allocation2 + $0x30] sm:$0xff]
        %v497 = vld [vmem:[#allocation2 + $0x38] sm:$0xf]
        %v498 = vld [vmem:[#allocation2 + $0x3c] sm:$0xff]
        %v499 = vld [vmem:[#allocation2 + $0x44] sm:$0xf]
        %v500 = vld [vmem:[#allocation2 + $0x48] sm:$0xff]
        %v501 = vld [vmem:[#allocation2 + $0x50] sm:$0xf]
        %v502 = vld [vmem:[#allocation2 + $0x54] sm:$0xff]
        %v503 = vld [vmem:[#allocation2 + $0x5c] sm:$0xf]
        %v504 = vld [vmem:[#allocation2 + $0x60] sm:$0xff]
        %v505 = vld [vmem:[#allocation2 + $0x68] sm:$0xf]
        %v506 = vld [vmem:[#allocation2 + $0x6c] sm:$0xff]
        %v507 = vld [vmem:[#allocation2 + $0x74] sm:$0xf]
        %v508 = vld [vmem:[#allocation2 + $0x78] sm:$0xff]
        %v509 = vld [vmem:[#allocation2 + $0x80] sm:$0xf]
        %v510 = vld [vmem:[#allocation2 + $0x84] sm:$0xff]
        %v511 = vld [vmem:[#allocation2 + $0x8c] sm:$0xf]
        %v512 = vld [vmem:[#allocation2 + $0x90] sm:$0xff]
        %v513 = vld [vmem:[#allocation2 + $0x98] sm:$0xf]
        %v514 = vld [vmem:[#allocation2 + $0x9c] sm:$0xff]
        %v515 = vld [vmem:[#allocation2 + $0xa4] sm:$0xf]
        %v516 = vld [vmem:[#allocation2 + $0xa8] sm:$0xff]
        %v517 = vld [vmem:[#allocation2 + $0xb0] sm:$0xf]
        %v518 = vld [vmem:[#allocation2 + $0xb4] sm:$0xff]
        %v519 = vld [vmem:[#allocation2 + $0xbc] sm:$0xf]
        %v552 = vunpack.c.l.b16 %v488
        %v553 = vunpack.c.h.b16 %v488
        %v554 = vunpack.c.l.b16 %v489
        %v555 = vunpack.c.l.b16 %v490
        %v556 = vunpack.c.h.b16 %v490
        %v557 = vunpack.c.l.b16 %v491
        %v558 = vunpack.c.l.b16 %v492
        %v559 = vunpack.c.h.b16 %v492
        %v560 = vunpack.c.l.b16 %v493
        %v561 = vunpack.c.l.b16 %v494
        %v562 = vunpack.c.h.b16 %v494
        %v563 = vunpack.c.l.b16 %v495
        %v564 = vunpack.c.l.b16 %v496
        %v565 = vunpack.c.h.b16 %v496
        %v566 = vunpack.c.l.b16 %v497
        %v567 = vunpack.c.l.b16 %v498
        %v568 = vunpack.c.h.b16 %v498
        %v569 = vunpack.c.l.b16 %v499
        %v570 = vunpack.c.l.b16 %v500
        %v571 = vunpack.c.h.b16 %v500
        %v572 = vunpack.c.l.b16 %v501
        %v573 = vunpack.c.l.b16 %v502
        %v574 = vunpack.c.h.b16 %v502
        %v575 = vunpack.c.l.b16 %v503
        %v576 = vunpack.c.l.b16 %v504
        %v577 = vunpack.c.h.b16 %v504
        %v578 = vunpack.c.l.b16 %v505
        %v579 = vunpack.c.l.b16 %v506
        %v580 = vunpack.c.h.b16 %v506
        %v581 = vunpack.c.l.b16 %v507
        %v582 = vunpack.c.l.b16 %v508
        %v583 = vunpack.c.h.b16 %v508
        %v584 = vunpack.c.l.b16 %v509
        %v585 = vunpack.c.l.b16 %v510
        %v586 = vunpack.c.h.b16 %v510
        %v587 = vunpack.c.l.b16 %v511
        %v588 = vunpack.c.l.b16 %v512
        %v589 = vunpack.c.h.b16 %v512
        %v590 = vunpack.c.l.b16 %v513
        %v591 = vunpack.c.l.b16 %v514
        %v592 = vunpack.c.h.b16 %v514
        %v593 = vunpack.c.l.b16 %v515
        %v594 = vunpack.c.l.b16 %v516
        %v595 = vunpack.c.h.b16 %v516
        %v596 = vunpack.c.l.b16 %v517
        %v597 = vunpack.c.l.b16 %v518
        %v598 = vunpack.c.h.b16 %v518
        %v599 = vunpack.c.l.b16 %v519
        %v600 = vpack.c.b16 %v555, %v552
        %v601 = vpack.c.b16 %v556, %v553
        %v602 = vpack.c.b16 %v557, %v554
        %v603 = vpack.c.b16 %v561, %v558
        %v604 = vpack.c.b16 %v562, %v559
        %v605 = vpack.c.b16 %v563, %v560
        %v606 = vpack.c.b16 %v567, %v564
        %v607 = vpack.c.b16 %v568, %v565
        %v608 = vpack.c.b16 %v569, %v566
        %v609 = vpack.c.b16 %v573, %v570
        %v610 = vpack.c.b16 %v574, %v571
        %v611 = vpack.c.b16 %v575, %v572
        %v612 = vpack.c.b16 %v579, %v576
        %v613 = vpack.c.b16 %v580, %v577
        %v614 = vpack.c.b16 %v581, %v578
        %v615 = vpack.c.b16 %v585, %v582
        %v616 = vpack.c.b16 %v586, %v583
        %v617 = vpack.c.b16 %v587, %v584
        %v618 = vpack.c.b16 %v591, %v588
        %v619 = vpack.c.b16 %v592, %v589
        %v620 = vpack.c.b16 %v593, %v590
        %v621 = vpack.c.b16 %v597, %v594
        %v622 = vpack.c.b16 %v598, %v595
        %v623 = vpack.c.b16 %v599, %v596
        %648 = vmatprep.subr.bf16.mxu0 %v601
        %649 = vmatpush1.bf16.msra.mxu0 %v600
        %650 = vmatprep.subr.bf16.mxu0 %v604
        %651 = vmatpush1.bf16.msra.mxu0 %v603
        %652 = vmatprep.subr.bf16.mxu0 %v607
        %653 = vmatpush1.bf16.msra.mxu0 %v606
        %654 = vmatprep.subr.bf16.mxu0 %v610
        %655 = vmatpush1.bf16.msra.mxu0 %v609
        %656 = vmatprep.subr.bf16.mxu0 %v613
        %657 = vmatpush1.bf16.msra.mxu0 %v612
        %658 = vmatprep.subr.bf16.mxu0 %v616
        %659 = vmatpush1.bf16.msra.mxu0 %v615
        %660 = vmatprep.subr.bf16.mxu0 %v619
        %661 = vmatpush1.bf16.msra.mxu0 %v618
        %662 = vmatprep.subr.bf16.mxu0 %v622
        %663 = vmatpush1.bf16.msra.mxu0 %v621
        %664 = vmatprep.subr.bf16.mxu0 0
        %665 = vmatpush1.bf16.msra.mxu0 0
        %666 = vmatprep.subr.bf16.mxu0 0
        %667 = vmatpush1.bf16.msra.mxu0 0
        %668 = vmatprep.subr.bf16.mxu0 0
        %669 = vmatpush1.bf16.msra.mxu0 0
        %670 = vmatprep.subr.bf16.mxu0 0
        %671 = vmatpush1.bf16.msra.mxu0 0
        %672 = vmatprep.subr.bf16.mxu0 0
        %673 = vmatpush1.bf16.msra.mxu0 0
        %674 = vmatprep.subr.bf16.mxu0 0
        %675 = vmatpush1.bf16.msra.mxu0 0
        %676 = vmatprep.subr.bf16.mxu0 0
        %677 = vmatpush1.bf16.msra.mxu0 0
        %678 = vmatprep.subr.bf16.mxu0 0
        %679 = vmatpush1.bf16.msra.mxu0 0
        %680 = vmatprep.mubr.bf16.mxu0 0
        %681 = vmatmul.mubr.bf16.gmra.mrb[0].mxu0 %v487
        %v682 = vpop.f32.mrb[0].mxu0
        %v683 = vadd.f32 0.0, %v682
        %v684 = vpop.f32.mrb[0].mxu0
        %v685 = vadd.f32 0.0, %v684
        %v686 = vpop.f32.mrb[0].mxu0
        %v687 = vpop.f32.mrb[0].mxu0
        %688 = vdwg.mxu0
        %689 = vmatprep.subr.bf16.mxu0 0
        %690 = vmatpush1.bf16.msra.mxu0 %v602
        %691 = vmatprep.subr.bf16.mxu0 0
        %692 = vmatpush1.bf16.msra.mxu0 %v605
        %693 = vmatprep.subr.bf16.mxu0 0
        %694 = vmatpush1.bf16.msra.mxu0 %v608
        %695 = vmatprep.subr.bf16.mxu0 0
        %696 = vmatpush1.bf16.msra.mxu0 %v611
        %697 = vmatprep.subr.bf16.mxu0 0
        %698 = vmatpush1.bf16.msra.mxu0 %v614
        %699 = vmatprep.subr.bf16.mxu0 0
        %700 = vmatpush1.bf16.msra.mxu0 %v617
        %701 = vmatprep.subr.bf16.mxu0 0
        %702 = vmatpush1.bf16.msra.mxu0 %v620
        %703 = vmatprep.subr.bf16.mxu0 0
        %704 = vmatpush1.bf16.msra.mxu0 %v623
        %705 = vmatprep.subr.bf16.mxu0 0
        %706 = vmatpush1.bf16.msra.mxu0 0
        %707 = vmatprep.subr.bf16.mxu0 0
        %708 = vmatpush1.bf16.msra.mxu0 0
        %709 = vmatprep.subr.bf16.mxu0 0
        %710 = vmatpush1.bf16.msra.mxu0 0
        %711 = vmatprep.subr.bf16.mxu0 0
        %712 = vmatpush1.bf16.msra.mxu0 0
        %713 = vmatprep.subr.bf16.mxu0 0
        %714 = vmatpush1.bf16.msra.mxu0 0
        %715 = vmatprep.subr.bf16.mxu0 0
        %716 = vmatpush1.bf16.msra.mxu0 0
        %717 = vmatprep.subr.bf16.mxu0 0
        %718 = vmatpush1.bf16.msra.mxu0 0
        %719 = vmatprep.subr.bf16.mxu0 0
        %720 = vmatpush1.bf16.msra.mxu0 0
        %721 = vmatprep.mubr.bf16.mxu0 0
        %722 = vmatmul.mubr.bf16.gmra.mrb[0].mxu0 %v487
        %v723 = vpop.f32.mrb[0].mxu0
        %v724 = vadd.f32 0.0, %v723
        %v725 = vpop.f32.mrb[0].mxu0
        %v726 = vpop.f32.mrb[0].mxu0
        %v727 = vpop.f32.mrb[0].mxu0
        %728 = vdwg.mxu0
        %v729 = vpack.c.bf16 %v683, %v683
        %731 = vrot.lane.b32.xlu0 %v729, 96
        %v732 = vpop.permute.xlu0 %731
        %733 = vrot.lane.b32.xlu0 %v729, 64
        %v734 = vpop.permute.xlu0 %733
        %735 = vrot.lane.b32.xlu0 %v729, 32
        %v736 = vpop.permute.xlu0 %735
        %v738 = vunpack.c.l.s4 1983009808
        %v739 = vunpack.c.0.s8 %v738
        %v740 = vlaneseq
        %v741 = vshrl.u32 %v740, 7
        %v742 = vsub.s32 %v739, %v741
        %v743 = vrot.slane %v729, %v742
        %v746 = vunpack.c.l.s4 1983009808
        %v747 = vunpack.c.0.s8 %v746
        %v748 = vlaneseq
        %v749 = vshrl.u32 %v748, 7
        %v750 = vsub.s32 %v747, %v749
        %v751 = vrot.slane %v734, %v750
        %v752 = vcombine.low %v743, %v751
        %v753 = vcombine.high %v743, %v751
        %v755 = vunpack.c.l.s4 1934713408
        %v756 = vunpack.c.0.s8 %v755
        %v757 = vlaneseq
        %v758 = vshrl.u32 %v757, 7
        %v759 = vsub.s32 %v756, %v758
        %v760 = vrot.slane %v752, %v759
        %v762 = vunpack.c.l.s4 1934713408
        %v763 = vunpack.c.0.s8 %v762
        %v764 = vlaneseq
        %v765 = vshrl.u32 %v764, 7
        %v766 = vsub.s32 %v763, %v765
        %v767 = vrot.slane %v753, %v766
        %v768 = vcombine.high %v760, 0
        %v769 = vcombine.high %v767, 0
        %v772 = vunpack.c.l.s4 1983009808
        %v773 = vunpack.c.0.s8 %v772
        %v774 = vlaneseq
        %v775 = vshrl.u32 %v774, 7
        %v776 = vsub.s32 %v773, %v775
        %v777 = vrot.slane %v732, %v776
        %v780 = vunpack.c.l.s4 1983009808
        %v781 = vunpack.c.0.s8 %v780
        %v782 = vlaneseq
        %v783 = vshrl.u32 %v782, 7
        %v784 = vsub.s32 %v781, %v783
        %v785 = vrot.slane %v736, %v784
        %v786 = vcombine.low %v777, %v785
        %v787 = vcombine.high %v777, %v785
        %v789 = vunpack.c.l.s4 1934713408
        %v790 = vunpack.c.0.s8 %v789
        %v791 = vlaneseq
        %v792 = vshrl.u32 %v791, 7
        %v793 = vsub.s32 %v790, %v792
        %v794 = vrot.slane %v786, %v793
        %v796 = vunpack.c.l.s4 1934713408
        %v797 = vunpack.c.0.s8 %v796
        %v798 = vlaneseq
        %v799 = vshrl.u32 %v798, 7
        %v800 = vsub.s32 %v797, %v799
        %v801 = vrot.slane %v787, %v800
        %v802 = vcombine.high %v794, 0
        %v803 = vcombine.high %v801, 0
        %v806 = vpack.i.b16 %v794, %v760
        %v808 = vshrl.u32 %v760, 16
        %v809 = vshrl.u32 %v794, 16
        %v810 = vpack.i.b16 %v809, %v808
        %v814 = vpack.i.b16 %v802, %v768
        %v816 = vshrl.u32 %v768, 16
        %v817 = vshrl.u32 %v802, 16
        %v818 = vpack.i.b16 %v817, %v816
        %v822 = vpack.i.b16 %v801, %v767
        %v824 = vshrl.u32 %v767, 16
        %v825 = vshrl.u32 %v801, 16
        %v826 = vpack.i.b16 %v825, %v824
        %v830 = vpack.i.b16 %v803, %v769
        %v832 = vshrl.u32 %v769, 16
        %v833 = vshrl.u32 %v803, 16
        %v834 = vpack.i.b16 %v833, %v832
        %v836 = vcombine.low %v806, %v822
        %v838 = vunpack.c.l.s4 1983009808
        %v839 = vunpack.c.0.s8 %v838
        %v840 = vlaneseq
        %v841 = vshrl.u32 %v840, 7
        %v842 = vsub.s32 %v839, %v841
        %v843 = vrot.slane %v836, %v842
        %v844 = vcombine.low %v814, %v830
        %v846 = vunpack.c.l.s4 1983009808
        %v847 = vunpack.c.0.s8 %v846
        %v848 = vlaneseq
        %v849 = vshrl.u32 %v848, 7
        %v850 = vsub.s32 %v847, %v849
        %v851 = vrot.slane %v844, %v850
        %v852 = vcombine.low %v843, %v851
        %v854 = vunpack.c.l.s4 1934713408
        %v855 = vunpack.c.0.s8 %v854
        %v856 = vlaneseq
        %v857 = vshrl.u32 %v856, 7
        %v858 = vsub.s32 %v855, %v857
        %v859 = vrot.slane %v852, %v858
        %v860 = vcombine.high %v859, 0
        %v861 = vcombine.low %v810, %v826
        %v863 = vunpack.c.l.s4 1983009808
        %v864 = vunpack.c.0.s8 %v863
        %v865 = vlaneseq
        %v866 = vshrl.u32 %v865, 7
        %v867 = vsub.s32 %v864, %v866
        %v868 = vrot.slane %v861, %v867
        %v869 = vcombine.low %v818, %v834
        %v871 = vunpack.c.l.s4 1983009808
        %v872 = vunpack.c.0.s8 %v871
        %v873 = vlaneseq
        %v874 = vshrl.u32 %v873, 7
        %v875 = vsub.s32 %v872, %v874
        %v876 = vrot.slane %v869, %v875
        %v877 = vcombine.low %v868, %v876
        %v879 = vunpack.c.l.s4 1934713408
        %v880 = vunpack.c.0.s8 %v879
        %v881 = vlaneseq
        %v882 = vshrl.u32 %v881, 7
        %v883 = vsub.s32 %v880, %v882
        %v884 = vrot.slane %v877, %v883
        %v885 = vcombine.high %v884, 0
        %v888 = vpack.i.b16 %v884, %v859
        %v889 = vshrl.u32 %v859, 16
        %v890 = vshrl.u32 %v884, 16
        %v891 = vpack.i.b16 %v890, %v889
        %v894 = vpack.i.b16 %v885, %v860
        %v895 = vshrl.u32 %v860, 16
        %v896 = vshrl.u32 %v885, 16
        %v897 = vpack.i.b16 %v896, %v895
        %v898 = vpack.c.bf16 %v685, %v685
        %900 = vrot.lane.b32.xlu0 %v898, 96
        %v901 = vpop.permute.xlu0 %900
        %902 = vrot.lane.b32.xlu0 %v898, 64
        %v903 = vpop.permute.xlu0 %902
        %904 = vrot.lane.b32.xlu0 %v898, 32
        %v905 = vpop.permute.xlu0 %904
        %v907 = vunpack.c.l.s4 1983009808
        %v908 = vunpack.c.0.s8 %v907
        %v909 = vlaneseq
        %v910 = vshrl.u32 %v909, 7
        %v911 = vsub.s32 %v908, %v910
        %v912 = vrot.slane %v898, %v911
        %v915 = vunpack.c.l.s4 1983009808
        %v916 = vunpack.c.0.s8 %v915
        %v917 = vlaneseq
        %v918 = vshrl.u32 %v917, 7
        %v919 = vsub.s32 %v916, %v918
        %v920 = vrot.slane %v903, %v919
        %v921 = vcombine.low %v912, %v920
        %v922 = vcombine.high %v912, %v920
        %v924 = vunpack.c.l.s4 1934713408
        %v925 = vunpack.c.0.s8 %v924
        %v926 = vlaneseq
        %v927 = vshrl.u32 %v926, 7
        %v928 = vsub.s32 %v925, %v927
        %v929 = vrot.slane %v921, %v928
        %v931 = vunpack.c.l.s4 1934713408
        %v932 = vunpack.c.0.s8 %v931
        %v933 = vlaneseq
        %v934 = vshrl.u32 %v933, 7
        %v935 = vsub.s32 %v932, %v934
        %v936 = vrot.slane %v922, %v935
        %v937 = vcombine.high %v929, 0
        %v938 = vcombine.high %v936, 0
        %v941 = vunpack.c.l.s4 1983009808
        %v942 = vunpack.c.0.s8 %v941
        %v943 = vlaneseq
        %v944 = vshrl.u32 %v943, 7
        %v945 = vsub.s32 %v942, %v944
        %v946 = vrot.slane %v901, %v945
        %v949 = vunpack.c.l.s4 1983009808
        %v950 = vunpack.c.0.s8 %v949
        %v951 = vlaneseq
        %v952 = vshrl.u32 %v951, 7
        %v953 = vsub.s32 %v950, %v952
        %v954 = vrot.slane %v905, %v953
        %v955 = vcombine.low %v946, %v954
        %v956 = vcombine.high %v946, %v954
        %v958 = vunpack.c.l.s4 1934713408
        %v959 = vunpack.c.0.s8 %v958
        %v960 = vlaneseq
        %v961 = vshrl.u32 %v960, 7
        %v962 = vsub.s32 %v959, %v961
        %v963 = vrot.slane %v955, %v962
        %v965 = vunpack.c.l.s4 1934713408
        %v966 = vunpack.c.0.s8 %v965
        %v967 = vlaneseq
        %v968 = vshrl.u32 %v967, 7
        %v969 = vsub.s32 %v966, %v968
        %v970 = vrot.slane %v956, %v969
        %v971 = vcombine.high %v963, 0
        %v972 = vcombine.high %v970, 0
        %v975 = vpack.i.b16 %v963, %v929
        %v977 = vshrl.u32 %v929, 16
        %v978 = vshrl.u32 %v963, 16
        %v979 = vpack.i.b16 %v978, %v977
        %v983 = vpack.i.b16 %v971, %v937
        %v985 = vshrl.u32 %v937, 16
        %v986 = vshrl.u32 %v971, 16
        %v987 = vpack.i.b16 %v986, %v985
        %v991 = vpack.i.b16 %v970, %v936
        %v993 = vshrl.u32 %v936, 16
        %v994 = vshrl.u32 %v970, 16
        %v995 = vpack.i.b16 %v994, %v993
        %v999 = vpack.i.b16 %v972, %v938
        %v1001 = vshrl.u32 %v938, 16
        %v1002 = vshrl.u32 %v972, 16
        %v1003 = vpack.i.b16 %v1002, %v1001
        %v1005 = vcombine.low %v975, %v991
        %v1007 = vunpack.c.l.s4 1983009808
        %v1008 = vunpack.c.0.s8 %v1007
        %v1009 = vlaneseq
        %v1010 = vshrl.u32 %v1009, 7
        %v1011 = vsub.s32 %v1008, %v1010
        %v1012 = vrot.slane %v1005, %v1011
        %v1013 = vcombine.low %v983, %v999
        %v1015 = vunpack.c.l.s4 1983009808
        %v1016 = vunpack.c.0.s8 %v1015
        %v1017 = vlaneseq
        %v1018 = vshrl.u32 %v1017, 7
        %v1019 = vsub.s32 %v1016, %v1018
        %v1020 = vrot.slane %v1013, %v1019
        %v1021 = vcombine.low %v1012, %v1020
        %v1023 = vunpack.c.l.s4 1934713408
        %v1024 = vunpack.c.0.s8 %v1023
        %v1025 = vlaneseq
        %v1026 = vshrl.u32 %v1025, 7
        %v1027 = vsub.s32 %v1024, %v1026
        %v1028 = vrot.slane %v1021, %v1027
        %v1029 = vcombine.high %v1028, 0
        %v1030 = vcombine.low %v979, %v995
        %v1032 = vunpack.c.l.s4 1983009808
        %v1033 = vunpack.c.0.s8 %v1032
        %v1034 = vlaneseq
        %v1035 = vshrl.u32 %v1034, 7
        %v1036 = vsub.s32 %v1033, %v1035
        %v1037 = vrot.slane %v1030, %v1036
        %v1038 = vcombine.low %v987, %v1003
        %v1040 = vunpack.c.l.s4 1983009808
        %v1041 = vunpack.c.0.s8 %v1040
        %v1042 = vlaneseq
        %v1043 = vshrl.u32 %v1042, 7
        %v1044 = vsub.s32 %v1041, %v1043
        %v1045 = vrot.slane %v1038, %v1044
        %v1046 = vcombine.low %v1037, %v1045
        %v1048 = vunpack.c.l.s4 1934713408
        %v1049 = vunpack.c.0.s8 %v1048
        %v1050 = vlaneseq
        %v1051 = vshrl.u32 %v1050, 7
        %v1052 = vsub.s32 %v1049, %v1051
        %v1053 = vrot.slane %v1046, %v1052
        %v1054 = vcombine.high %v1053, 0
        %v1057 = vpack.i.b16 %v1053, %v1028
        %v1058 = vshrl.u32 %v1028, 16
        %v1059 = vshrl.u32 %v1053, 16
        %v1060 = vpack.i.b16 %v1059, %v1058
        %v1063 = vpack.i.b16 %v1054, %v1029
        %v1064 = vshrl.u32 %v1029, 16
        %v1065 = vshrl.u32 %v1054, 16
        %v1066 = vpack.i.b16 %v1065, %v1064
        %v1067 = vpack.c.bf16 %v724, %v724
        %1069 = vrot.lane.b32.xlu0 %v1067, 96
        %v1070 = vpop.permute.xlu0 %1069
        %1071 = vrot.lane.b32.xlu0 %v1067, 64
        %v1072 = vpop.permute.xlu0 %1071
        %1073 = vrot.lane.b32.xlu0 %v1067, 32
        %v1074 = vpop.permute.xlu0 %1073
        %v1076 = vunpack.c.l.s4 1983009808
        %v1077 = vunpack.c.0.s8 %v1076
        %v1078 = vlaneseq
        %v1079 = vshrl.u32 %v1078, 7
        %v1080 = vsub.s32 %v1077, %v1079
        %v1081 = vrot.slane %v1067, %v1080
        %v1084 = vunpack.c.l.s4 1983009808
        %v1085 = vunpack.c.0.s8 %v1084
        %v1086 = vlaneseq
        %v1087 = vshrl.u32 %v1086, 7
        %v1088 = vsub.s32 %v1085, %v1087
        %v1089 = vrot.slane %v1072, %v1088
        %v1090 = vcombine.low %v1081, %v1089
        %v1091 = vcombine.high %v1081, %v1089
        %v1093 = vunpack.c.l.s4 1934713408
        %v1094 = vunpack.c.0.s8 %v1093
        %v1095 = vlaneseq
        %v1096 = vshrl.u32 %v1095, 7
        %v1097 = vsub.s32 %v1094, %v1096
        %v1098 = vrot.slane %v1090, %v1097
        %v1100 = vunpack.c.l.s4 1934713408
        %v1101 = vunpack.c.0.s8 %v1100
        %v1102 = vlaneseq
        %v1103 = vshrl.u32 %v1102, 7
        %v1104 = vsub.s32 %v1101, %v1103
        %v1105 = vrot.slane %v1091, %v1104
        %v1106 = vcombine.high %v1098, 0
        %v1107 = vcombine.high %v1105, 0
        %v1110 = vunpack.c.l.s4 1983009808
        %v1111 = vunpack.c.0.s8 %v1110
        %v1112 = vlaneseq
        %v1113 = vshrl.u32 %v1112, 7
        %v1114 = vsub.s32 %v1111, %v1113
        %v1115 = vrot.slane %v1070, %v1114
        %v1118 = vunpack.c.l.s4 1983009808
        %v1119 = vunpack.c.0.s8 %v1118
        %v1120 = vlaneseq
        %v1121 = vshrl.u32 %v1120, 7
        %v1122 = vsub.s32 %v1119, %v1121
        %v1123 = vrot.slane %v1074, %v1122
        %v1124 = vcombine.low %v1115, %v1123
        %v1125 = vcombine.high %v1115, %v1123
        %v1127 = vunpack.c.l.s4 1934713408
        %v1128 = vunpack.c.0.s8 %v1127
        %v1129 = vlaneseq
        %v1130 = vshrl.u32 %v1129, 7
        %v1131 = vsub.s32 %v1128, %v1130
        %v1132 = vrot.slane %v1124, %v1131
        %v1134 = vunpack.c.l.s4 1934713408
        %v1135 = vunpack.c.0.s8 %v1134
        %v1136 = vlaneseq
        %v1137 = vshrl.u32 %v1136, 7
        %v1138 = vsub.s32 %v1135, %v1137
        %v1139 = vrot.slane %v1125, %v1138
        %v1140 = vcombine.high %v1132, 0
        %v1141 = vcombine.high %v1139, 0
        %v1144 = vpack.i.b16 %v1132, %v1098
        %v1146 = vshrl.u32 %v1098, 16
        %v1147 = vshrl.u32 %v1132, 16
        %v1148 = vpack.i.b16 %v1147, %v1146
        %v1152 = vpack.i.b16 %v1140, %v1106
        %v1154 = vshrl.u32 %v1106, 16
        %v1155 = vshrl.u32 %v1140, 16
        %v1156 = vpack.i.b16 %v1155, %v1154
        %v1160 = vpack.i.b16 %v1139, %v1105
        %v1162 = vshrl.u32 %v1105, 16
        %v1163 = vshrl.u32 %v1139, 16
        %v1164 = vpack.i.b16 %v1163, %v1162
        %v1168 = vpack.i.b16 %v1141, %v1107
        %v1170 = vshrl.u32 %v1107, 16
        %v1171 = vshrl.u32 %v1141, 16
        %v1172 = vpack.i.b16 %v1171, %v1170
        %v1174 = vcombine.low %v1144, %v1160
        %v1176 = vunpack.c.l.s4 1983009808
        %v1177 = vunpack.c.0.s8 %v1176
        %v1178 = vlaneseq
        %v1179 = vshrl.u32 %v1178, 7
        %v1180 = vsub.s32 %v1177, %v1179
        %v1181 = vrot.slane %v1174, %v1180
        %v1182 = vcombine.low %v1152, %v1168
        %v1184 = vunpack.c.l.s4 1983009808
        %v1185 = vunpack.c.0.s8 %v1184
        %v1186 = vlaneseq
        %v1187 = vshrl.u32 %v1186, 7
        %v1188 = vsub.s32 %v1185, %v1187
        %v1189 = vrot.slane %v1182, %v1188
        %v1190 = vcombine.low %v1181, %v1189
        %v1192 = vunpack.c.l.s4 1934713408
        %v1193 = vunpack.c.0.s8 %v1192
        %v1194 = vlaneseq
        %v1195 = vshrl.u32 %v1194, 7
        %v1196 = vsub.s32 %v1193, %v1195
        %v1197 = vrot.slane %v1190, %v1196
        %v1198 = vcombine.high %v1197, 0
        %v1199 = vcombine.low %v1148, %v1164
        %v1201 = vunpack.c.l.s4 1983009808
        %v1202 = vunpack.c.0.s8 %v1201
        %v1203 = vlaneseq
        %v1204 = vshrl.u32 %v1203, 7
        %v1205 = vsub.s32 %v1202, %v1204
        %v1206 = vrot.slane %v1199, %v1205
        %v1207 = vcombine.low %v1156, %v1172
        %v1209 = vunpack.c.l.s4 1983009808
        %v1210 = vunpack.c.0.s8 %v1209
        %v1211 = vlaneseq
        %v1212 = vshrl.u32 %v1211, 7
        %v1213 = vsub.s32 %v1210, %v1212
        %v1214 = vrot.slane %v1207, %v1213
        %v1215 = vcombine.low %v1206, %v1214
        %v1217 = vunpack.c.l.s4 1934713408
        %v1218 = vunpack.c.0.s8 %v1217
        %v1219 = vlaneseq
        %v1220 = vshrl.u32 %v1219, 7
        %v1221 = vsub.s32 %v1218, %v1220
        %v1222 = vrot.slane %v1215, %v1221
        %v1223 = vcombine.high %v1222, 0
        %v1226 = vpack.i.b16 %v1222, %v1197
        %v1227 = vshrl.u32 %v1197, 16
        %v1228 = vshrl.u32 %v1222, 16
        %v1229 = vpack.i.b16 %v1228, %v1227
        %v1232 = vpack.i.b16 %v1223, %v1198
        %v1233 = vshrl.u32 %v1198, 16
        %v1234 = vshrl.u32 %v1223, 16
        %v1235 = vpack.i.b16 %v1234, %v1233
        %vm1236 = vcmask 261120
        %v1238 = vsel %vm1236, %v888, 0
        %v1241 = vsel %vm1236, %v1057, 0
        %1243 = vmatprep.subr.bf16.mxu0 0
        %1244 = vmatpush1.bf16.xpose.msra.mxu0 %v1241
        %1245 = vmatprep.subr.bf16.mxu0 0
        %1246 = vmatpush1.bf16.xpose.msra.mxu0 0
        %1247 = vmatprep.subr.bf16.mxu0 0
        %1248 = vmatpush1.bf16.xpose.msra.mxu0 0
        %1249 = vmatprep.subr.bf16.mxu0 0
        %1250 = vmatpush1.bf16.xpose.msra.mxu0 0
        %1251 = vmatprep.subr.bf16.mxu0 0
        %1252 = vmatpush1.bf16.xpose.msra.mxu0 0
        %1253 = vmatprep.subr.bf16.mxu0 0
        %1254 = vmatpush1.bf16.xpose.msra.mxu0 0
        %1255 = vmatprep.subr.bf16.mxu0 0
        %1256 = vmatpush1.bf16.xpose.msra.mxu0 0
        %1257 = vmatprep.subr.bf16.mxu0 0
        %1258 = vmatpush1.bf16.xpose.msra.mxu0 0
        %1259 = vmatprep.subr.bf16.mxu0 0
        %1260 = vmatpush1.bf16.xpose.msra.mxu0 0
        %1261 = vmatprep.subr.bf16.mxu0 0
        %1262 = vmatpush1.bf16.xpose.msra.mxu0 0
        %1263 = vmatprep.subr.bf16.mxu0 0
        %1264 = vmatpush1.bf16.xpose.msra.mxu0 0
        %1265 = vmatprep.subr.bf16.mxu0 0
        %1266 = vmatpush1.bf16.xpose.msra.mxu0 0
        %1267 = vmatprep.subr.bf16.mxu0 0
        %1268 = vmatpush1.bf16.xpose.msra.mxu0 0
        %1269 = vmatprep.subr.bf16.mxu0 0
        %1270 = vmatpush1.bf16.xpose.msra.mxu0 0
        %1271 = vmatprep.subr.bf16.mxu0 0
        %1272 = vmatpush1.bf16.xpose.msra.mxu0 0
        %1273 = vmatprep.subr.bf16.mxu0 0
        %1274 = vmatpush1.bf16.xpose.msra.mxu0 0
        %1275 = vmatprep.mubr.bf16.mxu0 0
        %1276 = vmatmul.mubr.bf16.gmra.mrb[0].mxu0 %v1238
        %v1277 = vpop.f32.mrb[0].mxu0
        %v1278 = vadd.f32 0.0, %v1277
        %v1279 = vpop.f32.mrb[0].mxu0
        %v1280 = vpop.f32.mrb[0].mxu0
        %v1281 = vpop.f32.mrb[0].mxu0
        %1282 = vdwg.mxu0
        %v1284 = vsel %vm1236, %v891, 0
        %v1287 = vsel %vm1236, %v1060, 0
        %1289 = vmatprep.subr.bf16.mxu0 0
        %1290 = vmatpush1.bf16.xpose.msra.mxu0 %v1287
        %1291 = vmatprep.subr.bf16.mxu0 0
        %1292 = vmatpush1.bf16.xpose.msra.mxu0 0
        %1293 = vmatprep.subr.bf16.mxu0 0
        %1294 = vmatpush1.bf16.xpose.msra.mxu0 0
        %1295 = vmatprep.subr.bf16.mxu0 0
        %1296 = vmatpush1.bf16.xpose.msra.mxu0 0
        %1297 = vmatprep.subr.bf16.mxu0 0
        %1298 = vmatpush1.bf16.xpose.msra.mxu0 0
        %1299 = vmatprep.subr.bf16.mxu0 0
        %1300 = vmatpush1.bf16.xpose.msra.mxu0 0
        %1301 = vmatprep.subr.bf16.mxu0 0
        %1302 = vmatpush1.bf16.xpose.msra.mxu0 0
        %1303 = vmatprep.subr.bf16.mxu0 0
        %1304 = vmatpush1.bf16.xpose.msra.mxu0 0
        %1305 = vmatprep.subr.bf16.mxu0 0
        %1306 = vmatpush1.bf16.xpose.msra.mxu0 0
        %1307 = vmatprep.subr.bf16.mxu0 0
        %1308 = vmatpush1.bf16.xpose.msra.mxu0 0
        %1309 = vmatprep.subr.bf16.mxu0 0
        %1310 = vmatpush1.bf16.xpose.msra.mxu0 0
        %1311 = vmatprep.subr.bf16.mxu0 0
        %1312 = vmatpush1.bf16.xpose.msra.mxu0 0
        %1313 = vmatprep.subr.bf16.mxu0 0
        %1314 = vmatpush1.bf16.xpose.msra.mxu0 0
        %1315 = vmatprep.subr.bf16.mxu0 0
        %1316 = vmatpush1.bf16.xpose.msra.mxu0 0
        %1317 = vmatprep.subr.bf16.mxu0 0
        %1318 = vmatpush1.bf16.xpose.msra.mxu0 0
        %1319 = vmatprep.subr.bf16.mxu0 0
        %1320 = vmatpush1.bf16.xpose.msra.mxu0 0
        %1321 = vmatprep.mubr.bf16.mxu0 0
        %1322 = vmatmul.mubr.bf16.gmra.mrb[0].mxu0 %v1284
        %v1323 = vpop.f32.mrb[0].mxu0
        %v1324 = vadd.f32 0.0, %v1323
        %v1325 = vpop.f32.mrb[0].mxu0
        %v1326 = vpop.f32.mrb[0].mxu0
        %v1327 = vpop.f32.mrb[0].mxu0
        %1328 = vdwg.mxu0
        %v1330 = vsel %vm1236, %v894, 0
        %v1333 = vsel %vm1236, %v1063, 0
        %1335 = vmatprep.subr.bf16.mxu0 0
        %1336 = vmatpush1.bf16.xpose.msra.mxu0 %v1333
        %1337 = vmatprep.subr.bf16.mxu0 0
        %1338 = vmatpush1.bf16.xpose.msra.mxu0 0
        %1339 = vmatprep.subr.bf16.mxu0 0
        %1340 = vmatpush1.bf16.xpose.msra.mxu0 0
        %1341 = vmatprep.subr.bf16.mxu0 0
        %1342 = vmatpush1.bf16.xpose.msra.mxu0 0
        %1343 = vmatprep.subr.bf16.mxu0 0
        %1344 = vmatpush1.bf16.xpose.msra.mxu0 0
        %1345 = vmatprep.subr.bf16.mxu0 0
        %1346 = vmatpush1.bf16.xpose.msra.mxu0 0
        %1347 = vmatprep.subr.bf16.mxu0 0
        %1348 = vmatpush1.bf16.xpose.msra.mxu0 0
        %1349 = vmatprep.subr.bf16.mxu0 0
        %1350 = vmatpush1.bf16.xpose.msra.mxu0 0
        %1351 = vmatprep.subr.bf16.mxu0 0
        %1352 = vmatpush1.bf16.xpose.msra.mxu0 0
        %1353 = vmatprep.subr.bf16.mxu0 0
        %1354 = vmatpush1.bf16.xpose.msra.mxu0 0
        %1355 = vmatprep.subr.bf16.mxu0 0
        %1356 = vmatpush1.bf16.xpose.msra.mxu0 0
        %1357 = vmatprep.subr.bf16.mxu0 0
        %1358 = vmatpush1.bf16.xpose.msra.mxu0 0
        %1359 = vmatprep.subr.bf16.mxu0 0
        %1360 = vmatpush1.bf16.xpose.msra.mxu0 0
        %1361 = vmatprep.subr.bf16.mxu0 0
        %1362 = vmatpush1.bf16.xpose.msra.mxu0 0
        %1363 = vmatprep.subr.bf16.mxu0 0
        %1364 = vmatpush1.bf16.xpose.msra.mxu0 0
        %1365 = vmatprep.subr.bf16.mxu0 0
        %1366 = vmatpush1.bf16.xpose.msra.mxu0 0
        %1367 = vmatprep.mubr.bf16.mxu0 0
        %1368 = vmatmul.mubr.bf16.gmra.mrb[0].mxu0 %v1330
        %v1369 = vpop.f32.mrb[0].mxu0
        %v1370 = vadd.f32 0.0, %v1369
        %v1371 = vpop.f32.mrb[0].mxu0
        %v1372 = vpop.f32.mrb[0].mxu0
        %v1373 = vpop.f32.mrb[0].mxu0
        %1374 = vdwg.mxu0
        %v1376 = vsel %vm1236, %v897, 0
        %v1379 = vsel %vm1236, %v1066, 0
        %1381 = vmatprep.subr.bf16.mxu0 0
        %1382 = vmatpush1.bf16.xpose.msra.mxu0 %v1379
        %1383 = vmatprep.subr.bf16.mxu0 0
        %1384 = vmatpush1.bf16.xpose.msra.mxu0 0
        %1385 = vmatprep.subr.bf16.mxu0 0
        %1386 = vmatpush1.bf16.xpose.msra.mxu0 0
        %1387 = vmatprep.subr.bf16.mxu0 0
        %1388 = vmatpush1.bf16.xpose.msra.mxu0 0
        %1389 = vmatprep.subr.bf16.mxu0 0
        %1390 = vmatpush1.bf16.xpose.msra.mxu0 0
        %1391 = vmatprep.subr.bf16.mxu0 0
        %1392 = vmatpush1.bf16.xpose.msra.mxu0 0
        %1393 = vmatprep.subr.bf16.mxu0 0
        %1394 = vmatpush1.bf16.xpose.msra.mxu0 0
        %1395 = vmatprep.subr.bf16.mxu0 0
        %1396 = vmatpush1.bf16.xpose.msra.mxu0 0
        %1397 = vmatprep.subr.bf16.mxu0 0
        %1398 = vmatpush1.bf16.xpose.msra.mxu0 0
        %1399 = vmatprep.subr.bf16.mxu0 0
        %1400 = vmatpush1.bf16.xpose.msra.mxu0 0
        %1401 = vmatprep.subr.bf16.mxu0 0
        %1402 = vmatpush1.bf16.xpose.msra.mxu0 0
        %1403 = vmatprep.subr.bf16.mxu0 0
        %1404 = vmatpush1.bf16.xpose.msra.mxu0 0
        %1405 = vmatprep.subr.bf16.mxu0 0
        %1406 = vmatpush1.bf16.xpose.msra.mxu0 0
        %1407 = vmatprep.subr.bf16.mxu0 0
        %1408 = vmatpush1.bf16.xpose.msra.mxu0 0
        %1409 = vmatprep.subr.bf16.mxu0 0
        %1410 = vmatpush1.bf16.xpose.msra.mxu0 0
        %1411 = vmatprep.subr.bf16.mxu0 0
        %1412 = vmatpush1.bf16.xpose.msra.mxu0 0
        %1413 = vmatprep.mubr.bf16.mxu0 0
        %1414 = vmatmul.mubr.bf16.gmra.mrb[0].mxu0 %v1376
        %v1415 = vpop.f32.mrb[0].mxu0
        %v1416 = vadd.f32 0.0, %v1415
        %v1417 = vpop.f32.mrb[0].mxu0
        %v1418 = vpop.f32.mrb[0].mxu0
        %v1419 = vpop.f32.mrb[0].mxu0
        %1420 = vdwg.mxu0
        %v1421 = vld [vmem:[%s484] sm:$0xff]
        %v1422 = vlaneseq
        %v1423 = vand.u32 %v1422, 127
        %1424 = vset.pattern.permute.xlu0 0
        %1425 = vperm.xlu0 %1424, %v1421
        %v1426 = vpop.permute.xlu0 %1425
        %vm1427 = vcmp.lt.s32.totalorder %v1423, %v1426
        %v1428 = vsel %vm1427, %v1278, -1000000.0
        %v1429 = vsel %vm1427, %v1324, -1000000.0
        %v1430 = vsel %vm1427, %v1370, -1000000.0
        %v1431 = vsel %vm1427, %v1416, -1000000.0
        %vm1432 = vcmask 64512
        %v1433 = vsel %vm1432, %v1428, -inf
        %1434 = vmax.xlane.f32.xlu0 %v1433
        %v1435 = vpop.xlane.xlu0 %1434
        %v1436 = vsel %vm1432, %v1429, -inf
        %1437 = vmax.xlane.f32.xlu0 %v1436
        %v1438 = vpop.xlane.xlu0 %1437
        %v1439 = vsel %vm1432, %v1430, -inf
        %1440 = vmax.xlane.f32.xlu0 %v1439
        %v1441 = vpop.xlane.xlu0 %1440
        %v1442 = vsel %vm1432, %v1431, -inf
        %1443 = vmax.xlane.f32.xlu0 %v1442
        %v1444 = vpop.xlane.xlu0 %1443
        %v1445 = vsub.f32 %v1428, %v1435
        %v1446 = vsub.f32 %v1429, %v1438
        %v1447 = vsub.f32 %v1430, %v1441
        %v1448 = vsub.f32 %v1431, %v1444
        %v1449 = vmul.f32 %v1445, 1.442695
        %v1450 = vpow.pop %v1449
        %v1451 = vmul.f32 %v1446, 1.442695
        %v1452 = vpow.pop %v1451
        %v1453 = vmul.f32 %v1447, 1.442695
        %v1454 = vpow.pop %v1453
        %v1455 = vmul.f32 %v1448, 1.442695
        %v1456 = vpow.pop %v1455
        %v1457 = vsel %vm1432, %v1450, 0.0
        %1458 = vadd.xlane.f32.xlu0 %v1457
        %v1459 = vpop.xlane.xlu0 %1458
        %v1460 = vsel %vm1432, %v1452, 0.0
        %1461 = vadd.xlane.f32.xlu0 %v1460
        %v1462 = vpop.xlane.xlu0 %1461
        %v1463 = vsel %vm1432, %v1454, 0.0
        %1464 = vadd.xlane.f32.xlu0 %v1463
        %v1465 = vpop.xlane.xlu0 %1464
        %v1466 = vsel %vm1432, %v1456, 0.0
        %1467 = vadd.xlane.f32.xlu0 %v1466
        %v1468 = vpop.xlane.xlu0 %1467
        %v1469 = vrcp.pop %v1459
        %v1470 = vrcp.pop %v1462
        %v1471 = vrcp.pop %v1465
        %v1472 = vrcp.pop %v1468
        %v1473 = vmul.f32 %v1450, %v1469
        %v1474 = vmul.f32 %v1452, %v1470
        %v1475 = vmul.f32 %v1454, %v1471
        %v1476 = vmul.f32 %v1456, %v1472
        %v1477 = vpack.c.bf16 %v1473, %v1473
        %v1478 = vpack.c.bf16 %v1474, %v1474
        %v1479 = vpack.c.bf16 %v1475, %v1475
        %v1480 = vpack.c.bf16 %v1476, %v1476
        %v1482 = vsel %vm1432, %v1477, 0
        %vm1484 = vcmask 1043456
        %v1486 = vsel %vm1484, %v1226, 0
        %1488 = vmatprep.subr.bf16.mxu0 0
        %1489 = vmatpush1.bf16.msra.mxu0 %v1486
        %1490 = vmatprep.subr.bf16.mxu0 0
        %1491 = vmatpush1.bf16.msra.mxu0 0
        %1492 = vmatprep.subr.bf16.mxu0 0
        %1493 = vmatpush1.bf16.msra.mxu0 0
        %1494 = vmatprep.subr.bf16.mxu0 0
        %1495 = vmatpush1.bf16.msra.mxu0 0
        %1496 = vmatprep.subr.bf16.mxu0 0
        %1497 = vmatpush1.bf16.msra.mxu0 0
        %1498 = vmatprep.subr.bf16.mxu0 0
        %1499 = vmatpush1.bf16.msra.mxu0 0
        %1500 = vmatprep.subr.bf16.mxu0 0
        %1501 = vmatpush1.bf16.msra.mxu0 0
        %1502 = vmatprep.subr.bf16.mxu0 0
        %1503 = vmatpush1.bf16.msra.mxu0 0
        %1504 = vmatprep.subr.bf16.mxu0 0
        %1505 = vmatpush1.bf16.msra.mxu0 0
        %1506 = vmatprep.subr.bf16.mxu0 0
        %1507 = vmatpush1.bf16.msra.mxu0 0
        %1508 = vmatprep.subr.bf16.mxu0 0
        %1509 = vmatpush1.bf16.msra.mxu0 0
        %1510 = vmatprep.subr.bf16.mxu0 0
        %1511 = vmatpush1.bf16.msra.mxu0 0
        %1512 = vmatprep.subr.bf16.mxu0 0
        %1513 = vmatpush1.bf16.msra.mxu0 0
        %1514 = vmatprep.subr.bf16.mxu0 0
        %1515 = vmatpush1.bf16.msra.mxu0 0
        %1516 = vmatprep.subr.bf16.mxu0 0
        %1517 = vmatpush1.bf16.msra.mxu0 0
        %1518 = vmatprep.subr.bf16.mxu0 0
        %1519 = vmatpush1.bf16.msra.mxu0 0
        %1520 = vmatprep.mubr.bf16.mxu0 0
        %1521 = vmatmul.mubr.bf16.gmra.mrb[0].mxu0 %v1482
        %v1522 = vpop.f32.mrb[0].mxu0
        %v1523 = vadd.f32 0.0, %v1522
        %v1524 = vpop.f32.mrb[0].mxu0
        %v1525 = vpop.f32.mrb[0].mxu0
        %v1526 = vpop.f32.mrb[0].mxu0
        %1527 = vdwg.mxu0
        %v1529 = vsel %vm1432, %v1478, 0
        %v1532 = vsel %vm1484, %v1229, 0
        %1534 = vmatprep.subr.bf16.mxu0 0
        %1535 = vmatpush1.bf16.msra.mxu0 %v1532
        %1536 = vmatprep.subr.bf16.mxu0 0
        %1537 = vmatpush1.bf16.msra.mxu0 0
        %1538 = vmatprep.subr.bf16.mxu0 0
        %1539 = vmatpush1.bf16.msra.mxu0 0
        %1540 = vmatprep.subr.bf16.mxu0 0
        %1541 = vmatpush1.bf16.msra.mxu0 0
        %1542 = vmatprep.subr.bf16.mxu0 0
        %1543 = vmatpush1.bf16.msra.mxu0 0
        %1544 = vmatprep.subr.bf16.mxu0 0
        %1545 = vmatpush1.bf16.msra.mxu0 0
        %1546 = vmatprep.subr.bf16.mxu0 0
        %1547 = vmatpush1.bf16.msra.mxu0 0
        %1548 = vmatprep.subr.bf16.mxu0 0
        %1549 = vmatpush1.bf16.msra.mxu0 0
        %1550 = vmatprep.subr.bf16.mxu0 0
        %1551 = vmatpush1.bf16.msra.mxu0 0
        %1552 = vmatprep.subr.bf16.mxu0 0
        %1553 = vmatpush1.bf16.msra.mxu0 0
        %1554 = vmatprep.subr.bf16.mxu0 0
        %1555 = vmatpush1.bf16.msra.mxu0 0
        %1556 = vmatprep.subr.bf16.mxu0 0
        %1557 = vmatpush1.bf16.msra.mxu0 0
        %1558 = vmatprep.subr.bf16.mxu0 0
        %1559 = vmatpush1.bf16.msra.mxu0 0
        %1560 = vmatprep.subr.bf16.mxu0 0
        %1561 = vmatpush1.bf16.msra.mxu0 0
        %1562 = vmatprep.subr.bf16.mxu0 0
        %1563 = vmatpush1.bf16.msra.mxu0 0
        %1564 = vmatprep.subr.bf16.mxu0 0
        %1565 = vmatpush1.bf16.msra.mxu0 0
        %1566 = vmatprep.mubr.bf16.mxu0 0
        %1567 = vmatmul.mubr.bf16.gmra.mrb[0].mxu0 %v1529
        %v1568 = vpop.f32.mrb[0].mxu0
        %v1569 = vadd.f32 0.0, %v1568
        %v1570 = vpop.f32.mrb[0].mxu0
        %v1571 = vpop.f32.mrb[0].mxu0
        %v1572 = vpop.f32.mrb[0].mxu0
        %1573 = vdwg.mxu0
        %v1575 = vsel %vm1432, %v1479, 0
        %v1578 = vsel %vm1484, %v1232, 0
        %1580 = vmatprep.subr.bf16.mxu0 0
        %1581 = vmatpush1.bf16.msra.mxu0 %v1578
        %1582 = vmatprep.subr.bf16.mxu0 0
        %1583 = vmatpush1.bf16.msra.mxu0 0
        %1584 = vmatprep.subr.bf16.mxu0 0
        %1585 = vmatpush1.bf16.msra.mxu0 0
        %1586 = vmatprep.subr.bf16.mxu0 0
        %1587 = vmatpush1.bf16.msra.mxu0 0
        %1588 = vmatprep.subr.bf16.mxu0 0
        %1589 = vmatpush1.bf16.msra.mxu0 0
        %1590 = vmatprep.subr.bf16.mxu0 0
        %1591 = vmatpush1.bf16.msra.mxu0 0
        %1592 = vmatprep.subr.bf16.mxu0 0
        %1593 = vmatpush1.bf16.msra.mxu0 0
        %1594 = vmatprep.subr.bf16.mxu0 0
        %1595 = vmatpush1.bf16.msra.mxu0 0
        %1596 = vmatprep.subr.bf16.mxu0 0
        %1597 = vmatpush1.bf16.msra.mxu0 0
        %1598 = vmatprep.subr.bf16.mxu0 0
        %1599 = vmatpush1.bf16.msra.mxu0 0
        %1600 = vmatprep.subr.bf16.mxu0 0
        %1601 = vmatpush1.bf16.msra.mxu0 0
        %1602 = vmatprep.subr.bf16.mxu0 0
        %1603 = vmatpush1.bf16.msra.mxu0 0
        %1604 = vmatprep.subr.bf16.mxu0 0
        %1605 = vmatpush1.bf16.msra.mxu0 0
        %1606 = vmatprep.subr.bf16.mxu0 0
        %1607 = vmatpush1.bf16.msra.mxu0 0
        %1608 = vmatprep.subr.bf16.mxu0 0
        %1609 = vmatpush1.bf16.msra.mxu0 0
        %1610 = vmatprep.subr.bf16.mxu0 0
        %1611 = vmatpush1.bf16.msra.mxu0 0
        %1612 = vmatprep.mubr.bf16.mxu0 0
        %1613 = vmatmul.mubr.bf16.gmra.mrb[0].mxu0 %v1575
        %v1614 = vpop.f32.mrb[0].mxu0
        %v1615 = vadd.f32 0.0, %v1614
        %v1616 = vpop.f32.mrb[0].mxu0
        %v1617 = vpop.f32.mrb[0].mxu0
        %v1618 = vpop.f32.mrb[0].mxu0
        %1619 = vdwg.mxu0
        %v1621 = vsel %vm1432, %v1480, 0
        %v1624 = vsel %vm1484, %v1235, 0
        %1626 = vmatprep.subr.bf16.mxu0 0
        %1627 = vmatpush1.bf16.msra.mxu0 %v1624
        %1628 = vmatprep.subr.bf16.mxu0 0
        %1629 = vmatpush1.bf16.msra.mxu0 0
        %1630 = vmatprep.subr.bf16.mxu0 0
        %1631 = vmatpush1.bf16.msra.mxu0 0
        %1632 = vmatprep.subr.bf16.mxu0 0
        %1633 = vmatpush1.bf16.msra.mxu0 0
        %1634 = vmatprep.subr.bf16.mxu0 0
        %1635 = vmatpush1.bf16.msra.mxu0 0
        %1636 = vmatprep.subr.bf16.mxu0 0
        %1637 = vmatpush1.bf16.msra.mxu0 0
        %1638 = vmatprep.subr.bf16.mxu0 0
        %1639 = vmatpush1.bf16.msra.mxu0 0
        %1640 = vmatprep.subr.bf16.mxu0 0
        %1641 = vmatpush1.bf16.msra.mxu0 0
        %1642 = vmatprep.subr.bf16.mxu0 0
        %1643 = vmatpush1.bf16.msra.mxu0 0
        %1644 = vmatprep.subr.bf16.mxu0 0
        %1645 = vmatpush1.bf16.msra.mxu0 0
        %1646 = vmatprep.subr.bf16.mxu0 0
        %1647 = vmatpush1.bf16.msra.mxu0 0
        %1648 = vmatprep.subr.bf16.mxu0 0
        %1649 = vmatpush1.bf16.msra.mxu0 0
        %1650 = vmatprep.subr.bf16.mxu0 0
        %1651 = vmatpush1.bf16.msra.mxu0 0
        %1652 = vmatprep.subr.bf16.mxu0 0
        %1653 = vmatpush1.bf16.msra.mxu0 0
        %1654 = vmatprep.subr.bf16.mxu0 0
        %1655 = vmatpush1.bf16.msra.mxu0 0
        %1656 = vmatprep.subr.bf16.mxu0 0
        %1657 = vmatpush1.bf16.msra.mxu0 0
        %1658 = vmatprep.mubr.bf16.mxu0 0
        %1659 = vmatmul.mubr.bf16.gmra.mrb[0].mxu0 %v1621
        %v1660 = vpop.f32.mrb[0].mxu0
        %v1661 = vadd.f32 0.0, %v1660
        %v1662 = vpop.f32.mrb[0].mxu0
        %v1663 = vpop.f32.mrb[0].mxu0
        %v1664 = vpop.f32.mrb[0].mxu0
        %1665 = vdwg.mxu0
        %v1666 = vpack.c.bf16 %v1523, %v1523
        %v1668 = vunpack.c.l.s4 1983009808
        %v1669 = vunpack.c.0.s8 %v1668
        %v1670 = vlaneseq
        %v1671 = vshrl.u32 %v1670, 7
        %v1672 = vsub.s32 %v1669, %v1671
        %v1673 = vrot.slane %v1666, %v1672
        %v1674 = vpack.c.bf16 %v1615, %v1615
        %v1676 = vunpack.c.l.s4 1983009808
        %v1677 = vunpack.c.0.s8 %v1676
        %v1678 = vlaneseq
        %v1679 = vshrl.u32 %v1678, 7
        %v1680 = vsub.s32 %v1677, %v1679
        %v1681 = vrot.slane %v1674, %v1680
        %v1682 = vcombine.low %v1673, %v1681
        %v1683 = vcombine.high %v1673, %v1681
        %v1685 = vunpack.c.l.s4 1934713408
        %v1686 = vunpack.c.0.s8 %v1685
        %v1687 = vlaneseq
        %v1688 = vshrl.u32 %v1687, 7
        %v1689 = vsub.s32 %v1686, %v1688
        %v1690 = vrot.slane %v1682, %v1689
        %v1692 = vunpack.c.l.s4 1934713408
        %v1693 = vunpack.c.0.s8 %v1692
        %v1694 = vlaneseq
        %v1695 = vshrl.u32 %v1694, 7
        %v1696 = vsub.s32 %v1693, %v1695
        %v1697 = vrot.slane %v1683, %v1696
        %v1698 = vcombine.high %v1690, 0
        %v1699 = vcombine.high %v1697, 0
        %v1700 = vpack.c.bf16 %v1569, %v1569
        %v1702 = vunpack.c.l.s4 1983009808
        %v1703 = vunpack.c.0.s8 %v1702
        %v1704 = vlaneseq
        %v1705 = vshrl.u32 %v1704, 7
        %v1706 = vsub.s32 %v1703, %v1705
        %v1707 = vrot.slane %v1700, %v1706
        %v1708 = vpack.c.bf16 %v1661, %v1661
        %v1710 = vunpack.c.l.s4 1983009808
        %v1711 = vunpack.c.0.s8 %v1710
        %v1712 = vlaneseq
        %v1713 = vshrl.u32 %v1712, 7
        %v1714 = vsub.s32 %v1711, %v1713
        %v1715 = vrot.slane %v1708, %v1714
        %v1716 = vcombine.low %v1707, %v1715
        %v1717 = vcombine.high %v1707, %v1715
        %v1719 = vunpack.c.l.s4 1934713408
        %v1720 = vunpack.c.0.s8 %v1719
        %v1721 = vlaneseq
        %v1722 = vshrl.u32 %v1721, 7
        %v1723 = vsub.s32 %v1720, %v1722
        %v1724 = vrot.slane %v1716, %v1723
        %v1726 = vunpack.c.l.s4 1934713408
        %v1727 = vunpack.c.0.s8 %v1726
        %v1728 = vlaneseq
        %v1729 = vshrl.u32 %v1728, 7
        %v1730 = vsub.s32 %v1727, %v1729
        %v1731 = vrot.slane %v1717, %v1730
        %v1732 = vcombine.high %v1724, 0
        %v1733 = vcombine.high %v1731, 0
        %v1736 = vpack.i.b16 %v1724, %v1690
        %v1738 = vshrl.u32 %v1690, 16
        %v1739 = vshrl.u32 %v1724, 16
        %v1740 = vpack.i.b16 %v1739, %v1738
        %v1744 = vpack.i.b16 %v1732, %v1698
        %v1746 = vshrl.u32 %v1698, 16
        %v1747 = vshrl.u32 %v1732, 16
        %v1748 = vpack.i.b16 %v1747, %v1746
        %v1752 = vpack.i.b16 %v1731, %v1697
        %v1754 = vshrl.u32 %v1697, 16
        %v1755 = vshrl.u32 %v1731, 16
        %v1756 = vpack.i.b16 %v1755, %v1754
        %v1760 = vpack.i.b16 %v1733, %v1699
        %v1762 = vshrl.u32 %v1699, 16
        %v1763 = vshrl.u32 %v1733, 16
        %v1764 = vpack.i.b16 %v1763, %v1762
        %v1766 = vcombine.low %v1736, %v1752
        %v1768 = vunpack.c.l.s4 1983009808
        %v1769 = vunpack.c.0.s8 %v1768
        %v1770 = vlaneseq
        %v1771 = vshrl.u32 %v1770, 7
        %v1772 = vsub.s32 %v1769, %v1771
        %v1773 = vrot.slane %v1766, %v1772
        %v1774 = vcombine.low %v1744, %v1760
        %v1776 = vunpack.c.l.s4 1983009808
        %v1777 = vunpack.c.0.s8 %v1776
        %v1778 = vlaneseq
        %v1779 = vshrl.u32 %v1778, 7
        %v1780 = vsub.s32 %v1777, %v1779
        %v1781 = vrot.slane %v1774, %v1780
        %v1782 = vcombine.low %v1773, %v1781
        %v1784 = vunpack.c.l.s4 1934713408
        %v1785 = vunpack.c.0.s8 %v1784
        %v1786 = vlaneseq
        %v1787 = vshrl.u32 %v1786, 7
        %v1788 = vsub.s32 %v1785, %v1787
        %v1789 = vrot.slane %v1782, %v1788
        %v1790 = vcombine.high %v1789, 0
        %v1791 = vcombine.low %v1740, %v1756
        %v1793 = vunpack.c.l.s4 1983009808
        %v1794 = vunpack.c.0.s8 %v1793
        %v1795 = vlaneseq
        %v1796 = vshrl.u32 %v1795, 7
        %v1797 = vsub.s32 %v1794, %v1796
        %v1798 = vrot.slane %v1791, %v1797
        %v1799 = vcombine.low %v1748, %v1764
        %v1801 = vunpack.c.l.s4 1983009808
        %v1802 = vunpack.c.0.s8 %v1801
        %v1803 = vlaneseq
        %v1804 = vshrl.u32 %v1803, 7
        %v1805 = vsub.s32 %v1802, %v1804
        %v1806 = vrot.slane %v1799, %v1805
        %v1807 = vcombine.low %v1798, %v1806
        %v1809 = vunpack.c.l.s4 1934713408
        %v1810 = vunpack.c.0.s8 %v1809
        %v1811 = vlaneseq
        %v1812 = vshrl.u32 %v1811, 7
        %v1813 = vsub.s32 %v1810, %v1812
        %v1814 = vrot.slane %v1807, %v1813
        %v1815 = vcombine.high %v1814, 0
        %v1818 = vpack.i.b16 %v1814, %v1789
        %v1819 = vshrl.u32 %v1789, 16
        %v1820 = vshrl.u32 %v1814, 16
        %v1821 = vpack.i.b16 %v1820, %v1819
        %v1824 = vpack.i.b16 %v1815, %v1790
        %v1825 = vshrl.u32 %v1790, 16
        %v1826 = vshrl.u32 %v1815, 16
        %v1827 = vpack.i.b16 %v1826, %v1825
        %1828 = vrot.lane.b32.xlu0 %v1821, 32
        %v1829 = vpop.permute.xlu0 %1828
        %1830 = vrot.lane.b32.xlu0 %v1824, 64
        %v1831 = vpop.permute.xlu0 %1830
        %1832 = vrot.lane.b32.xlu0 %v1827, 96
        %v1833 = vpop.permute.xlu0 %1832
        %v1836 = vsel %vm1236, %v1818, %v1829
        %vm1837 = vcmask 523264
        %v1839 = vsel %vm1837, %v1836, %v1831
        %vm1840 = vcmask 785408
        %v1842 = vsel %vm1840, %v1839, %v1833
        %v1844 = vld [vmem:[#allocation5] sm:$0xf]
        %v1845 = vld [vmem:[#allocation5 + $0x4] sm:$0xf]
        %v1846 = vld [vmem:[#allocation5 + $0x8] sm:$0xf]
        %v1847 = vld [vmem:[#allocation5 + $0xc] sm:$0xf]
        %v1848 = vld [vmem:[#allocation5 + $0x10] sm:$0xf]
        %v1849 = vld [vmem:[#allocation5 + $0x14] sm:$0xf]
        %v1850 = vld [vmem:[#allocation5 + $0x18] sm:$0xf]
        %v1851 = vld [vmem:[#allocation5 + $0x1c] sm:$0xf]
        %v1852 = vld [vmem:[#allocation5 + $0x20] sm:$0xf]
        %v1853 = vld [vmem:[#allocation5 + $0x24] sm:$0xf]
        %v1854 = vld [vmem:[#allocation5 + $0x28] sm:$0xf]
        %v1855 = vld [vmem:[#allocation5 + $0x2c] sm:$0xf]
        %v1856 = vld [vmem:[#allocation5 + $0x30] sm:$0xf]
        %v1857 = vld [vmem:[#allocation5 + $0x34] sm:$0xf]
        %v1858 = vld [vmem:[#allocation5 + $0x38] sm:$0xf]
        %v1859 = vld [vmem:[#allocation5 + $0x3c] sm:$0xf]
        %v1876 = vunpack.c.l.b16 %v1844
        %v1877 = vunpack.c.l.b16 %v1845
        %v1878 = vunpack.c.l.b16 %v1846
        %v1879 = vunpack.c.l.b16 %v1847
        %v1880 = vunpack.c.l.b16 %v1848
        %v1881 = vunpack.c.l.b16 %v1849
        %v1882 = vunpack.c.l.b16 %v1850
        %v1883 = vunpack.c.l.b16 %v1851
        %v1884 = vunpack.c.l.b16 %v1852
        %v1885 = vunpack.c.l.b16 %v1853
        %v1886 = vunpack.c.l.b16 %v1854
        %v1887 = vunpack.c.l.b16 %v1855
        %v1888 = vunpack.c.l.b16 %v1856
        %v1889 = vunpack.c.l.b16 %v1857
        %v1890 = vunpack.c.l.b16 %v1858
        %v1891 = vunpack.c.l.b16 %v1859
        %v1892 = vpack.c.b16 %v1877, %v1876
        %v1893 = vpack.c.b16 %v1879, %v1878
        %v1894 = vpack.c.b16 %v1881, %v1880
        %v1895 = vpack.c.b16 %v1883, %v1882
        %v1896 = vpack.c.b16 %v1885, %v1884
        %v1897 = vpack.c.b16 %v1887, %v1886
        %v1898 = vpack.c.b16 %v1889, %v1888
        %v1899 = vpack.c.b16 %v1891, %v1890
        %1908 = vmatprep.subr.bf16.mxu0 0
        %1909 = vmatpush1.bf16.msra.mxu0 %v1892
        %1910 = vmatprep.subr.bf16.mxu0 0
        %1911 = vmatpush1.bf16.msra.mxu0 %v1893
        %1912 = vmatprep.subr.bf16.mxu0 0
        %1913 = vmatpush1.bf16.msra.mxu0 %v1894
        %1914 = vmatprep.subr.bf16.mxu0 0
        %1915 = vmatpush1.bf16.msra.mxu0 %v1895
        %1916 = vmatprep.subr.bf16.mxu0 0
        %1917 = vmatpush1.bf16.msra.mxu0 %v1896
        %1918 = vmatprep.subr.bf16.mxu0 0
        %1919 = vmatpush1.bf16.msra.mxu0 %v1897
        %1920 = vmatprep.subr.bf16.mxu0 0
        %1921 = vmatpush1.bf16.msra.mxu0 %v1898
        %1922 = vmatprep.subr.bf16.mxu0 0
        %1923 = vmatpush1.bf16.msra.mxu0 %v1899
        %1924 = vmatprep.subr.bf16.mxu0 0
        %1925 = vmatpush1.bf16.msra.mxu0 0
        %1926 = vmatprep.subr.bf16.mxu0 0
        %1927 = vmatpush1.bf16.msra.mxu0 0
        %1928 = vmatprep.subr.bf16.mxu0 0
        %1929 = vmatpush1.bf16.msra.mxu0 0
        %1930 = vmatprep.subr.bf16.mxu0 0
        %1931 = vmatpush1.bf16.msra.mxu0 0
        %1932 = vmatprep.subr.bf16.mxu0 0
        %1933 = vmatpush1.bf16.msra.mxu0 0
        %1934 = vmatprep.subr.bf16.mxu0 0
        %1935 = vmatpush1.bf16.msra.mxu0 0
        %1936 = vmatprep.subr.bf16.mxu0 0
        %1937 = vmatpush1.bf16.msra.mxu0 0
        %1938 = vmatprep.subr.bf16.mxu0 0
        %1939 = vmatpush1.bf16.msra.mxu0 0
        %1940 = vmatprep.mubr.bf16.mxu0 0
        %1941 = vmatmul.mubr.bf16.gmra.mrb[0].mxu0 %v1842
        %v1942 = vpop.f32.mrb[0].mxu0
        %v1943 = vadd.f32 0.0, %v1942
        %v1944 = vpop.f32.mrb[0].mxu0
        %v1945 = vpop.f32.mrb[0].mxu0
        %v1946 = vpop.f32.mrb[0].mxu0
        %1947 = vdwg.mxu0
        %v1948 = vadd.f32 %v486, %v1943
        %v1949 = vld [vmem:[%s4] sm:$0x1]
        %v1950 = vld [vmem:[%s5] sm:$0x1]
        %1951 = vadd.xlane.f32.xlu0 %v1948
        %v1952 = vpop.xlane.xlu0 %1951
        %v1953 = vrcp.pop 128.0
        %v1954 = vmul.f32 %v1952, %v1953
        %v1955 = vsub.f32 %v1948, %v1954
        %v1956 = vmul.f32 %v1955, %v1955
        %1957 = vadd.xlane.f32.xlu0 %v1956
        %v1958 = vpop.xlane.xlu0 %1957
        %v1959 = vmul.f32 %v1958, %v1953
        %v1960 = vadd.f32 %v1959, 1e-05
        %v1961 = vrsqrt.pop %v1960
        %v1962 = vmul.f32 %v1955, %v1961
        %v1964 = vlaneseq
        %v1965 = vshrl.u32 %v1964, 7
        %v1966 = vsub.s32 0, %v1965
        %v1967 = vrot.slane %v1949, %v1966
        %v1969 = vmul.f32 %v1962, %v1967
        %v1971 = vlaneseq
        %v1972 = vshrl.u32 %v1971, 7
        %v1973 = vsub.s32 0, %v1972
        %v1974 = vrot.slane %v1950, %v1973
        %v1976 = vadd.f32 %v1969, %v1974
        %v1977 = vpack.c.bf16 %v1976, %v1976
        %v1978 = vld [vmem:[#allocation7] sm:$0xff]
        %v1979 = vld [vmem:[#allocation7 + $0x8] sm:$0xff]
        %v1980 = vld [vmem:[#allocation7 + $0x10] sm:$0xff]
        %v1981 = vld [vmem:[#allocation7 + $0x18] sm:$0xff]
        %v1982 = vld [vmem:[#allocation7 + $0x20] sm:$0xff]
        %v1983 = vld [vmem:[#allocation7 + $0x28] sm:$0xff]
        %v1984 = vld [vmem:[#allocation7 + $0x30] sm:$0xff]
        %v1985 = vld [vmem:[#allocation7 + $0x38] sm:$0xff]
        %v1986 = vld [vmem:[#allocation7 + $0x40] sm:$0xff]
        %v1987 = vld [vmem:[#allocation7 + $0x48] sm:$0xff]
        %v1988 = vld [vmem:[#allocation7 + $0x50] sm:$0xff]
        %v1989 = vld [vmem:[#allocation7 + $0x58] sm:$0xff]
        %v1990 = vld [vmem:[#allocation7 + $0x60] sm:$0xff]
        %v1991 = vld [vmem:[#allocation7 + $0x68] sm:$0xff]
        %v1992 = vld [vmem:[#allocation7 + $0x70] sm:$0xff]
        %v1993 = vld [vmem:[#allocation7 + $0x78] sm:$0xff]
        %v1994 = vld [vmem:[%s7] sm:$0x3]
        %v1996 = vlaneseq
        %v1997 = vshrl.u32 %v1996, 7
        %v1998 = vsub.s32 0, %v1997
        %v1999 = vrot.slane %v1994, %v1998
        %v2000 = vlaneseq
        %v2001 = vshrl.u32 %v2000, 7
        %v2002 = vsub.s32 1, %v2001
        %v2003 = vrot.slane %v1994, %v2002
        %v2022 = vunpack.c.l.b16 %v1978
        %v2023 = vunpack.c.h.b16 %v1978
        %v2024 = vunpack.c.l.b16 %v1979
        %v2025 = vunpack.c.h.b16 %v1979
        %v2026 = vunpack.c.l.b16 %v1980
        %v2027 = vunpack.c.h.b16 %v1980
        %v2028 = vunpack.c.l.b16 %v1981
        %v2029 = vunpack.c.h.b16 %v1981
        %v2030 = vunpack.c.l.b16 %v1982
        %v2031 = vunpack.c.h.b16 %v1982
        %v2032 = vunpack.c.l.b16 %v1983
        %v2033 = vunpack.c.h.b16 %v1983
        %v2034 = vunpack.c.l.b16 %v1984
        %v2035 = vunpack.c.h.b16 %v1984
        %v2036 = vunpack.c.l.b16 %v1985
        %v2037 = vunpack.c.h.b16 %v1985
        %v2038 = vunpack.c.l.b16 %v1986
        %v2039 = vunpack.c.h.b16 %v1986
        %v2040 = vunpack.c.l.b16 %v1987
        %v2041 = vunpack.c.h.b16 %v1987
        %v2042 = vunpack.c.l.b16 %v1988
        %v2043 = vunpack.c.h.b16 %v1988
        %v2044 = vunpack.c.l.b16 %v1989
        %v2045 = vunpack.c.h.b16 %v1989
        %v2046 = vunpack.c.l.b16 %v1990
        %v2047 = vunpack.c.h.b16 %v1990
        %v2048 = vunpack.c.l.b16 %v1991
        %v2049 = vunpack.c.h.b16 %v1991
        %v2050 = vunpack.c.l.b16 %v1992
        %v2051 = vunpack.c.h.b16 %v1992
        %v2052 = vunpack.c.l.b16 %v1993
        %v2053 = vunpack.c.h.b16 %v1993
        %v2054 = vpack.c.b16 %v2024, %v2022
        %v2055 = vpack.c.b16 %v2025, %v2023
        %v2056 = vpack.c.b16 %v2028, %v2026
        %v2057 = vpack.c.b16 %v2029, %v2027
        %v2058 = vpack.c.b16 %v2032, %v2030
        %v2059 = vpack.c.b16 %v2033, %v2031
        %v2060 = vpack.c.b16 %v2036, %v2034
        %v2061 = vpack.c.b16 %v2037, %v2035
        %v2062 = vpack.c.b16 %v2040, %v2038
        %v2063 = vpack.c.b16 %v2041, %v2039
        %v2064 = vpack.c.b16 %v2044, %v2042
        %v2065 = vpack.c.b16 %v2045, %v2043
        %v2066 = vpack.c.b16 %v2048, %v2046
        %v2067 = vpack.c.b16 %v2049, %v2047
        %v2068 = vpack.c.b16 %v2052, %v2050
        %v2069 = vpack.c.b16 %v2053, %v2051
        %2086 = vmatprep.subr.bf16.mxu0 %v2055
        %2087 = vmatpush1.bf16.msra.mxu0 %v2054
        %2088 = vmatprep.subr.bf16.mxu0 %v2057
        %2089 = vmatpush1.bf16.msra.mxu0 %v2056
        %2090 = vmatprep.subr.bf16.mxu0 %v2059
        %2091 = vmatpush1.bf16.msra.mxu0 %v2058
        %2092 = vmatprep.subr.bf16.mxu0 %v2061
        %2093 = vmatpush1.bf16.msra.mxu0 %v2060
        %2094 = vmatprep.subr.bf16.mxu0 %v2063
        %2095 = vmatpush1.bf16.msra.mxu0 %v2062
        %2096 = vmatprep.subr.bf16.mxu0 %v2065
        %2097 = vmatpush1.bf16.msra.mxu0 %v2064
        %2098 = vmatprep.subr.bf16.mxu0 %v2067
        %2099 = vmatpush1.bf16.msra.mxu0 %v2066
        %2100 = vmatprep.subr.bf16.mxu0 %v2069
        %2101 = vmatpush1.bf16.msra.mxu0 %v2068
        %2102 = vmatprep.subr.bf16.mxu0 0
        %2103 = vmatpush1.bf16.msra.mxu0 0
        %2104 = vmatprep.subr.bf16.mxu0 0
        %2105 = vmatpush1.bf16.msra.mxu0 0
        %2106 = vmatprep.subr.bf16.mxu0 0
        %2107 = vmatpush1.bf16.msra.mxu0 0
        %2108 = vmatprep.subr.bf16.mxu0 0
        %2109 = vmatpush1.bf16.msra.mxu0 0
        %2110 = vmatprep.subr.bf16.mxu0 0
        %2111 = vmatpush1.bf16.msra.mxu0 0
        %2112 = vmatprep.subr.bf16.mxu0 0
        %2113 = vmatpush1.bf16.msra.mxu0 0
        %2114 = vmatprep.subr.bf16.mxu0 0
        %2115 = vmatpush1.bf16.msra.mxu0 0
        %2116 = vmatprep.subr.bf16.mxu0 0
        %2117 = vmatpush1.bf16.msra.mxu0 0
        %2118 = vmatprep.mubr.bf16.mxu0 0
        %2119 = vmatmul.mubr.bf16.gmra.mrb[0].mxu0 %v1977
        %v2120 = vpop.f32.mrb[0].mxu0
        %v2121 = vadd.f32 %v1999, %v2120
        %v2122 = vpop.f32.mrb[0].mxu0
        %v2123 = vadd.f32 %v2003, %v2122
        %v2124 = vpop.f32.mrb[0].mxu0
        %v2125 = vpop.f32.mrb[0].mxu0
        %2126 = vdwg.mxu0
        %v2127 = vmax.f32 %v2121, 0.0
        %v2128 = vmax.f32 %v2123, 0.0
        %v2129 = vpack.c.bf16 %v2127, %v2127
        %v2130 = vpack.c.bf16 %v2128, %v2128
        %v2131 = vld [vmem:[#allocation8] sm:$0xf]
        %v2132 = vld [vmem:[#allocation8 + $0x4] sm:$0xf]
        %v2133 = vld [vmem:[#allocation8 + $0x8] sm:$0xf]
        %v2134 = vld [vmem:[#allocation8 + $0xc] sm:$0xf]
        %v2135 = vld [vmem:[#allocation8 + $0x10] sm:$0xf]
        %v2136 = vld [vmem:[#allocation8 + $0x14] sm:$0xf]
        %v2137 = vld [vmem:[#allocation8 + $0x18] sm:$0xf]
        %v2138 = vld [vmem:[#allocation8 + $0x1c] sm:$0xf]
        %v2139 = vld [vmem:[#allocation8 + $0x20] sm:$0xf]
        %v2140 = vld [vmem:[#allocation8 + $0x24] sm:$0xf]
        %v2141 = vld [vmem:[#allocation8 + $0x28] sm:$0xf]
        %v2142 = vld [vmem:[#allocation8 + $0x2c] sm:$0xf]
        %v2143 = vld [vmem:[#allocation8 + $0x30] sm:$0xf]
        %v2144 = vld [vmem:[#allocation8 + $0x34] sm:$0xf]
        %v2145 = vld [vmem:[#allocation8 + $0x38] sm:$0xf]
        %v2146 = vld [vmem:[#allocation8 + $0x3c] sm:$0xf]
        %v2147 = vld [vmem:[#allocation8 + $0x40] sm:$0xf]
        %v2148 = vld [vmem:[#allocation8 + $0x44] sm:$0xf]
        %v2149 = vld [vmem:[#allocation8 + $0x48] sm:$0xf]
        %v2150 = vld [vmem:[#allocation8 + $0x4c] sm:$0xf]
        %v2151 = vld [vmem:[#allocation8 + $0x50] sm:$0xf]
        %v2152 = vld [vmem:[#allocation8 + $0x54] sm:$0xf]
        %v2153 = vld [vmem:[#allocation8 + $0x58] sm:$0xf]
        %v2154 = vld [vmem:[#allocation8 + $0x5c] sm:$0xf]
        %v2155 = vld [vmem:[#allocation8 + $0x60] sm:$0xf]
        %v2156 = vld [vmem:[#allocation8 + $0x64] sm:$0xf]
        %v2157 = vld [vmem:[#allocation8 + $0x68] sm:$0xf]
        %v2158 = vld [vmem:[#allocation8 + $0x6c] sm:$0xf]
        %v2159 = vld [vmem:[#allocation8 + $0x70] sm:$0xf]
        %v2160 = vld [vmem:[#allocation8 + $0x74] sm:$0xf]
        %v2161 = vld [vmem:[#allocation8 + $0x78] sm:$0xf]
        %v2162 = vld [vmem:[#allocation8 + $0x7c] sm:$0xf]
        %v2163 = vld [vmem:[%s9] sm:$0x1]
        %v2165 = vlaneseq
        %v2166 = vshrl.u32 %v2165, 7
        %v2167 = vsub.s32 0, %v2166
        %v2168 = vrot.slane %v2163, %v2167
        %v2202 = vunpack.c.l.b16 %v2131
        %v2203 = vunpack.c.l.b16 %v2132
        %v2204 = vunpack.c.l.b16 %v2133
        %v2205 = vunpack.c.l.b16 %v2134
        %v2206 = vunpack.c.l.b16 %v2135
        %v2207 = vunpack.c.l.b16 %v2136
        %v2208 = vunpack.c.l.b16 %v2137
        %v2209 = vunpack.c.l.b16 %v2138
        %v2210 = vunpack.c.l.b16 %v2139
        %v2211 = vunpack.c.l.b16 %v2140
        %v2212 = vunpack.c.l.b16 %v2141
        %v2213 = vunpack.c.l.b16 %v2142
        %v2214 = vunpack.c.l.b16 %v2143
        %v2215 = vunpack.c.l.b16 %v2144
        %v2216 = vunpack.c.l.b16 %v2145
        %v2217 = vunpack.c.l.b16 %v2146
        %v2218 = vunpack.c.l.b16 %v2147
        %v2219 = vunpack.c.l.b16 %v2148
        %v2220 = vunpack.c.l.b16 %v2149
        %v2221 = vunpack.c.l.b16 %v2150
        %v2222 = vunpack.c.l.b16 %v2151
        %v2223 = vunpack.c.l.b16 %v2152
        %v2224 = vunpack.c.l.b16 %v2153
        %v2225 = vunpack.c.l.b16 %v2154
        %v2226 = vunpack.c.l.b16 %v2155
        %v2227 = vunpack.c.l.b16 %v2156
        %v2228 = vunpack.c.l.b16 %v2157
        %v2229 = vunpack.c.l.b16 %v2158
        %v2230 = vunpack.c.l.b16 %v2159
        %v2231 = vunpack.c.l.b16 %v2160
        %v2232 = vunpack.c.l.b16 %v2161
        %v2233 = vunpack.c.l.b16 %v2162
        %v2234 = vpack.c.b16 %v2203, %v2202
        %v2235 = vpack.c.b16 %v2205, %v2204
        %v2236 = vpack.c.b16 %v2207, %v2206
        %v2237 = vpack.c.b16 %v2209, %v2208
        %v2238 = vpack.c.b16 %v2211, %v2210
        %v2239 = vpack.c.b16 %v2213, %v2212
        %v2240 = vpack.c.b16 %v2215, %v2214
        %v2241 = vpack.c.b16 %v2217, %v2216
        %v2242 = vpack.c.b16 %v2219, %v2218
        %v2243 = vpack.c.b16 %v2221, %v2220
        %v2244 = vpack.c.b16 %v2223, %v2222
        %v2245 = vpack.c.b16 %v2225, %v2224
        %v2246 = vpack.c.b16 %v2227, %v2226
        %v2247 = vpack.c.b16 %v2229, %v2228
        %v2248 = vpack.c.b16 %v2231, %v2230
        %v2249 = vpack.c.b16 %v2233, %v2232
        %2266 = vmatprep.subr.bf16.mxu0 0
        %2267 = vmatpush1.bf16.msra.mxu0 %v2234
        %2268 = vmatprep.subr.bf16.mxu0 0
        %2269 = vmatpush1.bf16.msra.mxu0 %v2235
        %2270 = vmatprep.subr.bf16.mxu0 0
        %2271 = vmatpush1.bf16.msra.mxu0 %v2236
        %2272 = vmatprep.subr.bf16.mxu0 0
        %2273 = vmatpush1.bf16.msra.mxu0 %v2237
        %2274 = vmatprep.subr.bf16.mxu0 0
        %2275 = vmatpush1.bf16.msra.mxu0 %v2238
        %2276 = vmatprep.subr.bf16.mxu0 0
        %2277 = vmatpush1.bf16.msra.mxu0 %v2239
        %2278 = vmatprep.subr.bf16.mxu0 0
        %2279 = vmatpush1.bf16.msra.mxu0 %v2240
        %2280 = vmatprep.subr.bf16.mxu0 0
        %2281 = vmatpush1.bf16.msra.mxu0 %v2241
        %2282 = vmatprep.subr.bf16.mxu0 0
        %2283 = vmatpush1.bf16.msra.mxu0 %v2242
        %2284 = vmatprep.subr.bf16.mxu0 0
        %2285 = vmatpush1.bf16.msra.mxu0 %v2243
        %2286 = vmatprep.subr.bf16.mxu0 0
        %2287 = vmatpush1.bf16.msra.mxu0 %v2244
        %2288 = vmatprep.subr.bf16.mxu0 0
        %2289 = vmatpush1.bf16.msra.mxu0 %v2245
        %2290 = vmatprep.subr.bf16.mxu0 0
        %2291 = vmatpush1.bf16.msra.mxu0 %v2246
        %2292 = vmatprep.subr.bf16.mxu0 0
        %2293 = vmatpush1.bf16.msra.mxu0 %v2247
        %2294 = vmatprep.subr.bf16.mxu0 0
        %2295 = vmatpush1.bf16.msra.mxu0 %v2248
        %2296 = vmatprep.subr.bf16.mxu0 0
        %2297 = vmatpush1.bf16.msra.mxu0 %v2249
        %2298 = vmatprep.mubr.bf16.mxu0 %v2130
        %2299 = vmatmul.mubr.bf16.gmra.mrb[0].mxu0 %v2129
        %v2300 = vpop.f32.mrb[0].mxu0
        %v2301 = vadd.f32 %v2168, %v2300
        %v2302 = vpop.f32.mrb[0].mxu0
        %v2303 = vpop.f32.mrb[0].mxu0
        %v2304 = vpop.f32.mrb[0].mxu0
        %2305 = vdwg.mxu0
        %v2306 = vadd.f32 %v1976, %v2301
        %v2307 = vld [vmem:[%s10] sm:$0x1]
        %v2308 = vld [vmem:[%s11] sm:$0x1]
        %2309 = vadd.xlane.f32.xlu0 %v2306
        %v2310 = vpop.xlane.xlu0 %2309
        %v2311 = vmul.f32 %v2310, %v1953
        %v2312 = vsub.f32 %v2306, %v2311
        %v2313 = vmul.f32 %v2312, %v2312
        %2314 = vadd.xlane.f32.xlu0 %v2313
        %v2315 = vpop.xlane.xlu0 %2314
        %v2316 = vmul.f32 %v2315, %v1953
        %v2317 = vadd.f32 %v2316, 1e-05
        %v2318 = vrsqrt.pop %v2317
        %v2319 = vmul.f32 %v2312, %v2318
        %v2321 = vlaneseq
        %v2322 = vshrl.u32 %v2321, 7
        %v2323 = vsub.s32 0, %v2322
        %v2324 = vrot.slane %v2307, %v2323
        %v2326 = vmul.f32 %v2319, %v2324
        %v2328 = vlaneseq
        %v2329 = vshrl.u32 %v2328, 7
        %v2330 = vsub.s32 0, %v2329
        %v2331 = vrot.slane %v2308, %v2330
        %v2333 = vadd.f32 %v2326, %v2331
        %2334 = vst [vmem:[%s476] sm:$0xff] %v2333
        %s2335 = sand.u32 %s299, 1
        %s2336 = scalar_lea.sflag [#allocation4], %s2335
        %s2337 = sand.u32 %s299, 1
        %s2338 = smul.addr %s2337, 8
        %s2339 = scalar_lea.vmem [#allocation10], %s2338
        // Predicated region
        $region85: #{tpu_custom_call.1} parent=67 // pred_check
          %p2340 = pneg %p309
        $region86: #{tpu_custom_call.1} parent=67 // pred_check_branch
          %2342 = sbr.rel (%p2340) target = $region88
        $region87: #{tpu_custom_call.1} parent=67 // pred_region
          %s2344 = ssub.s32 128, 128
          %2345 = vsyncadd %s2336, %s2344
          %s2346 = smul.addr %s29, 128
          %s2347 = scalar_lea.hbm %s12, %s2346
          %s2349 = sshll.u32 %s2339, 4
          %s2350 = int_to_ptr.vmem [resolvable:$true] %s2349
          %2352 = dma.vmem_to_hbm [thread:$0]  %s2350, 128, %s2347, %s2336
        $region88: #{tpu_custom_call.1} parent=67 // pred_fallthru
          _
      $region68: #{tpu_custom_call.1} parent=5 // pred_fallthru
        _
      %p2353 = scmp.le.s32.totalorder 2, %s24
      // Predicated region
      $region89: #{tpu_custom_call.1} parent=5 // pred_check
        %p2354 = pneg %p2353
      $region90: #{tpu_custom_call.1} parent=5 // pred_check_branch
        %2356 = sbr.rel (%p2354) target = $region92
      $region91: #{tpu_custom_call.1} parent=5 // pred_region
        %s2357 = ssub.s32 %s24, 2
        // Predicated region
        $region93: #{tpu_custom_call.1} parent=91 // pred_check
          %p2358 = pneg %p315
        $region94: #{tpu_custom_call.1} parent=91 // pred_check_branch
          %2360 = sbr.rel (%p2358) target = $region96
        $region95: #{tpu_custom_call.1} parent=91 // pred_region
          %s2361 = sand.u32 %s300, 1
          %s2362 = scalar_lea.sflag [#allocation4], %s2361
          %s2363 = sand.u32 %s300, 1
          %s2364 = smul.addr %s2363, 8
          %s2365 = scalar_lea.vmem [#allocation10], %s2364
          %2366 = dma.done %s2362, 128
        $region96: #{tpu_custom_call.1} parent=91 // pred_fallthru
          _
      $region92: #{tpu_custom_call.1} parent=5 // pred_fallthru
        _
    $region6: #{tpu_custom_call.1} parent=1 // loop_footer
      %s28 = sadd.s32 1, %s24
    $region7: #{tpu_custom_call.1} parent=1 // loop_footer_branch
      %23 = sbr.rel target = $region3
    $region8: #{tpu_custom_call.1} parent=1 // loop_exit
      _
    %2367 = vsyncpa [#allocation3], 1
    %s2368 = scalar_lea.sflag [#allocation3], 1
    %2369 = vsyncpa %s2368, 1
    %2370 = vsyncpa [#allocation6], 1
    %2371 = vsyncpa [#allocation9], 1
    %2372 = vsyncpa [#allocation4], 1
    %s2373 = scalar_lea.sflag [#allocation4], 1
    %2374 = vsyncpa %s2373, 1

</llo_original>
